<compile_context>
chip_gen: v6e
topology: v6e:2x2x1
jax: 0.10.0
libtpu: 0.0.40
codegen_flags: <defaults>
</compile_context>

<pallas_src>
import jax
import jax.numpy as jnp
from jax.experimental import pallas as pl
from jax.experimental.pallas import tpu as pltpu

EPS = 1e-5


def _resnet_block_kernel(x_ref, w1_ref, w2_ref, o_ref, pad_ref):
    # x_ref block : (1, H, W, C) f32 — current batch element
    # w*_ref      : (3, 3C, C) bf16 — rows ordered (kw, c_in), one slab per kh
    # pad_ref     : (H+2, W+2, C) bf16 VMEM scratch (reflect-padded image)
    _, H, W, C = x_ref.shape
    HW = H * W

    w1 = w1_ref[...]
    w2 = w2_ref[...]

    def write_reflect_pad(t):                               # t: (H, W, C) bf16
        pad_ref[1:H + 1, 1:W + 1, :] = t                    # interior
        pad_ref[0:1, 1:W + 1, :] = t[1:2]                   # top    <- row 1
        pad_ref[H + 1:H + 2, 1:W + 1, :] = t[H - 2:H - 1]   # bottom <- row H-2
        pad_ref[:, 0:1, :] = pad_ref[:, 2:3, :]             # left   <- col 1
        pad_ref[:, W + 1:W + 2, :] = pad_ref[:, W - 1:W, :]  # right <- col W-2

    def conv3x3(w):                                         # -> (HW, C) f32
        acc = jnp.zeros((HW, C), jnp.float32)
        for kh in range(3):
            rows = pad_ref[kh:kh + H, :, :]                 # (H, W+2, C) bf16
            cols = jnp.concatenate(                         # width im2col
                [rows[:, 0:W, :], rows[:, 1:W + 1, :], rows[:, 2:W + 2, :]],
                axis=-1).reshape(HW, 3 * C)                 # (HW, 3C) bf16
            acc = acc + jnp.dot(cols, w[kh],
                                preferred_element_type=jnp.float32)
        return acc

    def instance_norm(t):                # (HW, C) f32 — one-pass stats
        inv_n = 1.0 / HW
        mean = jnp.sum(t, axis=0, keepdims=True) * inv_n
        ex2 = jnp.sum(t * t, axis=0, keepdims=True) * inv_n
        var = ex2 - mean * mean
        return (t - mean) * jax.lax.rsqrt(var + EPS)

    # conv1 -> InstanceNorm -> ReLU
    write_reflect_pad(x_ref[0].astype(jnp.bfloat16))
    h = jnp.maximum(instance_norm(conv3x3(w1)), 0.0)

    # conv2 -> InstanceNorm
    write_reflect_pad(h.reshape(H, W, C).astype(jnp.bfloat16))
    h = instance_norm(conv3x3(w2))

    # Residual add in f32; re-read x from the (VMEM-resident) input block.
    o_ref[0] = (x_ref[0] + h.reshape(H, W, C)).astype(o_ref.dtype)


@jax.jit
def resnet_block_pallas(x_nchw, w1_oihw, b1, w2_oihw, b2):
    """x_nchw: (N, C, H, W) f32; weights OIHW; biases accepted for parity with
    the PyTorch module but not used in-kernel (a per-channel conv bias is
    mathematically cancelled by InstanceNorm's per-channel mean subtraction)."""
    del b1, b2
    N, C, H, W = x_nchw.shape
    assert H >= 2 and W >= 2, "ReflectionPad2d(1) needs H, W >= 2"

    x = jnp.transpose(x_nchw, (0, 2, 3, 1))                 # NHWC (glue)

    def prep_w(w_oihw):                                     # -> (3, 3C, C) bf16
        w_hwio = jnp.transpose(w_oihw, (2, 3, 1, 0))        # (3, 3, Cin, Cout)
        return w_hwio.reshape(3, 3 * C, C).astype(jnp.bfloat16)

    w1 = prep_w(w1_oihw)
    w2 = prep_w(w2_oihw)

    # Explicit VMEM budget derived from the real live temporaries.
    f32b, bf16b = 4, 2
    est = (2 * 2 * H * W * C * f32b            # in + out blocks, double-buffered
           + 2 * 2 * 3 * 3 * C * C * bf16b     # both weights, double-buffered
           + (H + 2) * (W + 2) * C * bf16b     # reflect-pad scratch
           + 4 * H * W * C * f32b              # conv acc / norm temporaries
           + H * W * 3 * C * bf16b)            # im2col slab
    vmem_limit = int(min(100 * 2**20, max(16 * 2**20, 2 * est)))

    # Note: for real workloads keep C a multiple of 128 so the (HW, C) lane
    # dimension is dense (masked partial stores are ~4.5x slower).
    out = pl.pallas_call(
        _resnet_block_kernel,
        out_shape=jax.ShapeDtypeStruct((N, H, W, C), x.dtype),
        grid_spec=pltpu.PrefetchScalarGridSpec(
            num_scalar_prefetch=0,
            grid=(N,),
            in_specs=[
                pl.BlockSpec((1, H, W, C), lambda n: (n, 0, 0, 0)),
                pl.BlockSpec((3, 3 * C, C), lambda n: (0, 0, 0)),
                pl.BlockSpec((3, 3 * C, C), lambda n: (0, 0, 0)),
            ],
            out_specs=pl.BlockSpec((1, H, W, C), lambda n: (n, 0, 0, 0)),
            scratch_shapes=[pltpu.VMEM((H + 2, W + 2, C), jnp.bfloat16)],
        ),
        compiler_params=pltpu.CompilerParams(
            dimension_semantics=("parallel",),
            vmem_limit_bytes=vmem_limit),
    )(x, w1, w2)

    return jnp.transpose(out, (0, 3, 1, 2))                 # back to NCHW


def _ref_forward(x, w1, b1, w2, b2):
    """Pure-JAX f32 reference (NCHW / OIHW), mirrors the PyTorch module."""
    def refl_pad(t):
        return jnp.pad(t, ((0, 0), (0, 0), (1, 1), (1, 1)), mode="reflect")

    def conv(t, w, b):
        y = jax.lax.conv_general_dilated(
            t, w, window_strides=(1, 1), padding="VALID",
            dimension_numbers=("NCHW", "OIHW", "NCHW"))
        return y + b[None, :, None, None]

    def inorm(t):
        m = t.mean(axis=(2, 3), keepdims=True)
        v = ((t - m) ** 2).mean(axis=(2, 3), keepdims=True)
        return (t - m) * jax.lax.rsqrt(v + EPS)

    h = jnp.maximum(inorm(conv(refl_pad(x), w1, b1)), 0.0)
    h = inorm(conv(refl_pad(h), w2, b2))
    return x + h


if __name__ == "__main__":
    N, C, H, W = 2, 4, 16, 16
    key = jax.random.PRNGKey(0)
    kx, kw1, kb1, kw2, kb2 = jax.random.split(key, 5)

    x = jax.random.normal(kx, (N, C, H, W), dtype=jnp.float32)
    # Deterministic "Conv2d(dim, dim, 3)" parameters (OIHW) and biases.
    scale = 1.0 / (C * 9) ** 0.5
    w1 = jax.random.uniform(kw1, (C, C, 3, 3), jnp.float32, -scale, scale)
    b1 = jax.random.uniform(kb1, (C,), jnp.float32, -scale, scale)
    w2 = jax.random.uniform(kw2, (C, C, 3, 3), jnp.float32, -scale, scale)
    b2 = jax.random.uniform(kb2, (C,), jnp.float32, -scale, scale)

    out = jax.block_until_ready(resnet_block_pallas(x, w1, b1, w2, b2))
    ref = jax.block_until_ready(_ref_forward(x, w1, b1, w2, b2))

    assert out.shape == (N, C, H, W)
    # Tolerance sized for bf16 MXU operands (stats / residual stay in f32).
    max_err = float(jnp.max(jnp.abs(out - ref)))
    assert jnp.allclose(out, ref, atol=3e-2, rtol=3e-2), max_err

    print("KERNEL_OK")
</pallas_src>

<mosaic_0001>
module attributes {stable_mosaic.version = 11 : i64} {
  func.func @_resnet_block_kernel(%arg0: i32, %arg1: memref<1x16x16x4xf32, #tpu.memory_space<vmem>>, %arg2: memref<3x12x4xbf16, #tpu.memory_space<vmem>>, %arg3: memref<3x12x4xbf16, #tpu.memory_space<vmem>>, %arg4: memref<1x16x16x4xf32, #tpu.memory_space<vmem>>, %arg5: memref<18x18x4xbf16, #tpu.memory_space<vmem>>) attributes {dimension_semantics = [#tpu.dimension_semantics<parallel>], iteration_bounds = array<i64: 2>, scalar_prefetch = 0 : i64, scratch_operands = 1 : i64, tpu.core_type = #tpu.core_type<tc>, window_params = [{transform_indices = @transform_0, window_bounds = array<i64: 1, 16, 16, 4>}, {pipeline_mode = #tpu.pipeline_mode<synchronous>, transform_indices = @transform_1, window_bounds = array<i64: 3, 12, 4>}, {pipeline_mode = #tpu.pipeline_mode<synchronous>, transform_indices = @transform_2, window_bounds = array<i64: 3, 12, 4>}, {transform_indices = @transform_3, window_bounds = array<i64: 1, 16, 16, 4>}]} {
    %c0 = arith.constant 0 : index
    %c0_0 = arith.constant 0 : index
    %c0_1 = arith.constant 0 : index
    %0 = vector.load %arg2[%c0, %c0_0, %c0_1] : memref<3x12x4xbf16, #tpu.memory_space<vmem>>, vector<3x12x4xbf16>
    %c0_2 = arith.constant 0 : index
    %c0_3 = arith.constant 0 : index
    %c0_4 = arith.constant 0 : index
    %1 = vector.load %arg3[%c0_2, %c0_3, %c0_4] : memref<3x12x4xbf16, #tpu.memory_space<vmem>>, vector<3x12x4xbf16>
    %c0_5 = arith.constant 0 : index
    %c0_6 = arith.constant 0 : index
    %c0_7 = arith.constant 0 : index
    %c0_8 = arith.constant 0 : index
    %2 = vector.load %arg1[%c0_5, %c0_6, %c0_7, %c0_8] : memref<1x16x16x4xf32, #tpu.memory_space<vmem>>, vector<1x16x16x4xf32>
    %3 = vector.shape_cast %2 : vector<1x16x16x4xf32> to vector<16x16x4xf32>
    %4 = arith.truncf %3 : vector<16x16x4xf32> to vector<16x16x4xbf16>
    %c1 = arith.constant 1 : index
    %c1_9 = arith.constant 1 : index
    %c0_10 = arith.constant 0 : index
    %5 = vector.load %arg5[%c1, %c1_9, %c0_10] : memref<18x18x4xbf16, #tpu.memory_space<vmem>>, vector<16x16x4xbf16>
    tpu.vector_store %arg5[%c1, %c1_9, %c0_10], %4 {strides = array<i32>} : memref<18x18x4xbf16, #tpu.memory_space<vmem>>, vector<16x16x4xbf16>,
    %6 = vector.extract_strided_slice %4 {offsets = [1, 0, 0], sizes = [1, 16, 4], strides = [1, 1, 1]} : vector<16x16x4xbf16> to vector<1x16x4xbf16>
    %c0_11 = arith.constant 0 : index
    %c1_12 = arith.constant 1 : index
    %c0_13 = arith.constant 0 : index
    %7 = vector.load %arg5[%c0_11, %c1_12, %c0_13] : memref<18x18x4xbf16, #tpu.memory_space<vmem>>, vector<1x16x4xbf16>
    tpu.vector_store %arg5[%c0_11, %c1_12, %c0_13], %6 {strides = array<i32>} : memref<18x18x4xbf16, #tpu.memory_space<vmem>>, vector<1x16x4xbf16>,
    %8 = vector.extract_strided_slice %4 {offsets = [14, 0, 0], sizes = [1, 16, 4], strides = [1, 1, 1]} : vector<16x16x4xbf16> to vector<1x16x4xbf16>
    %c17 = arith.constant 17 : index
    %c1_14 = arith.constant 1 : index
    %c0_15 = arith.constant 0 : index
    %9 = vector.load %arg5[%c17, %c1_14, %c0_15] : memref<18x18x4xbf16, #tpu.memory_space<vmem>>, vector<1x16x4xbf16>
    tpu.vector_store %arg5[%c17, %c1_14, %c0_15], %8 {strides = array<i32>} : memref<18x18x4xbf16, #tpu.memory_space<vmem>>, vector<1x16x4xbf16>,
    %c0_16 = arith.constant 0 : index
    %c2 = arith.constant 2 : index
    %c0_17 = arith.constant 0 : index
    %10 = vector.load %arg5[%c0_16, %c2, %c0_17] : memref<18x18x4xbf16, #tpu.memory_space<vmem>>, vector<18x1x4xbf16>
    %c0_18 = arith.constant 0 : index
    %c0_19 = arith.constant 0 : index
    %c0_20 = arith.constant 0 : index
    %11 = vector.load %arg5[%c0_18, %c0_19, %c0_20] : memref<18x18x4xbf16, #tpu.memory_space<vmem>>, vector<18x1x4xbf16>
    tpu.vector_store %arg5[%c0_18, %c0_19, %c0_20], %10 {strides = array<i32>} : memref<18x18x4xbf16, #tpu.memory_space<vmem>>, vector<18x1x4xbf16>,
    %c0_21 = arith.constant 0 : index
    %c15 = arith.constant 15 : index
    %c0_22 = arith.constant 0 : index
    %12 = vector.load %arg5[%c0_21, %c15, %c0_22] : memref<18x18x4xbf16, #tpu.memory_space<vmem>>, vector<18x1x4xbf16>
    %c0_23 = arith.constant 0 : index
    %c17_24 = arith.constant 17 : index
    %c0_25 = arith.constant 0 : index
    %13 = vector.load %arg5[%c0_23, %c17_24, %c0_25] : memref<18x18x4xbf16, #tpu.memory_space<vmem>>, vector<18x1x4xbf16>
    tpu.vector_store %arg5[%c0_23, %c17_24, %c0_25], %12 {strides = array<i32>} : memref<18x18x4xbf16, #tpu.memory_space<vmem>>, vector<18x1x4xbf16>,
    %cst = arith.constant 0.000000e+00 : f32
    %14 = vector.broadcast %cst : f32 to vector<256x4xf32>
    %c0_26 = arith.constant 0 : index
    %c0_27 = arith.constant 0 : index
    %c0_28 = arith.constant 0 : index
    %15 = vector.load %arg5[%c0_26, %c0_27, %c0_28] : memref<18x18x4xbf16, #tpu.memory_space<vmem>>, vector<16x18x4xbf16>
    %16 = vector.extract_strided_slice %15 {offsets = [0, 0, 0], sizes = [16, 16, 4], strides = [1, 1, 1]} : vector<16x18x4xbf16> to vector<16x16x4xbf16>
    %17 = vector.extract_strided_slice %15 {offsets = [0, 1, 0], sizes = [16, 16, 4], strides = [1, 1, 1]} : vector<16x18x4xbf16> to vector<16x16x4xbf16>
    %18 = vector.extract_strided_slice %15 {offsets = [0, 2, 0], sizes = [16, 16, 4], strides = [1, 1, 1]} : vector<16x18x4xbf16> to vector<16x16x4xbf16>
    %19 = tpu.concatenate %16, %17, %18 in 2 : vector<16x16x4xbf16>, vector<16x16x4xbf16>, vector<16x16x4xbf16> -> vector<16x16x12xbf16>
    %20 = vector.shape_cast %19 : vector<16x16x12xbf16> to vector<256x12xbf16>
    %21 = vector.extract_strided_slice %0 {offsets = [0, 0, 0], sizes = [1, 12, 4], strides = [1, 1, 1]} : vector<3x12x4xbf16> to vector<1x12x4xbf16>
    %22 = vector.shape_cast %21 : vector<1x12x4xbf16> to vector<12x4xbf16>
    %cst_29 = arith.constant dense<0.000000e+00> : vector<256x4xf32>
    %23 = tpu.matmul %20, %22, %cst_29 {dimension_numbers = #tpu.dot_dimension_numbers<[1], [0], [0], [1], [0, 0, 1, 1], [], []>} : vector<256x12xbf16>, vector<12x4xbf16>, vector<256x4xf32> -> vector<256x4xf32>
    %24 = arith.addf %14, %23 : vector<256x4xf32>
    %c1_30 = arith.constant 1 : index
    %c0_31 = arith.constant 0 : index
    %c0_32 = arith.constant 0 : index
    %25 = vector.load %arg5[%c1_30, %c0_31, %c0_32] : memref<18x18x4xbf16, #tpu.memory_space<vmem>>, vector<16x18x4xbf16>
    %26 = vector.extract_strided_slice %25 {offsets = [0, 0, 0], sizes = [16, 16, 4], strides = [1, 1, 1]} : vector<16x18x4xbf16> to vector<16x16x4xbf16>
    %27 = vector.extract_strided_slice %25 {offsets = [0, 1, 0], sizes = [16, 16, 4], strides = [1, 1, 1]} : vector<16x18x4xbf16> to vector<16x16x4xbf16>
    %28 = vector.extract_strided_slice %25 {offsets = [0, 2, 0], sizes = [16, 16, 4], strides = [1, 1, 1]} : vector<16x18x4xbf16> to vector<16x16x4xbf16>
    %29 = tpu.concatenate %26, %27, %28 in 2 : vector<16x16x4xbf16>, vector<16x16x4xbf16>, vector<16x16x4xbf16> -> vector<16x16x12xbf16>
    %30 = vector.shape_cast %29 : vector<16x16x12xbf16> to vector<256x12xbf16>
    %31 = vector.extract_strided_slice %0 {offsets = [1, 0, 0], sizes = [1, 12, 4], strides = [1, 1, 1]} : vector<3x12x4xbf16> to vector<1x12x4xbf16>
    %32 = vector.shape_cast %31 : vector<1x12x4xbf16> to vector<12x4xbf16>
    %cst_33 = arith.constant dense<0.000000e+00> : vector<256x4xf32>
    %33 = tpu.matmul %30, %32, %cst_33 {dimension_numbers = #tpu.dot_dimension_numbers<[1], [0], [0], [1], [0, 0, 1, 1], [], []>} : vector<256x12xbf16>, vector<12x4xbf16>, vector<256x4xf32> -> vector<256x4xf32>
    %34 = arith.addf %24, %33 : vector<256x4xf32>
    %c2_34 = arith.constant 2 : index
    %c0_35 = arith.constant 0 : index
    %c0_36 = arith.constant 0 : index
    %35 = vector.load %arg5[%c2_34, %c0_35, %c0_36] : memref<18x18x4xbf16, #tpu.memory_space<vmem>>, vector<16x18x4xbf16>
    %36 = vector.extract_strided_slice %35 {offsets = [0, 0, 0], sizes = [16, 16, 4], strides = [1, 1, 1]} : vector<16x18x4xbf16> to vector<16x16x4xbf16>
    %37 = vector.extract_strided_slice %35 {offsets = [0, 1, 0], sizes = [16, 16, 4], strides = [1, 1, 1]} : vector<16x18x4xbf16> to vector<16x16x4xbf16>
    %38 = vector.extract_strided_slice %35 {offsets = [0, 2, 0], sizes = [16, 16, 4], strides = [1, 1, 1]} : vector<16x18x4xbf16> to vector<16x16x4xbf16>
    %39 = tpu.concatenate %36, %37, %38 in 2 : vector<16x16x4xbf16>, vector<16x16x4xbf16>, vector<16x16x4xbf16> -> vector<16x16x12xbf16>
    %40 = vector.shape_cast %39 : vector<16x16x12xbf16> to vector<256x12xbf16>
    %41 = vector.extract_strided_slice %0 {offsets = [2, 0, 0], sizes = [1, 12, 4], strides = [1, 1, 1]} : vector<3x12x4xbf16> to vector<1x12x4xbf16>
    %42 = vector.shape_cast %41 : vector<1x12x4xbf16> to vector<12x4xbf16>
    %cst_37 = arith.constant dense<0.000000e+00> : vector<256x4xf32>
    %43 = tpu.matmul %40, %42, %cst_37 {dimension_numbers = #tpu.dot_dimension_numbers<[1], [0], [0], [1], [0, 0, 1, 1], [], []>} : vector<256x12xbf16>, vector<12x4xbf16>, vector<256x4xf32> -> vector<256x4xf32>
    %44 = arith.addf %34, %43 : vector<256x4xf32>
    %cst_38 = arith.constant dense<0.000000e+00> : vector<4xf32>
    %45 = vector.multi_reduction <add>, %44, %cst_38 [0] : vector<256x4xf32> to vector<4xf32>
    %46 = vector.shape_cast %45 : vector<4xf32> to vector<1x4xf32>
    %cst_39 = arith.constant 3.906250e-03 : f32
    %47 = vector.broadcast %cst_39 : f32 to vector<1x4xf32>
    %48 = arith.mulf %46, %47 : vector<1x4xf32>
    %49 = arith.mulf %44, %44 : vector<256x4xf32>
    %cst_40 = arith.constant dense<0.000000e+00> : vector<4xf32>
    %50 = vector.multi_reduction <add>, %49, %cst_40 [0] : vector<256x4xf32> to vector<4xf32>
    %51 = vector.shape_cast %50 : vector<4xf32> to vector<1x4xf32>
    %cst_41 = arith.constant 3.906250e-03 : f32
    %52 = vector.broadcast %cst_41 : f32 to vector<1x4xf32>
    %53 = arith.mulf %51, %52 : vector<1x4xf32>
    %54 = arith.mulf %48, %48 : vector<1x4xf32>
    %55 = arith.subf %53, %54 : vector<1x4xf32>
    %56 = vector.broadcast %48 : vector<1x4xf32> to vector<256x4xf32>
    %57 = arith.subf %44, %56 : vector<256x4xf32>
    %cst_42 = arith.constant 9.99999974E-6 : f32
    %58 = vector.broadcast %cst_42 : f32 to vector<1x4xf32>
    %59 = arith.addf %55, %58 : vector<1x4xf32>
    %60 = math.rsqrt %59 : vector<1x4xf32>
    %61 = vector.broadcast %60 : vector<1x4xf32> to vector<256x4xf32>
    %62 = arith.mulf %57, %61 : vector<256x4xf32>
    %cst_43 = arith.constant 0.000000e+00 : f32
    %63 = vector.broadcast %cst_43 : f32 to vector<256x4xf32>
    %64 = arith.maximumf %62, %63 : vector<256x4xf32>
    %65 = vector.shape_cast %64 : vector<256x4xf32> to vector<16x16x4xf32>
    %66 = arith.truncf %65 : vector<16x16x4xf32> to vector<16x16x4xbf16>
    %c1_44 = arith.constant 1 : index
    %c1_45 = arith.constant 1 : index
    %c0_46 = arith.constant 0 : index
    %67 = vector.load %arg5[%c1_44, %c1_45, %c0_46] : memref<18x18x4xbf16, #tpu.memory_space<vmem>>, vector<16x16x4xbf16>
    tpu.vector_store %arg5[%c1_44, %c1_45, %c0_46], %66 {strides = array<i32>} : memref<18x18x4xbf16, #tpu.memory_space<vmem>>, vector<16x16x4xbf16>,
    %68 = vector.extract_strided_slice %66 {offsets = [1, 0, 0], sizes = [1, 16, 4], strides = [1, 1, 1]} : vector<16x16x4xbf16> to vector<1x16x4xbf16>
    %c0_47 = arith.constant 0 : index
    %c1_48 = arith.constant 1 : index
    %c0_49 = arith.constant 0 : index
    %69 = vector.load %arg5[%c0_47, %c1_48, %c0_49] : memref<18x18x4xbf16, #tpu.memory_space<vmem>>, vector<1x16x4xbf16>
    tpu.vector_store %arg5[%c0_47, %c1_48, %c0_49], %68 {strides = array<i32>} : memref<18x18x4xbf16, #tpu.memory_space<vmem>>, vector<1x16x4xbf16>,
    %70 = vector.extract_strided_slice %66 {offsets = [14, 0, 0], sizes = [1, 16, 4], strides = [1, 1, 1]} : vector<16x16x4xbf16> to vector<1x16x4xbf16>
    %c17_50 = arith.constant 17 : index
    %c1_51 = arith.constant 1 : index
    %c0_52 = arith.constant 0 : index
    %71 = vector.load %arg5[%c17_50, %c1_51, %c0_52] : memref<18x18x4xbf16, #tpu.memory_space<vmem>>, vector<1x16x4xbf16>
    tpu.vector_store %arg5[%c17_50, %c1_51, %c0_52], %70 {strides = array<i32>} : memref<18x18x4xbf16, #tpu.memory_space<vmem>>, vector<1x16x4xbf16>,
    %c0_53 = arith.constant 0 : index
    %c2_54 = arith.constant 2 : index
    %c0_55 = arith.constant 0 : index
    %72 = vector.load %arg5[%c0_53, %c2_54, %c0_55] : memref<18x18x4xbf16, #tpu.memory_space<vmem>>, vector<18x1x4xbf16>
    %c0_56 = arith.constant 0 : index
    %c0_57 = arith.constant 0 : index
    %c0_58 = arith.constant 0 : index
    %73 = vector.load %arg5[%c0_56, %c0_57, %c0_58] : memref<18x18x4xbf16, #tpu.memory_space<vmem>>, vector<18x1x4xbf16>
    tpu.vector_store %arg5[%c0_56, %c0_57, %c0_58], %72 {strides = array<i32>} : memref<18x18x4xbf16, #tpu.memory_space<vmem>>, vector<18x1x4xbf16>,
    %c0_59 = arith.constant 0 : index
    %c15_60 = arith.constant 15 : index
    %c0_61 = arith.constant 0 : index
    %74 = vector.load %arg5[%c0_59, %c15_60, %c0_61] : memref<18x18x4xbf16, #tpu.memory_space<vmem>>, vector<18x1x4xbf16>
    %c0_62 = arith.constant 0 : index
    %c17_63 = arith.constant 17 : index
    %c0_64 = arith.constant 0 : index
    %75 = vector.load %arg5[%c0_62, %c17_63, %c0_64] : memref<18x18x4xbf16, #tpu.memory_space<vmem>>, vector<18x1x4xbf16>
    tpu.vector_store %arg5[%c0_62, %c17_63, %c0_64], %74 {strides = array<i32>} : memref<18x18x4xbf16, #tpu.memory_space<vmem>>, vector<18x1x4xbf16>,
    %cst_65 = arith.constant 0.000000e+00 : f32
    %76 = vector.broadcast %cst_65 : f32 to vector<256x4xf32>
    %c0_66 = arith.constant 0 : index
    %c0_67 = arith.constant 0 : index
    %c0_68 = arith.constant 0 : index
    %77 = vector.load %arg5[%c0_66, %c0_67, %c0_68] : memref<18x18x4xbf16, #tpu.memory_space<vmem>>, vector<16x18x4xbf16>
    %78 = vector.extract_strided_slice %77 {offsets = [0, 0, 0], sizes = [16, 16, 4], strides = [1, 1, 1]} : vector<16x18x4xbf16> to vector<16x16x4xbf16>
    %79 = vector.extract_strided_slice %77 {offsets = [0, 1, 0], sizes = [16, 16, 4], strides = [1, 1, 1]} : vector<16x18x4xbf16> to vector<16x16x4xbf16>
    %80 = vector.extract_strided_slice %77 {offsets = [0, 2, 0], sizes = [16, 16, 4], strides = [1, 1, 1]} : vector<16x18x4xbf16> to vector<16x16x4xbf16>
    %81 = tpu.concatenate %78, %79, %80 in 2 : vector<16x16x4xbf16>, vector<16x16x4xbf16>, vector<16x16x4xbf16> -> vector<16x16x12xbf16>
    %82 = vector.shape_cast %81 : vector<16x16x12xbf16> to vector<256x12xbf16>
    %83 = vector.extract_strided_slice %1 {offsets = [0, 0, 0], sizes = [1, 12, 4], strides = [1, 1, 1]} : vector<3x12x4xbf16> to vector<1x12x4xbf16>
    %84 = vector.shape_cast %83 : vector<1x12x4xbf16> to vector<12x4xbf16>
    %cst_69 = arith.constant dense<0.000000e+00> : vector<256x4xf32>
    %85 = tpu.matmul %82, %84, %cst_69 {dimension_numbers = #tpu.dot_dimension_numbers<[1], [0], [0], [1], [0, 0, 1, 1], [], []>} : vector<256x12xbf16>, vector<12x4xbf16>, vector<256x4xf32> -> vector<256x4xf32>
    %86 = arith.addf %76, %85 : vector<256x4xf32>
    %c1_70 = arith.constant 1 : index
    %c0_71 = arith.constant 0 : index
    %c0_72 = arith.constant 0 : index
    %87 = vector.load %arg5[%c1_70, %c0_71, %c0_72] : memref<18x18x4xbf16, #tpu.memory_space<vmem>>, vector<16x18x4xbf16>
    %88 = vector.extract_strided_slice %87 {offsets = [0, 0, 0], sizes = [16, 16, 4], strides = [1, 1, 1]} : vector<16x18x4xbf16> to vector<16x16x4xbf16>
    %89 = vector.extract_strided_slice %87 {offsets = [0, 1, 0], sizes = [16, 16, 4], strides = [1, 1, 1]} : vector<16x18x4xbf16> to vector<16x16x4xbf16>
    %90 = vector.extract_strided_slice %87 {offsets = [0, 2, 0], sizes = [16, 16, 4], strides = [1, 1, 1]} : vector<16x18x4xbf16> to vector<16x16x4xbf16>
    %91 = tpu.concatenate %88, %89, %90 in 2 : vector<16x16x4xbf16>, vector<16x16x4xbf16>, vector<16x16x4xbf16> -> vector<16x16x12xbf16>
    %92 = vector.shape_cast %91 : vector<16x16x12xbf16> to vector<256x12xbf16>
    %93 = vector.extract_strided_slice %1 {offsets = [1, 0, 0], sizes = [1, 12, 4], strides = [1, 1, 1]} : vector<3x12x4xbf16> to vector<1x12x4xbf16>
    %94 = vector.shape_cast %93 : vector<1x12x4xbf16> to vector<12x4xbf16>
    %cst_73 = arith.constant dense<0.000000e+00> : vector<256x4xf32>
    %95 = tpu.matmul %92, %94, %cst_73 {dimension_numbers = #tpu.dot_dimension_numbers<[1], [0], [0], [1], [0, 0, 1, 1], [], []>} : vector<256x12xbf16>, vector<12x4xbf16>, vector<256x4xf32> -> vector<256x4xf32>
    %96 = arith.addf %86, %95 : vector<256x4xf32>
    %c2_74 = arith.constant 2 : index
    %c0_75 = arith.constant 0 : index
    %c0_76 = arith.constant 0 : index
    %97 = vector.load %arg5[%c2_74, %c0_75, %c0_76] : memref<18x18x4xbf16, #tpu.memory_space<vmem>>, vector<16x18x4xbf16>
    %98 = vector.extract_strided_slice %97 {offsets = [0, 0, 0], sizes = [16, 16, 4], strides = [1, 1, 1]} : vector<16x18x4xbf16> to vector<16x16x4xbf16>
    %99 = vector.extract_strided_slice %97 {offsets = [0, 1, 0], sizes = [16, 16, 4], strides = [1, 1, 1]} : vector<16x18x4xbf16> to vector<16x16x4xbf16>
    %100 = vector.extract_strided_slice %97 {offsets = [0, 2, 0], sizes = [16, 16, 4], strides = [1, 1, 1]} : vector<16x18x4xbf16> to vector<16x16x4xbf16>
    %101 = tpu.concatenate %98, %99, %100 in 2 : vector<16x16x4xbf16>, vector<16x16x4xbf16>, vector<16x16x4xbf16> -> vector<16x16x12xbf16>
    %102 = vector.shape_cast %101 : vector<16x16x12xbf16> to vector<256x12xbf16>
    %103 = vector.extract_strided_slice %1 {offsets = [2, 0, 0], sizes = [1, 12, 4], strides = [1, 1, 1]} : vector<3x12x4xbf16> to vector<1x12x4xbf16>
    %104 = vector.shape_cast %103 : vector<1x12x4xbf16> to vector<12x4xbf16>
    %cst_77 = arith.constant dense<0.000000e+00> : vector<256x4xf32>
    %105 = tpu.matmul %102, %104, %cst_77 {dimension_numbers = #tpu.dot_dimension_numbers<[1], [0], [0], [1], [0, 0, 1, 1], [], []>} : vector<256x12xbf16>, vector<12x4xbf16>, vector<256x4xf32> -> vector<256x4xf32>
    %106 = arith.addf %96, %105 : vector<256x4xf32>
    %cst_78 = arith.constant dense<0.000000e+00> : vector<4xf32>
    %107 = vector.multi_reduction <add>, %106, %cst_78 [0] : vector<256x4xf32> to vector<4xf32>
    %108 = vector.shape_cast %107 : vector<4xf32> to vector<1x4xf32>
    %cst_79 = arith.constant 3.906250e-03 : f32
    %109 = vector.broadcast %cst_79 : f32 to vector<1x4xf32>
    %110 = arith.mulf %108, %109 : vector<1x4xf32>
    %111 = arith.mulf %106, %106 : vector<256x4xf32>
    %cst_80 = arith.constant dense<0.000000e+00> : vector<4xf32>
    %112 = vector.multi_reduction <add>, %111, %cst_80 [0] : vector<256x4xf32> to vector<4xf32>
    %113 = vector.shape_cast %112 : vector<4xf32> to vector<1x4xf32>
    %cst_81 = arith.constant 3.906250e-03 : f32
    %114 = vector.broadcast %cst_81 : f32 to vector<1x4xf32>
    %115 = arith.mulf %113, %114 : vector<1x4xf32>
    %116 = arith.mulf %110, %110 : vector<1x4xf32>
    %117 = arith.subf %115, %116 : vector<1x4xf32>
    %118 = vector.broadcast %110 : vector<1x4xf32> to vector<256x4xf32>
    %119 = arith.subf %106, %118 : vector<256x4xf32>
    %cst_82 = arith.constant 9.99999974E-6 : f32
    %120 = vector.broadcast %cst_82 : f32 to vector<1x4xf32>
    %121 = arith.addf %117, %120 : vector<1x4xf32>
    %122 = math.rsqrt %121 : vector<1x4xf32>
    %123 = vector.broadcast %122 : vector<1x4xf32> to vector<256x4xf32>
    %124 = arith.mulf %119, %123 : vector<256x4xf32>
    %c0_83 = arith.constant 0 : index
    %c0_84 = arith.constant 0 : index
    %c0_85 = arith.constant 0 : index
    %c0_86 = arith.constant 0 : index
    %125 = vector.load %arg1[%c0_83, %c0_84, %c0_85, %c0_86] : memref<1x16x16x4xf32, #tpu.memory_space<vmem>>, vector<1x16x16x4xf32>
    %126 = vector.shape_cast %125 : vector<1x16x16x4xf32> to vector<16x16x4xf32>
    %127 = vector.shape_cast %124 : vector<256x4xf32> to vector<16x16x4xf32>
    %128 = arith.addf %126, %127 : vector<16x16x4xf32>
    %c0_87 = arith.constant 0 : index
    %c0_88 = arith.constant 0 : index
    %c0_89 = arith.constant 0 : index
    %c0_90 = arith.constant 0 : index
    %129 = vector.load %arg4[%c0_87, %c0_88, %c0_89, %c0_90] : memref<1x16x16x4xf32, #tpu.memory_space<vmem>>, vector<1x16x16x4xf32>
    %130 = vector.shape_cast %129 : vector<1x16x16x4xf32> to vector<16x16x4xf32>
    %131 = vector.shape_cast %128 : vector<16x16x4xf32> to vector<1x16x16x4xf32>
    tpu.vector_store %arg4[%c0_87, %c0_88, %c0_89, %c0_90], %131 {strides = array<i32>} : memref<1x16x16x4xf32, #tpu.memory_space<vmem>>, vector<1x16x16x4xf32>,
    return
  }
  func.func @transform_0(%arg0: i32) -> (i32, i32, i32, i32) {
    %c0_i32 = arith.constant 0 : i32
    %c0_i32_0 = arith.constant 0 : i32
    %c0_i32_1 = arith.constant 0 : i32
    %c0_i32_2 = arith.constant 0 : i32
    return %arg0, %c0_i32, %c0_i32_0, %c0_i32_1 : i32, i32, i32, i32
  }
  func.func @transform_1(%arg0: i32) -> (i32, i32, i32) {
    %c0_i32 = arith.constant 0 : i32
    %c0_i32_0 = arith.constant 0 : i32
    %c0_i32_1 = arith.constant 0 : i32
    %c0_i32_2 = arith.constant 0 : i32
    return %c0_i32, %c0_i32_0, %c0_i32_1 : i32, i32, i32
  }
  func.func @transform_2(%arg0: i32) -> (i32, i32, i32) {
    %c0_i32 = arith.constant 0 : i32
    %c0_i32_0 = arith.constant 0 : i32
    %c0_i32_1 = arith.constant 0 : i32
    %c0_i32_2 = arith.constant 0 : i32
    return %c0_i32, %c0_i32_0, %c0_i32_1 : i32, i32, i32
  }
  func.func @transform_3(%arg0: i32) -> (i32, i32, i32, i32) {
    %c0_i32 = arith.constant 0 : i32
    %c0_i32_0 = arith.constant 0 : i32
    %c0_i32_1 = arith.constant 0 : i32
    %c0_i32_2 = arith.constant 0 : i32
    return %arg0, %c0_i32, %c0_i32_0, %c0_i32_1 : i32, i32, i32, i32
  }
}

</mosaic_0001>

<llo_original>
// kernel: resnet_block_pallas.1
$region0: #{resnet_block_pallas.1}
  #allocation0 [shape = 'u32[]', space=smem, size = 0x4, offset = 0x4, fixed_abs, tag = 'smem constant byte address 0x4 - core index']
  #allocation1 [shape = 'u32[144,128]{1,0:T(1,128)}', space=vmem, size = 0x12000, scoped, tag = 'internal scratch']
  #allocation2 [shape = 'bf16[18,18,4]{2,1,0:T(8,128)(2,1)}', space=vmem, size = 0x1b000, scoped, tag = 'scratch operand']
  %s0 = inlined_call_operand.vmem [shape: f32[2,16,16,4], index: 0, kind: input, shape index: {}]
  %s1 = inlined_call_operand.vmem [shape: bf16[3,12,4], index: 1, kind: input, shape index: {}]
  %s2 = inlined_call_operand.vmem [shape: bf16[3,12,4], index: 2, kind: input, shape index: {}]
  %s3 = inlined_call_operand.vmem [shape: f32[2,16,16,4], index: 3, kind: output, shape index: {}]
  %s4 = sld [smem:[#allocation0]]
  $region45: #{resnet_block_pallas.1} parent=0
    _
  %s6 = ssub.s32 1, %s4
  %s7 = scalar_select 0, %s6, %s4
  loop: start=0, step=1, limit=4
  $region2: #{resnet_block_pallas.1} parent=0 // loop_pre_header
    _
  $region3: #{resnet_block_pallas.1} parent=0 // loop_header
    %s9 = sphi 0, %s13
    %p10 = scmp.ge.s32.totalorder %s9, 4
    %s19 = sphi 0, %s21
    %s22 = sphi 0, %s19
    %s23 = sphi 0, %s22
    %s39 = sphi 0, %s23
    %s43 = sphi 0, %s43
    %s45 = sphi 0, %s43
    %s46 = sphi 0, %s45
    %s60 = sphi 0, %s46
    %s64 = sphi 0, %s64
    %s66 = sphi 0, %s64
    %s67 = sphi 0, %s66
    %s81 = sphi 0, %s67
    %s87 = sphi 0, %s89
    %s90 = sphi 0, %s87
    %s91 = sphi 0, %s90
    %s107 = sphi 0, %s91
  $region4: #{resnet_block_pallas.1} parent=0 // loop_header_branch
    %12 = sbr.rel (%p10) target = $region8
  $region5: #{resnet_block_pallas.1} parent=0 // loop_body
    %s14 = ssub.s32 %s9, 1
    %s15 = ssub.s32 %s9, 2
    %s16 = sadd.s32 %s9, 1
    %s17 = ssub.s32 %s9, %s16
    %p18 = scmp.eq.s32.totalorder %s17, 0
    %s20 = sadd.s32 %s19, 1
    %s21 = scalar_select %p18, %s19, %s20
    %p24 = pneg %p18
    %p25 = scmp.eq.s32.totalorder %s9, 1
    %p26 = por %p24, %p25
    %p27 = scmp.ne.s32.totalorder %s19, %s22
    %p28 = scmp.eq.s32.totalorder %s9, 0
    %p29 = por %p27, %p28
    %p30 = scmp.ne.s32.totalorder %s19, %s22
    %p31 = scmp.eq.s32.totalorder %s14, 1
    %p32 = por %p30, %p31
    %p33 = scmp.ne.s32.totalorder %s22, %s23
    %p34 = scmp.eq.s32.totalorder %s14, 0
    %p35 = por %p33, %p34
    %p36 = scmp.ne.s32.totalorder %s22, %s23
    %p37 = scmp.eq.s32.totalorder %s15, 1
    %p38 = por %p36, %p37
    %p40 = scmp.ne.s32.totalorder %s23, %s39
    %p41 = scmp.eq.s32.totalorder %s15, 0
    %p42 = por %p40, %p41
    %s44 = sadd.s32 %s43, 1
    %p47 = scmp.eq.s32.totalorder %s9, 1
    %p48 = scmp.ne.s32.totalorder %s43, %s45
    %p49 = scmp.eq.s32.totalorder %s9, 0
    %p50 = por %p48, %p49
    %p51 = scmp.ne.s32.totalorder %s43, %s45
    %p52 = scmp.eq.s32.totalorder %s14, 1
    %p53 = por %p51, %p52
    %p54 = scmp.ne.s32.totalorder %s45, %s46
    %p55 = scmp.eq.s32.totalorder %s14, 0
    %p56 = por %p54, %p55
    %p57 = scmp.ne.s32.totalorder %s45, %s46
    %p58 = scmp.eq.s32.totalorder %s15, 1
    %p59 = por %p57, %p58
    %p61 = scmp.ne.s32.totalorder %s46, %s60
    %p62 = scmp.eq.s32.totalorder %s15, 0
    %p63 = por %p61, %p62
    %s65 = sadd.s32 %s64, 1
    %p68 = scmp.eq.s32.totalorder %s9, 1
    %p69 = scmp.ne.s32.totalorder %s64, %s66
    %p70 = scmp.eq.s32.totalorder %s9, 0
    %p71 = por %p69, %p70
    %p72 = scmp.ne.s32.totalorder %s64, %s66
    %p73 = scmp.eq.s32.totalorder %s14, 1
    %p74 = por %p72, %p73
    %p75 = scmp.ne.s32.totalorder %s66, %s67
    %p76 = scmp.eq.s32.totalorder %s14, 0
    %p77 = por %p75, %p76
    %p78 = scmp.ne.s32.totalorder %s66, %s67
    %p79 = scmp.eq.s32.totalorder %s15, 1
    %p80 = por %p78, %p79
    %p82 = scmp.ne.s32.totalorder %s67, %s81
    %p83 = scmp.eq.s32.totalorder %s15, 0
    %p84 = por %p82, %p83
    %s85 = ssub.s32 %s9, %s16
    %p86 = scmp.eq.s32.totalorder %s85, 0
    %s88 = sadd.s32 %s87, 1
    %s89 = scalar_select %p86, %s87, %s88
    %p92 = pneg %p86
    %p93 = scmp.eq.s32.totalorder %s9, 1
    %p94 = por %p92, %p93
    %p95 = scmp.ne.s32.totalorder %s87, %s90
    %p96 = scmp.eq.s32.totalorder %s9, 0
    %p97 = por %p95, %p96
    %p98 = scmp.ne.s32.totalorder %s87, %s90
    %p99 = scmp.eq.s32.totalorder %s14, 1
    %p100 = por %p98, %p99
    %p101 = scmp.ne.s32.totalorder %s90, %s91
    %p102 = scmp.eq.s32.totalorder %s14, 0
    %p103 = por %p101, %p102
    %p104 = scmp.ne.s32.totalorder %s90, %s91
    %p105 = scmp.eq.s32.totalorder %s15, 1
    %p106 = por %p104, %p105
    %p108 = scmp.ne.s32.totalorder %s91, %s107
    %p109 = scmp.eq.s32.totalorder %s15, 0
    %p110 = por %p108, %p109
    %p111 = scmp.le.s32.totalorder 1, %s9
    %p112 = scmp.lt.s32.totalorder %s9, 3
    %p113 = pnand %p111, %p112
    %p114 = pneg %p113
    // Predicated region
    $region9: #{resnet_block_pallas.1} parent=5 // pred_check
      _
    $region10: #{resnet_block_pallas.1} parent=5 // pred_check_branch
      %116 = sbr.rel (%p113) target = $region12
    $region11: #{resnet_block_pallas.1} parent=5 // pred_region
      %s117 = ssub.s32 %s9, 1
      // Predicated region
      $region13: #{resnet_block_pallas.1} parent=11 // pred_check
        %p118 = pneg %p56
      $region14: #{resnet_block_pallas.1} parent=11 // pred_check_branch
        %120 = sbr.rel (%p118) target = $region16
      $region15: #{resnet_block_pallas.1} parent=11 // pred_region
        _
      $region16: #{resnet_block_pallas.1} parent=11 // pred_fallthru
        _
      // Predicated region
      $region17: #{resnet_block_pallas.1} parent=11 // pred_check
        %p121 = pneg %p77
      $region18: #{resnet_block_pallas.1} parent=11 // pred_check_branch
        %123 = sbr.rel (%p121) target = $region20
      $region19: #{resnet_block_pallas.1} parent=11 // pred_region
        _
      $region20: #{resnet_block_pallas.1} parent=11 // pred_fallthru
        _
    $region12: #{resnet_block_pallas.1} parent=5 // pred_fallthru
      _
    %p124 = scmp.lt.s32.totalorder %s9, 2
    // Predicated region
    $region21: #{resnet_block_pallas.1} parent=5 // pred_check
      %p125 = pneg %p124
    $region22: #{resnet_block_pallas.1} parent=5 // pred_check_branch
      %127 = sbr.rel (%p125) target = $region24
    $region23: #{resnet_block_pallas.1} parent=5 // pred_region
      // Predicated region
      $region25: #{resnet_block_pallas.1} parent=23 // pred_check
        %p128 = pneg %p29
      $region26: #{resnet_block_pallas.1} parent=23 // pred_check_branch
        %130 = sbr.rel (%p128) target = $region28
      $region27: #{resnet_block_pallas.1} parent=23 // pred_region
        %p131 = scmp.lt.s32.totalorder %s9, 1
        %s132 = scalar_select %p131, %s9, 1
        %s133 = smul.addr %s132, 32
        %s134 = smul.addr %s133, 8
        %s135 = scalar_lea.vmem %s0, %s134
      $region28: #{resnet_block_pallas.1} parent=23 // pred_fallthru
        _
    $region24: #{resnet_block_pallas.1} parent=5 // pred_fallthru
      _
    %p136 = scmp.le.s32.totalorder 1, %s9
    %p137 = scmp.lt.s32.totalorder %s9, 3
    %p138 = pnand %p136, %p137
    %p139 = pneg %p138
    // Predicated region
    $region29: #{resnet_block_pallas.1} parent=5 // pred_check
      _
    $region30: #{resnet_block_pallas.1} parent=5 // pred_check_branch
      %141 = sbr.rel (%p138) target = $region32
    $region31: #{resnet_block_pallas.1} parent=5 // pred_region
      %s142 = ssub.s32 %s9, 1
      %p143 = scmp.lt.s32.totalorder %s14, 1
      %s144 = scalar_select %p143, %s14, 1
      %s145 = smul.addr %s144, 32
      %s146 = smul.addr %s145, 8
      %s147 = scalar_lea.vmem %s0, %s146
      %p148 = pneg %p35
      %p149 = pneg %p32
      %p150 = pneg %p56
      %p151 = pneg %p53
      %p152 = pneg %p77
      %p153 = pneg %p74
      %p154 = pneg %p103
      %p155 = pneg %p100
      %p156 = scmp.lt.s32.totalorder %s14, 1
      %s157 = scalar_select %p156, %s14, 1
      %s158 = smul.addr %s157, 32
      %s159 = smul.addr %s158, 8
      %s160 = scalar_lea.vmem %s3, %s159
      %p161 = scmp.lt.s32.totalorder %s14, 1
      %s162 = scalar_select %p161, %s14, 1
      %s163 = smul.addr %s162, 32
      %s164 = smul.addr %s163, 8
      %s165 = scalar_lea.vmem %s0, %s164
      %p166 = scmp.lt.s32.totalorder %s14, 1
      %s167 = scalar_select %p166, %s14, 1
      %s168 = smul.addr %s167, 32
      %s169 = smul.addr %s168, 8
      %s170 = scalar_lea.vmem %s3, %s169
      %v172 = vld [vmem:[%s1] sm:$0xf]
      %v173 = vld [vmem:[%s1 + $0x4] sm:$0x3]
      %v174 = vld [vmem:[%s1 + $0x8] sm:$0xf]
      %v175 = vld [vmem:[%s1 + $0xc] sm:$0x3]
      %v176 = vld [vmem:[%s1 + $0x10] sm:$0xf]
      %v177 = vld [vmem:[%s1 + $0x14] sm:$0x3]
      %v178 = vld [vmem:[%s2] sm:$0xf]
      %v179 = vld [vmem:[%s2 + $0x4] sm:$0x3]
      %v180 = vld [vmem:[%s2 + $0x8] sm:$0xf]
      %v181 = vld [vmem:[%s2 + $0xc] sm:$0x3]
      %v182 = vld [vmem:[%s2 + $0x10] sm:$0xf]
      %v183 = vld [vmem:[%s2 + $0x14] sm:$0x3]
      %v184 = vld [vmem:[%s165] sm:$0xff]
      %v185 = vld [vmem:[%s165 + $0x8] sm:$0xff]
      %v186 = vld [vmem:[%s165 + $0x10] sm:$0xff]
      %v187 = vld [vmem:[%s165 + $0x18] sm:$0xff]
      %v188 = vld [vmem:[%s165 + $0x20] sm:$0xff]
      %v189 = vld [vmem:[%s165 + $0x28] sm:$0xff]
      %v190 = vld [vmem:[%s165 + $0x30] sm:$0xff]
      %v191 = vld [vmem:[%s165 + $0x38] sm:$0xff]
      %v192 = vld [vmem:[%s165 + $0x40] sm:$0xff]
      %v193 = vld [vmem:[%s165 + $0x48] sm:$0xff]
      %v194 = vld [vmem:[%s165 + $0x50] sm:$0xff]
      %v195 = vld [vmem:[%s165 + $0x58] sm:$0xff]
      %v196 = vld [vmem:[%s165 + $0x60] sm:$0xff]
      %v197 = vld [vmem:[%s165 + $0x68] sm:$0xff]
      %v198 = vld [vmem:[%s165 + $0x70] sm:$0xff]
      %v199 = vld [vmem:[%s165 + $0x78] sm:$0xff]
      %v200 = vld [vmem:[%s165 + $0x80] sm:$0xff]
      %v201 = vld [vmem:[%s165 + $0x88] sm:$0xff]
      %v202 = vld [vmem:[%s165 + $0x90] sm:$0xff]
      %v203 = vld [vmem:[%s165 + $0x98] sm:$0xff]
      %v204 = vld [vmem:[%s165 + $0xa0] sm:$0xff]
      %v205 = vld [vmem:[%s165 + $0xa8] sm:$0xff]
      %v206 = vld [vmem:[%s165 + $0xb0] sm:$0xff]
      %v207 = vld [vmem:[%s165 + $0xb8] sm:$0xff]
      %v208 = vld [vmem:[%s165 + $0xc0] sm:$0xff]
      %v209 = vld [vmem:[%s165 + $0xc8] sm:$0xff]
      %v210 = vld [vmem:[%s165 + $0xd0] sm:$0xff]
      %v211 = vld [vmem:[%s165 + $0xd8] sm:$0xff]
      %v212 = vld [vmem:[%s165 + $0xe0] sm:$0xff]
      %v213 = vld [vmem:[%s165 + $0xe8] sm:$0xff]
      %v214 = vld [vmem:[%s165 + $0xf0] sm:$0xff]
      %v215 = vld [vmem:[%s165 + $0xf8] sm:$0xff]
      %v216 = vpack.c.bf16 %v185, %v184
      %v217 = vpack.c.bf16 %v187, %v186
      %v218 = vpack.c.bf16 %v189, %v188
      %v219 = vpack.c.bf16 %v191, %v190
      %v220 = vpack.c.bf16 %v193, %v192
      %v221 = vpack.c.bf16 %v195, %v194
      %v222 = vpack.c.bf16 %v197, %v196
      %v223 = vpack.c.bf16 %v199, %v198
      %v224 = vpack.c.bf16 %v201, %v200
      %v225 = vpack.c.bf16 %v203, %v202
      %v226 = vpack.c.bf16 %v205, %v204
      %v227 = vpack.c.bf16 %v207, %v206
      %v228 = vpack.c.bf16 %v209, %v208
      %v229 = vpack.c.bf16 %v211, %v210
      %v230 = vpack.c.bf16 %v213, %v212
      %v231 = vpack.c.bf16 %v215, %v214
      %v248 = vunpack.c.l.b16 %v216
      %v249 = vunpack.c.h.b16 %v216
      %v250 = vunpack.c.l.b16 %v217
      %v251 = vunpack.c.h.b16 %v217
      %v252 = vunpack.c.l.b16 %v218
      %v253 = vunpack.c.h.b16 %v218
      %v254 = vunpack.c.l.b16 %v219
      %v255 = vunpack.c.h.b16 %v219
      %v256 = vunpack.c.l.b16 %v220
      %v257 = vunpack.c.h.b16 %v220
      %v258 = vunpack.c.l.b16 %v221
      %v259 = vunpack.c.h.b16 %v221
      %v260 = vunpack.c.l.b16 %v222
      %v261 = vunpack.c.h.b16 %v222
      %v262 = vunpack.c.l.b16 %v223
      %v263 = vunpack.c.h.b16 %v223
      %v264 = vunpack.c.l.b16 %v224
      %v265 = vunpack.c.h.b16 %v224
      %v266 = vunpack.c.l.b16 %v225
      %v267 = vunpack.c.h.b16 %v225
      %v268 = vunpack.c.l.b16 %v226
      %v269 = vunpack.c.h.b16 %v226
      %v270 = vunpack.c.l.b16 %v227
      %v271 = vunpack.c.h.b16 %v227
      %v272 = vunpack.c.l.b16 %v228
      %v273 = vunpack.c.h.b16 %v228
      %v274 = vunpack.c.l.b16 %v229
      %v275 = vunpack.c.h.b16 %v229
      %v276 = vunpack.c.l.b16 %v230
      %v277 = vunpack.c.h.b16 %v230
      %v278 = vunpack.c.l.b16 %v231
      %v279 = vunpack.c.h.b16 %v231
      %v280 = vpack.c.b16 %v248, %v248
      %v281 = vpack.c.b16 %v249, %v249
      %v282 = vpack.c.b16 %v250, %v250
      %v283 = vpack.c.b16 %v251, %v251
      %v284 = vpack.c.b16 %v252, %v252
      %v285 = vpack.c.b16 %v253, %v253
      %v286 = vpack.c.b16 %v254, %v254
      %v287 = vpack.c.b16 %v255, %v255
      %v288 = vpack.c.b16 %v256, %v256
      %v289 = vpack.c.b16 %v257, %v257
      %v290 = vpack.c.b16 %v258, %v258
      %v291 = vpack.c.b16 %v259, %v259
      %v292 = vpack.c.b16 %v260, %v260
      %v293 = vpack.c.b16 %v261, %v261
      %v294 = vpack.c.b16 %v262, %v262
      %v295 = vpack.c.b16 %v263, %v263
      %v296 = vpack.c.b16 %v264, %v264
      %v297 = vpack.c.b16 %v265, %v265
      %v298 = vpack.c.b16 %v266, %v266
      %v299 = vpack.c.b16 %v267, %v267
      %v300 = vpack.c.b16 %v268, %v268
      %v301 = vpack.c.b16 %v269, %v269
      %v302 = vpack.c.b16 %v270, %v270
      %v303 = vpack.c.b16 %v271, %v271
      %v304 = vpack.c.b16 %v272, %v272
      %v305 = vpack.c.b16 %v273, %v273
      %v306 = vpack.c.b16 %v274, %v274
      %v307 = vpack.c.b16 %v275, %v275
      %v308 = vpack.c.b16 %v276, %v276
      %v309 = vpack.c.b16 %v277, %v277
      %v310 = vpack.c.b16 %v278, %v278
      %v311 = vpack.c.b16 %v279, %v279
      %vm312 = vsmask.f32 256
      %vm313 = vsmask.f32 4368
      %vm314 = vmor %vm312, %vm313
      %v316 = vshrl.u32 %v280, 16
      %v318 = vrot.slane %v316, 7
      %v319 = vshll.u32 %v280, 16
      %v321 = vor.u32 %v318, %v319
      %v322 = vrot.slane %v318, 4
      %v324 = vshrl.u32 %v281, 16
      %v326 = vrot.slane %v324, 7
      %v327 = vshll.u32 %v281, 16
      %v329 = vor.u32 %v326, %v327
      %v330 = vsel %vm314, %v322, %v329
      %v331 = vrot.slane %v326, 4
      %v333 = vshrl.u32 %v282, 16
      %v335 = vrot.slane %v333, 7
      %v336 = vshll.u32 %v282, 16
      %v338 = vor.u32 %v335, %v336
      %v339 = vrot.slane %v335, 4
      %v341 = vshrl.u32 %v283, 16
      %v343 = vrot.slane %v341, 7
      %v344 = vshll.u32 %v283, 16
      %v346 = vor.u32 %v343, %v344
      %v347 = vsel %vm314, %v339, %v346
      %v348 = vrot.slane %v343, 4
      %v350 = vshrl.u32 %v284, 16
      %v352 = vrot.slane %v350, 7
      %v353 = vshll.u32 %v284, 16
      %v355 = vor.u32 %v352, %v353
      %v356 = vrot.slane %v352, 4
      %v358 = vshrl.u32 %v285, 16
      %v360 = vrot.slane %v358, 7
      %v361 = vshll.u32 %v285, 16
      %v363 = vor.u32 %v360, %v361
      %v364 = vsel %vm314, %v356, %v363
      %v365 = vrot.slane %v360, 4
      %v367 = vshrl.u32 %v286, 16
      %v369 = vrot.slane %v367, 7
      %v370 = vshll.u32 %v286, 16
      %v372 = vor.u32 %v369, %v370
      %v373 = vrot.slane %v369, 4
      %v375 = vshrl.u32 %v287, 16
      %v377 = vrot.slane %v375, 7
      %v378 = vshll.u32 %v287, 16
      %v380 = vor.u32 %v377, %v378
      %v381 = vsel %vm314, %v373, %v380
      %v382 = vrot.slane %v377, 4
      %v384 = vshrl.u32 %v288, 16
      %v386 = vrot.slane %v384, 7
      %v387 = vshll.u32 %v288, 16
      %v389 = vor.u32 %v386, %v387
      %v390 = vrot.slane %v386, 4
      %v392 = vshrl.u32 %v289, 16
      %v394 = vrot.slane %v392, 7
      %v395 = vshll.u32 %v289, 16
      %v397 = vor.u32 %v394, %v395
      %v398 = vsel %vm314, %v390, %v397
      %v399 = vrot.slane %v394, 4
      %v401 = vshrl.u32 %v290, 16
      %v403 = vrot.slane %v401, 7
      %v404 = vshll.u32 %v290, 16
      %v406 = vor.u32 %v403, %v404
      %v407 = vrot.slane %v403, 4
      %v409 = vshrl.u32 %v291, 16
      %v411 = vrot.slane %v409, 7
      %v412 = vshll.u32 %v291, 16
      %v414 = vor.u32 %v411, %v412
      %v415 = vsel %vm314, %v407, %v414
      %v416 = vrot.slane %v411, 4
      %v418 = vshrl.u32 %v292, 16
      %v420 = vrot.slane %v418, 7
      %v421 = vshll.u32 %v292, 16
      %v423 = vor.u32 %v420, %v421
      %v424 = vrot.slane %v420, 4
      %v426 = vshrl.u32 %v293, 16
      %v428 = vrot.slane %v426, 7
      %v429 = vshll.u32 %v293, 16
      %v431 = vor.u32 %v428, %v429
      %v432 = vsel %vm314, %v424, %v431
      %v433 = vrot.slane %v428, 4
      %v435 = vshrl.u32 %v294, 16
      %v437 = vrot.slane %v435, 7
      %v438 = vshll.u32 %v294, 16
      %v440 = vor.u32 %v437, %v438
      %v441 = vrot.slane %v437, 4
      %v443 = vshrl.u32 %v295, 16
      %v445 = vrot.slane %v443, 7
      %v446 = vshll.u32 %v295, 16
      %v448 = vor.u32 %v445, %v446
      %v449 = vsel %vm314, %v441, %v448
      %v450 = vrot.slane %v445, 4
      %v452 = vshrl.u32 %v296, 16
      %v454 = vrot.slane %v452, 7
      %v455 = vshll.u32 %v296, 16
      %v457 = vor.u32 %v454, %v455
      %v458 = vrot.slane %v454, 4
      %v460 = vshrl.u32 %v297, 16
      %v462 = vrot.slane %v460, 7
      %v463 = vshll.u32 %v297, 16
      %v465 = vor.u32 %v462, %v463
      %v466 = vsel %vm314, %v458, %v465
      %v467 = vrot.slane %v462, 4
      %v469 = vshrl.u32 %v298, 16
      %v471 = vrot.slane %v469, 7
      %v472 = vshll.u32 %v298, 16
      %v474 = vor.u32 %v471, %v472
      %v475 = vrot.slane %v471, 4
      %v477 = vshrl.u32 %v299, 16
      %v479 = vrot.slane %v477, 7
      %v480 = vshll.u32 %v299, 16
      %v482 = vor.u32 %v479, %v480
      %v483 = vsel %vm314, %v475, %v482
      %v484 = vrot.slane %v479, 4
      %v486 = vshrl.u32 %v300, 16
      %v488 = vrot.slane %v486, 7
      %v489 = vshll.u32 %v300, 16
      %v491 = vor.u32 %v488, %v489
      %v492 = vrot.slane %v488, 4
      %v494 = vshrl.u32 %v301, 16
      %v496 = vrot.slane %v494, 7
      %v497 = vshll.u32 %v301, 16
      %v499 = vor.u32 %v496, %v497
      %v500 = vsel %vm314, %v492, %v499
      %v501 = vrot.slane %v496, 4
      %v503 = vshrl.u32 %v302, 16
      %v505 = vrot.slane %v503, 7
      %v506 = vshll.u32 %v302, 16
      %v508 = vor.u32 %v505, %v506
      %v509 = vrot.slane %v505, 4
      %v511 = vshrl.u32 %v303, 16
      %v513 = vrot.slane %v511, 7
      %v514 = vshll.u32 %v303, 16
      %v516 = vor.u32 %v513, %v514
      %v517 = vsel %vm314, %v509, %v516
      %v518 = vrot.slane %v513, 4
      %v520 = vshrl.u32 %v304, 16
      %v522 = vrot.slane %v520, 7
      %v523 = vshll.u32 %v304, 16
      %v525 = vor.u32 %v522, %v523
      %v526 = vrot.slane %v522, 4
      %v528 = vshrl.u32 %v305, 16
      %v530 = vrot.slane %v528, 7
      %v531 = vshll.u32 %v305, 16
      %v533 = vor.u32 %v530, %v531
      %v534 = vsel %vm314, %v526, %v533
      %v535 = vrot.slane %v530, 4
      %v537 = vshrl.u32 %v306, 16
      %v539 = vrot.slane %v537, 7
      %v540 = vshll.u32 %v306, 16
      %v542 = vor.u32 %v539, %v540
      %v543 = vrot.slane %v539, 4
      %v545 = vshrl.u32 %v307, 16
      %v547 = vrot.slane %v545, 7
      %v548 = vshll.u32 %v307, 16
      %v550 = vor.u32 %v547, %v548
      %v551 = vsel %vm314, %v543, %v550
      %v552 = vrot.slane %v547, 4
      %v554 = vshrl.u32 %v308, 16
      %v556 = vrot.slane %v554, 7
      %v557 = vshll.u32 %v308, 16
      %v559 = vor.u32 %v556, %v557
      %v560 = vrot.slane %v556, 4
      %v562 = vshrl.u32 %v309, 16
      %v564 = vrot.slane %v562, 7
      %v565 = vshll.u32 %v309, 16
      %v567 = vor.u32 %v564, %v565
      %v568 = vsel %vm314, %v560, %v567
      %v569 = vrot.slane %v564, 4
      %v571 = vshrl.u32 %v310, 16
      %v573 = vrot.slane %v571, 7
      %v574 = vshll.u32 %v310, 16
      %v576 = vor.u32 %v573, %v574
      %v577 = vrot.slane %v573, 4
      %v579 = vshrl.u32 %v311, 16
      %v581 = vrot.slane %v579, 7
      %v582 = vshll.u32 %v311, 16
      %v584 = vor.u32 %v581, %v582
      %v585 = vsel %vm314, %v577, %v584
      %v586 = vrot.slane %v581, 4
      %s635 = scalar_lea.vmem [#allocation2], 12
      %vm636 = vcmask 27648
      %vm637 = vsmask.f32 7938
      %vm638 = vmand %vm636, %vm637
      %v639 = vld [vmem:[%s635] sm:$0xf]
      %v640 = vsel %vm638, %v321, %v639
      %641 = vst [vmem:[%s635] sm:$0xf] %v640
      %vm642 = vcmask 27648
      %643 = vst.msk [vmem:[%s635 + $0x4] sm:$0xf] %vm642, %v330
      %vm644 = vcmask 24576
      %vm645 = vmand %vm644, %vm312
      %v646 = vld [vmem:[%s635 + $0x8] sm:$0x1]
      %v647 = vsel %vm645, %v331, %v646
      %648 = vst [vmem:[%s635 + $0x8] sm:$0x1] %v647
      %v649 = vld [vmem:[%s635 + $0xc] sm:$0xf]
      %v650 = vsel %vm638, %v338, %v649
      %651 = vst [vmem:[%s635 + $0xc] sm:$0xf] %v650
      %652 = vst.msk [vmem:[%s635 + $0x10] sm:$0xf] %vm642, %v347
      %v653 = vld [vmem:[%s635 + $0x14] sm:$0x1]
      %v654 = vsel %vm645, %v348, %v653
      %655 = vst [vmem:[%s635 + $0x14] sm:$0x1] %v654
      %v656 = vld [vmem:[%s635 + $0x18] sm:$0xf]
      %v657 = vsel %vm638, %v355, %v656
      %658 = vst [vmem:[%s635 + $0x18] sm:$0xf] %v657
      %659 = vst.msk [vmem:[%s635 + $0x1c] sm:$0xf] %vm642, %v364
      %v660 = vld [vmem:[%s635 + $0x20] sm:$0x1]
      %v661 = vsel %vm645, %v365, %v660
      %662 = vst [vmem:[%s635 + $0x20] sm:$0x1] %v661
      %v663 = vld [vmem:[%s635 + $0x24] sm:$0xf]
      %v664 = vsel %vm638, %v372, %v663
      %665 = vst [vmem:[%s635 + $0x24] sm:$0xf] %v664
      %666 = vst.msk [vmem:[%s635 + $0x28] sm:$0xf] %vm642, %v381
      %v667 = vld [vmem:[%s635 + $0x2c] sm:$0x1]
      %v668 = vsel %vm645, %v382, %v667
      %669 = vst [vmem:[%s635 + $0x2c] sm:$0x1] %v668
      %v670 = vld [vmem:[%s635 + $0x30] sm:$0xf]
      %v671 = vsel %vm638, %v389, %v670
      %672 = vst [vmem:[%s635 + $0x30] sm:$0xf] %v671
      %673 = vst.msk [vmem:[%s635 + $0x34] sm:$0xf] %vm642, %v398
      %v674 = vld [vmem:[%s635 + $0x38] sm:$0x1]
      %v675 = vsel %vm645, %v399, %v674
      %676 = vst [vmem:[%s635 + $0x38] sm:$0x1] %v675
      %v677 = vld [vmem:[%s635 + $0x3c] sm:$0xf]
      %v678 = vsel %vm638, %v406, %v677
      %679 = vst [vmem:[%s635 + $0x3c] sm:$0xf] %v678
      %680 = vst.msk [vmem:[%s635 + $0x40] sm:$0xf] %vm642, %v415
      %v681 = vld [vmem:[%s635 + $0x44] sm:$0x1]
      %v682 = vsel %vm645, %v416, %v681
      %683 = vst [vmem:[%s635 + $0x44] sm:$0x1] %v682
      %v684 = vld [vmem:[%s635 + $0x48] sm:$0xf]
      %v685 = vsel %vm638, %v423, %v684
      %686 = vst [vmem:[%s635 + $0x48] sm:$0xf] %v685
      %687 = vst.msk [vmem:[%s635 + $0x4c] sm:$0xf] %vm642, %v432
      %v688 = vld [vmem:[%s635 + $0x50] sm:$0x1]
      %v689 = vsel %vm645, %v433, %v688
      %690 = vst [vmem:[%s635 + $0x50] sm:$0x1] %v689
      %v691 = vld [vmem:[%s635 + $0x54] sm:$0xf]
      %v692 = vsel %vm638, %v440, %v691
      %693 = vst [vmem:[%s635 + $0x54] sm:$0xf] %v692
      %694 = vst.msk [vmem:[%s635 + $0x58] sm:$0xf] %vm642, %v449
      %v695 = vld [vmem:[%s635 + $0x5c] sm:$0x1]
      %v696 = vsel %vm645, %v450, %v695
      %697 = vst [vmem:[%s635 + $0x5c] sm:$0x1] %v696
      %v698 = vld [vmem:[%s635 + $0x60] sm:$0xf]
      %v699 = vsel %vm638, %v457, %v698
      %700 = vst [vmem:[%s635 + $0x60] sm:$0xf] %v699
      %701 = vst.msk [vmem:[%s635 + $0x64] sm:$0xf] %vm642, %v466
      %v702 = vld [vmem:[%s635 + $0x68] sm:$0x1]
      %v703 = vsel %vm645, %v467, %v702
      %704 = vst [vmem:[%s635 + $0x68] sm:$0x1] %v703
      %v705 = vld [vmem:[%s635 + $0x6c] sm:$0xf]
      %v706 = vsel %vm638, %v474, %v705
      %707 = vst [vmem:[%s635 + $0x6c] sm:$0xf] %v706
      %708 = vst.msk [vmem:[%s635 + $0x70] sm:$0xf] %vm642, %v483
      %v709 = vld [vmem:[%s635 + $0x74] sm:$0x1]
      %v710 = vsel %vm645, %v484, %v709
      %711 = vst [vmem:[%s635 + $0x74] sm:$0x1] %v710
      %v712 = vld [vmem:[%s635 + $0x78] sm:$0xf]
      %v713 = vsel %vm638, %v491, %v712
      %714 = vst [vmem:[%s635 + $0x78] sm:$0xf] %v713
      %715 = vst.msk [vmem:[%s635 + $0x7c] sm:$0xf] %vm642, %v500
      %v716 = vld [vmem:[%s635 + $0x80] sm:$0x1]
      %v717 = vsel %vm645, %v501, %v716
      %718 = vst [vmem:[%s635 + $0x80] sm:$0x1] %v717
      %v719 = vld [vmem:[%s635 + $0x84] sm:$0xf]
      %v720 = vsel %vm638, %v508, %v719
      %721 = vst [vmem:[%s635 + $0x84] sm:$0xf] %v720
      %722 = vst.msk [vmem:[%s635 + $0x88] sm:$0xf] %vm642, %v517
      %v723 = vld [vmem:[%s635 + $0x8c] sm:$0x1]
      %v724 = vsel %vm645, %v518, %v723
      %725 = vst [vmem:[%s635 + $0x8c] sm:$0x1] %v724
      %v726 = vld [vmem:[%s635 + $0x90] sm:$0xf]
      %v727 = vsel %vm638, %v525, %v726
      %728 = vst [vmem:[%s635 + $0x90] sm:$0xf] %v727
      %729 = vst.msk [vmem:[%s635 + $0x94] sm:$0xf] %vm642, %v534
      %v730 = vld [vmem:[%s635 + $0x98] sm:$0x1]
      %v731 = vsel %vm645, %v535, %v730
      %732 = vst [vmem:[%s635 + $0x98] sm:$0x1] %v731
      %v733 = vld [vmem:[%s635 + $0x9c] sm:$0xf]
      %v734 = vsel %vm638, %v542, %v733
      %735 = vst [vmem:[%s635 + $0x9c] sm:$0xf] %v734
      %736 = vst.msk [vmem:[%s635 + $0xa0] sm:$0xf] %vm642, %v551
      %v737 = vld [vmem:[%s635 + $0xa4] sm:$0x1]
      %v738 = vsel %vm645, %v552, %v737
      %739 = vst [vmem:[%s635 + $0xa4] sm:$0x1] %v738
      %v740 = vld [vmem:[%s635 + $0xa8] sm:$0xf]
      %v741 = vsel %vm638, %v559, %v740
      %742 = vst [vmem:[%s635 + $0xa8] sm:$0xf] %v741
      %743 = vst.msk [vmem:[%s635 + $0xac] sm:$0xf] %vm642, %v568
      %v744 = vld [vmem:[%s635 + $0xb0] sm:$0x1]
      %v745 = vsel %vm645, %v569, %v744
      %746 = vst [vmem:[%s635 + $0xb0] sm:$0x1] %v745
      %v747 = vld [vmem:[%s635 + $0xb4] sm:$0xf]
      %v748 = vsel %vm638, %v576, %v747
      %749 = vst [vmem:[%s635 + $0xb4] sm:$0xf] %v748
      %750 = vst.msk [vmem:[%s635 + $0xb8] sm:$0xf] %vm642, %v585
      %v751 = vld [vmem:[%s635 + $0xbc] sm:$0x1]
      %v752 = vsel %vm645, %v586, %v751
      %753 = vst [vmem:[%s635 + $0xbc] sm:$0x1] %v752
      %v754 = vld [vmem:[#allocation2] sm:$0xf]
      %v755 = vsel %vm638, %v338, %v754
      %756 = vst [vmem:[#allocation2] sm:$0xf] %v755
      %757 = vst.msk [vmem:[#allocation2 + $0x4] sm:$0xf] %vm642, %v347
      %v758 = vld [vmem:[#allocation2 + $0x8] sm:$0x1]
      %v759 = vsel %vm645, %v348, %v758
      %760 = vst [vmem:[#allocation2 + $0x8] sm:$0x1] %v759
      %s761 = scalar_lea.vmem [#allocation2], 204
      %v762 = vld [vmem:[%s761] sm:$0xf]
      %v763 = vsel %vm638, %v559, %v762
      %764 = vst [vmem:[%s761] sm:$0xf] %v763
      %765 = vst.msk [vmem:[%s761 + $0x4] sm:$0xf] %vm642, %v568
      %v766 = vld [vmem:[%s761 + $0x8] sm:$0x1]
      %v767 = vsel %vm645, %v569, %v766
      %768 = vst [vmem:[%s761 + $0x8] sm:$0x1] %v767
      %v769 = vld [vmem:[#allocation2] sm:$0x2]
      %v770 = vld [vmem:[#allocation2 + $0xc] sm:$0x2]
      %v771 = vld [vmem:[#allocation2 + $0x18] sm:$0x2]
      %v772 = vld [vmem:[#allocation2 + $0x24] sm:$0x2]
      %v773 = vld [vmem:[#allocation2 + $0x30] sm:$0x2]
      %v774 = vld [vmem:[#allocation2 + $0x3c] sm:$0x2]
      %v775 = vld [vmem:[#allocation2 + $0x48] sm:$0x2]
      %v776 = vld [vmem:[#allocation2 + $0x54] sm:$0x2]
      %v777 = vld [vmem:[#allocation2 + $0x60] sm:$0x2]
      %v778 = vld [vmem:[#allocation2 + $0x6c] sm:$0x2]
      %v779 = vld [vmem:[#allocation2 + $0x78] sm:$0x2]
      %v780 = vld [vmem:[#allocation2 + $0x84] sm:$0x2]
      %v781 = vld [vmem:[#allocation2 + $0x90] sm:$0x2]
      %v782 = vld [vmem:[#allocation2 + $0x9c] sm:$0x2]
      %v783 = vld [vmem:[#allocation2 + $0xa8] sm:$0x2]
      %v784 = vld [vmem:[#allocation2 + $0xb4] sm:$0x2]
      %v785 = vld [vmem:[#allocation2 + $0xc0] sm:$0x2]
      %v786 = vld [vmem:[#allocation2 + $0xcc] sm:$0x2]
      %v805 = vrot.slane %v769, 5
      %v806 = vrot.slane %v805, 4
      %v807 = vrot.slane %v770, 5
      %v808 = vrot.slane %v807, 4
      %v809 = vrot.slane %v771, 5
      %v810 = vrot.slane %v809, 4
      %v811 = vrot.slane %v772, 5
      %v812 = vrot.slane %v811, 4
      %v813 = vrot.slane %v773, 5
      %v814 = vrot.slane %v813, 4
      %v815 = vrot.slane %v774, 5
      %v816 = vrot.slane %v815, 4
      %v817 = vrot.slane %v775, 5
      %v818 = vrot.slane %v817, 4
      %v819 = vrot.slane %v776, 5
      %v820 = vrot.slane %v819, 4
      %v821 = vrot.slane %v777, 5
      %v822 = vrot.slane %v821, 4
      %v823 = vrot.slane %v778, 5
      %v824 = vrot.slane %v823, 4
      %v825 = vrot.slane %v779, 5
      %v826 = vrot.slane %v825, 4
      %v827 = vrot.slane %v780, 5
      %v828 = vrot.slane %v827, 4
      %v829 = vrot.slane %v781, 5
      %v830 = vrot.slane %v829, 4
      %v831 = vrot.slane %v782, 5
      %v832 = vrot.slane %v831, 4
      %v833 = vrot.slane %v783, 5
      %v834 = vrot.slane %v833, 4
      %v835 = vrot.slane %v784, 5
      %v836 = vrot.slane %v835, 4
      %v837 = vrot.slane %v785, 5
      %v838 = vrot.slane %v837, 4
      %v839 = vrot.slane %v786, 5
      %v840 = vrot.slane %v839, 4
      %v859 = vld [vmem:[#allocation2] sm:$0x1]
      %v860 = vsel %vm645, %v806, %v859
      %861 = vst [vmem:[#allocation2] sm:$0x1] %v860
      %v862 = vld [vmem:[#allocation2 + $0xc] sm:$0x1]
      %v863 = vsel %vm645, %v808, %v862
      %864 = vst [vmem:[#allocation2 + $0xc] sm:$0x1] %v863
      %v865 = vld [vmem:[#allocation2 + $0x18] sm:$0x1]
      %v866 = vsel %vm645, %v810, %v865
      %867 = vst [vmem:[#allocation2 + $0x18] sm:$0x1] %v866
      %v868 = vld [vmem:[#allocation2 + $0x24] sm:$0x1]
      %v869 = vsel %vm645, %v812, %v868
      %870 = vst [vmem:[#allocation2 + $0x24] sm:$0x1] %v869
      %v871 = vld [vmem:[#allocation2 + $0x30] sm:$0x1]
      %v872 = vsel %vm645, %v814, %v871
      %873 = vst [vmem:[#allocation2 + $0x30] sm:$0x1] %v872
      %v874 = vld [vmem:[#allocation2 + $0x3c] sm:$0x1]
      %v875 = vsel %vm645, %v816, %v874
      %876 = vst [vmem:[#allocation2 + $0x3c] sm:$0x1] %v875
      %v877 = vld [vmem:[#allocation2 + $0x48] sm:$0x1]
      %v878 = vsel %vm645, %v818, %v877
      %879 = vst [vmem:[#allocation2 + $0x48] sm:$0x1] %v878
      %v880 = vld [vmem:[#allocation2 + $0x54] sm:$0x1]
      %v881 = vsel %vm645, %v820, %v880
      %882 = vst [vmem:[#allocation2 + $0x54] sm:$0x1] %v881
      %v883 = vld [vmem:[#allocation2 + $0x60] sm:$0x1]
      %v884 = vsel %vm645, %v822, %v883
      %885 = vst [vmem:[#allocation2 + $0x60] sm:$0x1] %v884
      %v886 = vld [vmem:[#allocation2 + $0x6c] sm:$0x1]
      %v887 = vsel %vm645, %v824, %v886
      %888 = vst [vmem:[#allocation2 + $0x6c] sm:$0x1] %v887
      %v889 = vld [vmem:[#allocation2 + $0x78] sm:$0x1]
      %v890 = vsel %vm645, %v826, %v889
      %891 = vst [vmem:[#allocation2 + $0x78] sm:$0x1] %v890
      %v892 = vld [vmem:[#allocation2 + $0x84] sm:$0x1]
      %v893 = vsel %vm645, %v828, %v892
      %894 = vst [vmem:[#allocation2 + $0x84] sm:$0x1] %v893
      %v895 = vld [vmem:[#allocation2 + $0x90] sm:$0x1]
      %v896 = vsel %vm645, %v830, %v895
      %897 = vst [vmem:[#allocation2 + $0x90] sm:$0x1] %v896
      %v898 = vld [vmem:[#allocation2 + $0x9c] sm:$0x1]
      %v899 = vsel %vm645, %v832, %v898
      %900 = vst [vmem:[#allocation2 + $0x9c] sm:$0x1] %v899
      %v901 = vld [vmem:[#allocation2 + $0xa8] sm:$0x1]
      %v902 = vsel %vm645, %v834, %v901
      %903 = vst [vmem:[#allocation2 + $0xa8] sm:$0x1] %v902
      %v904 = vld [vmem:[#allocation2 + $0xb4] sm:$0x1]
      %v905 = vsel %vm645, %v836, %v904
      %906 = vst [vmem:[#allocation2 + $0xb4] sm:$0x1] %v905
      %v907 = vld [vmem:[#allocation2 + $0xc0] sm:$0x1]
      %v908 = vsel %vm645, %v838, %v907
      %909 = vst [vmem:[#allocation2 + $0xc0] sm:$0x1] %v908
      %v910 = vld [vmem:[#allocation2 + $0xcc] sm:$0x1]
      %v911 = vsel %vm645, %v840, %v910
      %912 = vst [vmem:[#allocation2 + $0xcc] sm:$0x1] %v911
      %v913 = vld [vmem:[#allocation2 + $0x4] sm:$0x8]
      %v914 = vld [vmem:[#allocation2 + $0x10] sm:$0x8]
      %v915 = vld [vmem:[#allocation2 + $0x1c] sm:$0x8]
      %v916 = vld [vmem:[#allocation2 + $0x28] sm:$0x8]
      %v917 = vld [vmem:[#allocation2 + $0x34] sm:$0x8]
      %v918 = vld [vmem:[#allocation2 + $0x40] sm:$0x8]
      %v919 = vld [vmem:[#allocation2 + $0x4c] sm:$0x8]
      %v920 = vld [vmem:[#allocation2 + $0x58] sm:$0x8]
      %v921 = vld [vmem:[#allocation2 + $0x64] sm:$0x8]
      %v922 = vld [vmem:[#allocation2 + $0x70] sm:$0x8]
      %v923 = vld [vmem:[#allocation2 + $0x7c] sm:$0x8]
      %v924 = vld [vmem:[#allocation2 + $0x88] sm:$0x8]
      %v925 = vld [vmem:[#allocation2 + $0x94] sm:$0x8]
      %v926 = vld [vmem:[#allocation2 + $0xa0] sm:$0x8]
      %v927 = vld [vmem:[#allocation2 + $0xac] sm:$0x8]
      %v928 = vld [vmem:[#allocation2 + $0xb8] sm:$0x8]
      %v929 = vld [vmem:[#allocation2 + $0xc4] sm:$0x8]
      %v930 = vld [vmem:[#allocation2 + $0xd0] sm:$0x8]
      %v949 = vrot.slane %v913, 7
      %v950 = vrot.slane %v949, 4
      %v951 = vrot.slane %v914, 7
      %v952 = vrot.slane %v951, 4
      %v953 = vrot.slane %v915, 7
      %v954 = vrot.slane %v953, 4
      %v955 = vrot.slane %v916, 7
      %v956 = vrot.slane %v955, 4
      %v957 = vrot.slane %v917, 7
      %v958 = vrot.slane %v957, 4
      %v959 = vrot.slane %v918, 7
      %v960 = vrot.slane %v959, 4
      %v961 = vrot.slane %v919, 7
      %v962 = vrot.slane %v961, 4
      %v963 = vrot.slane %v920, 7
      %v964 = vrot.slane %v963, 4
      %v965 = vrot.slane %v921, 7
      %v966 = vrot.slane %v965, 4
      %v967 = vrot.slane %v922, 7
      %v968 = vrot.slane %v967, 4
      %v969 = vrot.slane %v923, 7
      %v970 = vrot.slane %v969, 4
      %v971 = vrot.slane %v924, 7
      %v972 = vrot.slane %v971, 4
      %v973 = vrot.slane %v925, 7
      %v974 = vrot.slane %v973, 4
      %v975 = vrot.slane %v926, 7
      %v976 = vrot.slane %v975, 4
      %v977 = vrot.slane %v927, 7
      %v978 = vrot.slane %v977, 4
      %v979 = vrot.slane %v928, 7
      %v980 = vrot.slane %v979, 4
      %v981 = vrot.slane %v929, 7
      %v982 = vrot.slane %v981, 4
      %v983 = vrot.slane %v930, 7
      %v984 = vrot.slane %v983, 4
      %vm1003 = vmand %vm644, %vm637
      %v1004 = vld [vmem:[#allocation2 + $0x8] sm:$0x1]
      %v1005 = vsel %vm1003, %v950, %v1004
      %1006 = vst [vmem:[#allocation2 + $0x8] sm:$0x1] %v1005
      %v1007 = vld [vmem:[#allocation2 + $0x14] sm:$0x1]
      %v1008 = vsel %vm1003, %v952, %v1007
      %1009 = vst [vmem:[#allocation2 + $0x14] sm:$0x1] %v1008
      %v1010 = vld [vmem:[#allocation2 + $0x20] sm:$0x1]
      %v1011 = vsel %vm1003, %v954, %v1010
      %1012 = vst [vmem:[#allocation2 + $0x20] sm:$0x1] %v1011
      %v1013 = vld [vmem:[#allocation2 + $0x2c] sm:$0x1]
      %v1014 = vsel %vm1003, %v956, %v1013
      %1015 = vst [vmem:[#allocation2 + $0x2c] sm:$0x1] %v1014
      %v1016 = vld [vmem:[#allocation2 + $0x38] sm:$0x1]
      %v1017 = vsel %vm1003, %v958, %v1016
      %1018 = vst [vmem:[#allocation2 + $0x38] sm:$0x1] %v1017
      %v1019 = vld [vmem:[#allocation2 + $0x44] sm:$0x1]
      %v1020 = vsel %vm1003, %v960, %v1019
      %1021 = vst [vmem:[#allocation2 + $0x44] sm:$0x1] %v1020
      %v1022 = vld [vmem:[#allocation2 + $0x50] sm:$0x1]
      %v1023 = vsel %vm1003, %v962, %v1022
      %1024 = vst [vmem:[#allocation2 + $0x50] sm:$0x1] %v1023
      %v1025 = vld [vmem:[#allocation2 + $0x5c] sm:$0x1]
      %v1026 = vsel %vm1003, %v964, %v1025
      %1027 = vst [vmem:[#allocation2 + $0x5c] sm:$0x1] %v1026
      %v1028 = vld [vmem:[#allocation2 + $0x68] sm:$0x1]
      %v1029 = vsel %vm1003, %v966, %v1028
      %1030 = vst [vmem:[#allocation2 + $0x68] sm:$0x1] %v1029
      %v1031 = vld [vmem:[#allocation2 + $0x74] sm:$0x1]
      %v1032 = vsel %vm1003, %v968, %v1031
      %1033 = vst [vmem:[#allocation2 + $0x74] sm:$0x1] %v1032
      %v1034 = vld [vmem:[#allocation2 + $0x80] sm:$0x1]
      %v1035 = vsel %vm1003, %v970, %v1034
      %1036 = vst [vmem:[#allocation2 + $0x80] sm:$0x1] %v1035
      %v1037 = vld [vmem:[#allocation2 + $0x8c] sm:$0x1]
      %v1038 = vsel %vm1003, %v972, %v1037
      %1039 = vst [vmem:[#allocation2 + $0x8c] sm:$0x1] %v1038
      %v1040 = vld [vmem:[#allocation2 + $0x98] sm:$0x1]
      %v1041 = vsel %vm1003, %v974, %v1040
      %1042 = vst [vmem:[#allocation2 + $0x98] sm:$0x1] %v1041
      %v1043 = vld [vmem:[#allocation2 + $0xa4] sm:$0x1]
      %v1044 = vsel %vm1003, %v976, %v1043
      %1045 = vst [vmem:[#allocation2 + $0xa4] sm:$0x1] %v1044
      %v1046 = vld [vmem:[#allocation2 + $0xb0] sm:$0x1]
      %v1047 = vsel %vm1003, %v978, %v1046
      %1048 = vst [vmem:[#allocation2 + $0xb0] sm:$0x1] %v1047
      %v1049 = vld [vmem:[#allocation2 + $0xbc] sm:$0x1]
      %v1050 = vsel %vm1003, %v980, %v1049
      %1051 = vst [vmem:[#allocation2 + $0xbc] sm:$0x1] %v1050
      %v1052 = vld [vmem:[#allocation2 + $0xc8] sm:$0x1]
      %v1053 = vsel %vm1003, %v982, %v1052
      %1054 = vst [vmem:[#allocation2 + $0xc8] sm:$0x1] %v1053
      %v1055 = vld [vmem:[#allocation2 + $0xd4] sm:$0x1]
      %v1056 = vsel %vm1003, %v984, %v1055
      %1057 = vst [vmem:[#allocation2 + $0xd4] sm:$0x1] %v1056
      %v1058 = vld [vmem:[#allocation2] sm:$0xf]
      %v1059 = vld [vmem:[#allocation2 + $0x4] sm:$0xf]
      %v1060 = vld [vmem:[#allocation2 + $0x8] sm:$0x1]
      %v1061 = vld [vmem:[#allocation2 + $0xc] sm:$0xf]
      %v1062 = vld [vmem:[#allocation2 + $0x10] sm:$0xf]
      %v1063 = vld [vmem:[#allocation2 + $0x14] sm:$0x1]
      %v1064 = vld [vmem:[#allocation2 + $0x18] sm:$0xf]
      %v1065 = vld [vmem:[#allocation2 + $0x1c] sm:$0xf]
      %v1066 = vld [vmem:[#allocation2 + $0x20] sm:$0x1]
      %v1067 = vld [vmem:[#allocation2 + $0x24] sm:$0xf]
      %v1068 = vld [vmem:[#allocation2 + $0x28] sm:$0xf]
      %v1069 = vld [vmem:[#allocation2 + $0x2c] sm:$0x1]
      %v1070 = vld [vmem:[#allocation2 + $0x30] sm:$0xf]
      %v1071 = vld [vmem:[#allocation2 + $0x34] sm:$0xf]
      %v1072 = vld [vmem:[#allocation2 + $0x38] sm:$0x1]
      %v1073 = vld [vmem:[#allocation2 + $0x3c] sm:$0xf]
      %v1074 = vld [vmem:[#allocation2 + $0x40] sm:$0xf]
      %v1075 = vld [vmem:[#allocation2 + $0x44] sm:$0x1]
      %v1076 = vld [vmem:[#allocation2 + $0x48] sm:$0xf]
      %v1077 = vld [vmem:[#allocation2 + $0x4c] sm:$0xf]
      %v1078 = vld [vmem:[#allocation2 + $0x50] sm:$0x1]
      %v1079 = vld [vmem:[#allocation2 + $0x54] sm:$0xf]
      %v1080 = vld [vmem:[#allocation2 + $0x58] sm:$0xf]
      %v1081 = vld [vmem:[#allocation2 + $0x5c] sm:$0x1]
      %v1082 = vld [vmem:[#allocation2 + $0x60] sm:$0xf]
      %v1083 = vld [vmem:[#allocation2 + $0x64] sm:$0xf]
      %v1084 = vld [vmem:[#allocation2 + $0x68] sm:$0x1]
      %v1085 = vld [vmem:[#allocation2 + $0x6c] sm:$0xf]
      %v1086 = vld [vmem:[#allocation2 + $0x70] sm:$0xf]
      %v1087 = vld [vmem:[#allocation2 + $0x74] sm:$0x1]
      %v1088 = vld [vmem:[#allocation2 + $0x78] sm:$0xf]
      %v1089 = vld [vmem:[#allocation2 + $0x7c] sm:$0xf]
      %v1090 = vld [vmem:[#allocation2 + $0x80] sm:$0x1]
      %v1091 = vld [vmem:[#allocation2 + $0x84] sm:$0xf]
      %v1092 = vld [vmem:[#allocation2 + $0x88] sm:$0xf]
      %v1093 = vld [vmem:[#allocation2 + $0x8c] sm:$0x1]
      %v1094 = vld [vmem:[#allocation2 + $0x90] sm:$0xf]
      %v1095 = vld [vmem:[#allocation2 + $0x94] sm:$0xf]
      %v1096 = vld [vmem:[#allocation2 + $0x98] sm:$0x1]
      %v1097 = vld [vmem:[#allocation2 + $0x9c] sm:$0xf]
      %v1098 = vld [vmem:[#allocation2 + $0xa0] sm:$0xf]
      %v1099 = vld [vmem:[#allocation2 + $0xa4] sm:$0x1]
      %v1100 = vld [vmem:[#allocation2 + $0xa8] sm:$0xf]
      %v1101 = vld [vmem:[#allocation2 + $0xac] sm:$0xf]
      %v1102 = vld [vmem:[#allocation2 + $0xb0] sm:$0x1]
      %v1103 = vld [vmem:[#allocation2 + $0xb4] sm:$0xf]
      %v1104 = vld [vmem:[#allocation2 + $0xb8] sm:$0xf]
      %v1105 = vld [vmem:[#allocation2 + $0xbc] sm:$0x1]
      %v1138 = vunpack.c.l.b16 %v1058
      %v1139 = vunpack.c.l.b16 %v1059
      %v1140 = vunpack.c.l.b16 %v1061
      %v1141 = vunpack.c.l.b16 %v1062
      %v1142 = vunpack.c.l.b16 %v1064
      %v1143 = vunpack.c.l.b16 %v1065
      %v1144 = vunpack.c.l.b16 %v1067
      %v1145 = vunpack.c.l.b16 %v1068
      %v1146 = vunpack.c.l.b16 %v1070
      %v1147 = vunpack.c.l.b16 %v1071
      %v1148 = vunpack.c.l.b16 %v1073
      %v1149 = vunpack.c.l.b16 %v1074
      %v1150 = vunpack.c.l.b16 %v1076
      %v1151 = vunpack.c.l.b16 %v1077
      %v1152 = vunpack.c.l.b16 %v1079
      %v1153 = vunpack.c.l.b16 %v1080
      %v1154 = vunpack.c.l.b16 %v1082
      %v1155 = vunpack.c.l.b16 %v1083
      %v1156 = vunpack.c.l.b16 %v1085
      %v1157 = vunpack.c.l.b16 %v1086
      %v1158 = vunpack.c.l.b16 %v1088
      %v1159 = vunpack.c.l.b16 %v1089
      %v1160 = vunpack.c.l.b16 %v1091
      %v1161 = vunpack.c.l.b16 %v1092
      %v1162 = vunpack.c.l.b16 %v1094
      %v1163 = vunpack.c.l.b16 %v1095
      %v1164 = vunpack.c.l.b16 %v1097
      %v1165 = vunpack.c.l.b16 %v1098
      %v1166 = vunpack.c.l.b16 %v1100
      %v1167 = vunpack.c.l.b16 %v1101
      %v1168 = vunpack.c.l.b16 %v1103
      %v1169 = vunpack.c.l.b16 %v1104
      %v1170 = vpack.c.b16 %v1139, %v1138
      %v1171 = vpack.c.b16 %v1141, %v1140
      %v1172 = vpack.c.b16 %v1143, %v1142
      %v1173 = vpack.c.b16 %v1145, %v1144
      %v1174 = vpack.c.b16 %v1147, %v1146
      %v1175 = vpack.c.b16 %v1149, %v1148
      %v1176 = vpack.c.b16 %v1151, %v1150
      %v1177 = vpack.c.b16 %v1153, %v1152
      %v1178 = vpack.c.b16 %v1155, %v1154
      %v1179 = vpack.c.b16 %v1157, %v1156
      %v1180 = vpack.c.b16 %v1159, %v1158
      %v1181 = vpack.c.b16 %v1161, %v1160
      %v1182 = vpack.c.b16 %v1163, %v1162
      %v1183 = vpack.c.b16 %v1165, %v1164
      %v1184 = vpack.c.b16 %v1167, %v1166
      %v1185 = vpack.c.b16 %v1169, %v1168
      %v1202 = vunpack.c.l.b16 %v1060
      %v1203 = vunpack.c.l.b16 %v1063
      %v1204 = vunpack.c.l.b16 %v1066
      %v1205 = vunpack.c.l.b16 %v1069
      %v1206 = vunpack.c.l.b16 %v1072
      %v1207 = vunpack.c.l.b16 %v1075
      %v1208 = vunpack.c.l.b16 %v1078
      %v1209 = vunpack.c.l.b16 %v1081
      %v1210 = vunpack.c.l.b16 %v1084
      %v1211 = vunpack.c.l.b16 %v1087
      %v1212 = vunpack.c.l.b16 %v1090
      %v1213 = vunpack.c.l.b16 %v1093
      %v1214 = vunpack.c.l.b16 %v1096
      %v1215 = vunpack.c.l.b16 %v1099
      %v1216 = vunpack.c.l.b16 %v1102
      %v1217 = vunpack.c.l.b16 %v1105
      %v1218 = vpack.c.b16 %v1202, %v1202
      %v1219 = vpack.c.b16 %v1203, %v1203
      %v1220 = vpack.c.b16 %v1204, %v1204
      %v1221 = vpack.c.b16 %v1205, %v1205
      %v1222 = vpack.c.b16 %v1206, %v1206
      %v1223 = vpack.c.b16 %v1207, %v1207
      %v1224 = vpack.c.b16 %v1208, %v1208
      %v1225 = vpack.c.b16 %v1209, %v1209
      %v1226 = vpack.c.b16 %v1210, %v1210
      %v1227 = vpack.c.b16 %v1211, %v1211
      %v1228 = vpack.c.b16 %v1212, %v1212
      %v1229 = vpack.c.b16 %v1213, %v1213
      %v1230 = vpack.c.b16 %v1214, %v1214
      %v1231 = vpack.c.b16 %v1215, %v1215
      %v1232 = vpack.c.b16 %v1216, %v1216
      %v1233 = vpack.c.b16 %v1217, %v1217
      %vm1234 = vsmask.f32 7424
      %v1236 = vshrl.u32 %v1170, 16
      %v1238 = vshll.u32 %v1170, 16
      %v1240 = vrot.slane %v1238, 1
      %v1241 = vor.u32 %v1236, %v1240
      %v1243 = vshll.u32 %v1218, 16
      %v1245 = vrot.slane %v1243, 1
      %v1246 = vsel %vm1234, %v1241, %v1245
      %v1248 = vshrl.u32 %v1171, 16
      %v1250 = vshll.u32 %v1171, 16
      %v1252 = vrot.slane %v1250, 1
      %v1253 = vor.u32 %v1248, %v1252
      %v1255 = vshll.u32 %v1219, 16
      %v1257 = vrot.slane %v1255, 1
      %v1258 = vsel %vm1234, %v1253, %v1257
      %v1260 = vshrl.u32 %v1172, 16
      %v1262 = vshll.u32 %v1172, 16
      %v1264 = vrot.slane %v1262, 1
      %v1265 = vor.u32 %v1260, %v1264
      %v1267 = vshll.u32 %v1220, 16
      %v1269 = vrot.slane %v1267, 1
      %v1270 = vsel %vm1234, %v1265, %v1269
      %v1272 = vshrl.u32 %v1173, 16
      %v1274 = vshll.u32 %v1173, 16
      %v1276 = vrot.slane %v1274, 1
      %v1277 = vor.u32 %v1272, %v1276
      %v1279 = vshll.u32 %v1221, 16
      %v1281 = vrot.slane %v1279, 1
      %v1282 = vsel %vm1234, %v1277, %v1281
      %v1284 = vshrl.u32 %v1174, 16
      %v1286 = vshll.u32 %v1174, 16
      %v1288 = vrot.slane %v1286, 1
      %v1289 = vor.u32 %v1284, %v1288
      %v1291 = vshll.u32 %v1222, 16
      %v1293 = vrot.slane %v1291, 1
      %v1294 = vsel %vm1234, %v1289, %v1293
      %v1296 = vshrl.u32 %v1175, 16
      %v1298 = vshll.u32 %v1175, 16
      %v1300 = vrot.slane %v1298, 1
      %v1301 = vor.u32 %v1296, %v1300
      %v1303 = vshll.u32 %v1223, 16
      %v1305 = vrot.slane %v1303, 1
      %v1306 = vsel %vm1234, %v1301, %v1305
      %v1308 = vshrl.u32 %v1176, 16
      %v1310 = vshll.u32 %v1176, 16
      %v1312 = vrot.slane %v1310, 1
      %v1313 = vor.u32 %v1308, %v1312
      %v1315 = vshll.u32 %v1224, 16
      %v1317 = vrot.slane %v1315, 1
      %v1318 = vsel %vm1234, %v1313, %v1317
      %v1320 = vshrl.u32 %v1177, 16
      %v1322 = vshll.u32 %v1177, 16
      %v1324 = vrot.slane %v1322, 1
      %v1325 = vor.u32 %v1320, %v1324
      %v1327 = vshll.u32 %v1225, 16
      %v1329 = vrot.slane %v1327, 1
      %v1330 = vsel %vm1234, %v1325, %v1329
      %v1332 = vshrl.u32 %v1178, 16
      %v1334 = vshll.u32 %v1178, 16
      %v1336 = vrot.slane %v1334, 1
      %v1337 = vor.u32 %v1332, %v1336
      %v1339 = vshll.u32 %v1226, 16
      %v1341 = vrot.slane %v1339, 1
      %v1342 = vsel %vm1234, %v1337, %v1341
      %v1344 = vshrl.u32 %v1179, 16
      %v1346 = vshll.u32 %v1179, 16
      %v1348 = vrot.slane %v1346, 1
      %v1349 = vor.u32 %v1344, %v1348
      %v1351 = vshll.u32 %v1227, 16
      %v1353 = vrot.slane %v1351, 1
      %v1354 = vsel %vm1234, %v1349, %v1353
      %v1356 = vshrl.u32 %v1180, 16
      %v1358 = vshll.u32 %v1180, 16
      %v1360 = vrot.slane %v1358, 1
      %v1361 = vor.u32 %v1356, %v1360
      %v1363 = vshll.u32 %v1228, 16
      %v1365 = vrot.slane %v1363, 1
      %v1366 = vsel %vm1234, %v1361, %v1365
      %v1368 = vshrl.u32 %v1181, 16
      %v1370 = vshll.u32 %v1181, 16
      %v1372 = vrot.slane %v1370, 1
      %v1373 = vor.u32 %v1368, %v1372
      %v1375 = vshll.u32 %v1229, 16
      %v1377 = vrot.slane %v1375, 1
      %v1378 = vsel %vm1234, %v1373, %v1377
      %v1380 = vshrl.u32 %v1182, 16
      %v1382 = vshll.u32 %v1182, 16
      %v1384 = vrot.slane %v1382, 1
      %v1385 = vor.u32 %v1380, %v1384
      %v1387 = vshll.u32 %v1230, 16
      %v1389 = vrot.slane %v1387, 1
      %v1390 = vsel %vm1234, %v1385, %v1389
      %v1392 = vshrl.u32 %v1183, 16
      %v1394 = vshll.u32 %v1183, 16
      %v1396 = vrot.slane %v1394, 1
      %v1397 = vor.u32 %v1392, %v1396
      %v1399 = vshll.u32 %v1231, 16
      %v1401 = vrot.slane %v1399, 1
      %v1402 = vsel %vm1234, %v1397, %v1401
      %v1404 = vshrl.u32 %v1184, 16
      %v1406 = vshll.u32 %v1184, 16
      %v1408 = vrot.slane %v1406, 1
      %v1409 = vor.u32 %v1404, %v1408
      %v1411 = vshll.u32 %v1232, 16
      %v1413 = vrot.slane %v1411, 1
      %v1414 = vsel %vm1234, %v1409, %v1413
      %v1416 = vshrl.u32 %v1185, 16
      %v1418 = vshll.u32 %v1185, 16
      %v1420 = vrot.slane %v1418, 1
      %v1421 = vor.u32 %v1416, %v1420
      %v1423 = vshll.u32 %v1233, 16
      %v1425 = vrot.slane %v1423, 1
      %v1426 = vsel %vm1234, %v1421, %v1425
      %1427 = vrot.lane.b32.xlu0 %v1246, 4
      %v1428 = vpop.permute.xlu0 %1427
      %1429 = vrot.lane.b32.xlu0 %v1258, 4
      %v1430 = vpop.permute.xlu0 %1429
      %1431 = vrot.lane.b32.xlu0 %v1270, 4
      %v1432 = vpop.permute.xlu0 %1431
      %1433 = vrot.lane.b32.xlu0 %v1282, 4
      %v1434 = vpop.permute.xlu0 %1433
      %1435 = vrot.lane.b32.xlu0 %v1294, 4
      %v1436 = vpop.permute.xlu0 %1435
      %1437 = vrot.lane.b32.xlu0 %v1306, 4
      %v1438 = vpop.permute.xlu0 %1437
      %1439 = vrot.lane.b32.xlu0 %v1318, 4
      %v1440 = vpop.permute.xlu0 %1439
      %1441 = vrot.lane.b32.xlu0 %v1330, 4
      %v1442 = vpop.permute.xlu0 %1441
      %1443 = vrot.lane.b32.xlu0 %v1342, 4
      %v1444 = vpop.permute.xlu0 %1443
      %1445 = vrot.lane.b32.xlu0 %v1354, 4
      %v1446 = vpop.permute.xlu0 %1445
      %1447 = vrot.lane.b32.xlu0 %v1366, 4
      %v1448 = vpop.permute.xlu0 %1447
      %1449 = vrot.lane.b32.xlu0 %v1378, 4
      %v1450 = vpop.permute.xlu0 %1449
      %1451 = vrot.lane.b32.xlu0 %v1390, 4
      %v1452 = vpop.permute.xlu0 %1451
      %1453 = vrot.lane.b32.xlu0 %v1402, 4
      %v1454 = vpop.permute.xlu0 %1453
      %1455 = vrot.lane.b32.xlu0 %v1414, 4
      %v1456 = vpop.permute.xlu0 %1455
      %1457 = vrot.lane.b32.xlu0 %v1426, 4
      %v1458 = vpop.permute.xlu0 %1457
      %vm1459 = vcmask 1046528
      %v1460 = vrot.slane %v1170, 1
      %v1461 = vrot.slane %v1218, 1
      %v1462 = vsel %vm1459, %v1460, %v1461
      %v1463 = vrot.slane %v1171, 1
      %v1464 = vrot.slane %v1219, 1
      %v1465 = vsel %vm1459, %v1463, %v1464
      %v1466 = vrot.slane %v1172, 1
      %v1467 = vrot.slane %v1220, 1
      %v1468 = vsel %vm1459, %v1466, %v1467
      %v1469 = vrot.slane %v1173, 1
      %v1470 = vrot.slane %v1221, 1
      %v1471 = vsel %vm1459, %v1469, %v1470
      %v1472 = vrot.slane %v1174, 1
      %v1473 = vrot.slane %v1222, 1
      %v1474 = vsel %vm1459, %v1472, %v1473
      %v1475 = vrot.slane %v1175, 1
      %v1476 = vrot.slane %v1223, 1
      %v1477 = vsel %vm1459, %v1475, %v1476
      %v1478 = vrot.slane %v1176, 1
      %v1479 = vrot.slane %v1224, 1
      %v1480 = vsel %vm1459, %v1478, %v1479
      %v1481 = vrot.slane %v1177, 1
      %v1482 = vrot.slane %v1225, 1
      %v1483 = vsel %vm1459, %v1481, %v1482
      %v1484 = vrot.slane %v1178, 1
      %v1485 = vrot.slane %v1226, 1
      %v1486 = vsel %vm1459, %v1484, %v1485
      %v1487 = vrot.slane %v1179, 1
      %v1488 = vrot.slane %v1227, 1
      %v1489 = vsel %vm1459, %v1487, %v1488
      %v1490 = vrot.slane %v1180, 1
      %v1491 = vrot.slane %v1228, 1
      %v1492 = vsel %vm1459, %v1490, %v1491
      %v1493 = vrot.slane %v1181, 1
      %v1494 = vrot.slane %v1229, 1
      %v1495 = vsel %vm1459, %v1493, %v1494
      %v1496 = vrot.slane %v1182, 1
      %v1497 = vrot.slane %v1230, 1
      %v1498 = vsel %vm1459, %v1496, %v1497
      %v1499 = vrot.slane %v1183, 1
      %v1500 = vrot.slane %v1231, 1
      %v1501 = vsel %vm1459, %v1499, %v1500
      %v1502 = vrot.slane %v1184, 1
      %v1503 = vrot.slane %v1232, 1
      %v1504 = vsel %vm1459, %v1502, %v1503
      %v1505 = vrot.slane %v1185, 1
      %v1506 = vrot.slane %v1233, 1
      %v1507 = vsel %vm1459, %v1505, %v1506
      %1508 = vrot.lane.b32.xlu0 %v1462, 8
      %v1509 = vpop.permute.xlu0 %1508
      %1510 = vrot.lane.b32.xlu0 %v1465, 8
      %v1511 = vpop.permute.xlu0 %1510
      %1512 = vrot.lane.b32.xlu0 %v1468, 8
      %v1513 = vpop.permute.xlu0 %1512
      %1514 = vrot.lane.b32.xlu0 %v1471, 8
      %v1515 = vpop.permute.xlu0 %1514
      %1516 = vrot.lane.b32.xlu0 %v1474, 8
      %v1517 = vpop.permute.xlu0 %1516
      %1518 = vrot.lane.b32.xlu0 %v1477, 8
      %v1519 = vpop.permute.xlu0 %1518
      %1520 = vrot.lane.b32.xlu0 %v1480, 8
      %v1521 = vpop.permute.xlu0 %1520
      %1522 = vrot.lane.b32.xlu0 %v1483, 8
      %v1523 = vpop.permute.xlu0 %1522
      %1524 = vrot.lane.b32.xlu0 %v1486, 8
      %v1525 = vpop.permute.xlu0 %1524
      %1526 = vrot.lane.b32.xlu0 %v1489, 8
      %v1527 = vpop.permute.xlu0 %1526
      %1528 = vrot.lane.b32.xlu0 %v1492, 8
      %v1529 = vpop.permute.xlu0 %1528
      %1530 = vrot.lane.b32.xlu0 %v1495, 8
      %v1531 = vpop.permute.xlu0 %1530
      %1532 = vrot.lane.b32.xlu0 %v1498, 8
      %v1533 = vpop.permute.xlu0 %1532
      %1534 = vrot.lane.b32.xlu0 %v1501, 8
      %v1535 = vpop.permute.xlu0 %1534
      %1536 = vrot.lane.b32.xlu0 %v1504, 8
      %v1537 = vpop.permute.xlu0 %1536
      %1538 = vrot.lane.b32.xlu0 %v1507, 8
      %v1539 = vpop.permute.xlu0 %1538
      %vm1540 = vcmask 31744
      %v1542 = vsel %vm1540, %v1170, %v1428
      %v1544 = vsel %vm1540, %v1171, %v1430
      %v1546 = vsel %vm1540, %v1172, %v1432
      %v1548 = vsel %vm1540, %v1173, %v1434
      %v1550 = vsel %vm1540, %v1174, %v1436
      %v1552 = vsel %vm1540, %v1175, %v1438
      %v1554 = vsel %vm1540, %v1176, %v1440
      %v1556 = vsel %vm1540, %v1177, %v1442
      %v1558 = vsel %vm1540, %v1178, %v1444
      %v1560 = vsel %vm1540, %v1179, %v1446
      %v1562 = vsel %vm1540, %v1180, %v1448
      %v1564 = vsel %vm1540, %v1181, %v1450
      %v1566 = vsel %vm1540, %v1182, %v1452
      %v1568 = vsel %vm1540, %v1183, %v1454
      %v1570 = vsel %vm1540, %v1184, %v1456
      %v1572 = vsel %vm1540, %v1185, %v1458
      %vm1573 = vcmask 64512
      %v1575 = vsel %vm1573, %v1542, %v1509
      %v1577 = vsel %vm1573, %v1544, %v1511
      %v1579 = vsel %vm1573, %v1546, %v1513
      %v1581 = vsel %vm1573, %v1548, %v1515
      %v1583 = vsel %vm1573, %v1550, %v1517
      %v1585 = vsel %vm1573, %v1552, %v1519
      %v1587 = vsel %vm1573, %v1554, %v1521
      %v1589 = vsel %vm1573, %v1556, %v1523
      %v1591 = vsel %vm1573, %v1558, %v1525
      %v1593 = vsel %vm1573, %v1560, %v1527
      %v1595 = vsel %vm1573, %v1562, %v1529
      %v1597 = vsel %vm1573, %v1564, %v1531
      %v1599 = vsel %vm1573, %v1566, %v1533
      %v1601 = vsel %vm1573, %v1568, %v1535
      %v1603 = vsel %vm1573, %v1570, %v1537
      %v1605 = vsel %vm1573, %v1572, %v1539
      %v1606 = vld [vmem:[%s635] sm:$0xf]
      %v1607 = vld [vmem:[%s635 + $0x4] sm:$0xf]
      %v1608 = vld [vmem:[%s635 + $0x8] sm:$0x1]
      %v1609 = vld [vmem:[%s635 + $0xc] sm:$0xf]
      %v1610 = vld [vmem:[%s635 + $0x10] sm:$0xf]
      %v1611 = vld [vmem:[%s635 + $0x14] sm:$0x1]
      %v1612 = vld [vmem:[%s635 + $0x18] sm:$0xf]
      %v1613 = vld [vmem:[%s635 + $0x1c] sm:$0xf]
      %v1614 = vld [vmem:[%s635 + $0x20] sm:$0x1]
      %v1615 = vld [vmem:[%s635 + $0x24] sm:$0xf]
      %v1616 = vld [vmem:[%s635 + $0x28] sm:$0xf]
      %v1617 = vld [vmem:[%s635 + $0x2c] sm:$0x1]
      %v1618 = vld [vmem:[%s635 + $0x30] sm:$0xf]
      %v1619 = vld [vmem:[%s635 + $0x34] sm:$0xf]
      %v1620 = vld [vmem:[%s635 + $0x38] sm:$0x1]
      %v1621 = vld [vmem:[%s635 + $0x3c] sm:$0xf]
      %v1622 = vld [vmem:[%s635 + $0x40] sm:$0xf]
      %v1623 = vld [vmem:[%s635 + $0x44] sm:$0x1]
      %v1624 = vld [vmem:[%s635 + $0x48] sm:$0xf]
      %v1625 = vld [vmem:[%s635 + $0x4c] sm:$0xf]
      %v1626 = vld [vmem:[%s635 + $0x50] sm:$0x1]
      %v1627 = vld [vmem:[%s635 + $0x54] sm:$0xf]
      %v1628 = vld [vmem:[%s635 + $0x58] sm:$0xf]
      %v1629 = vld [vmem:[%s635 + $0x5c] sm:$0x1]
      %v1630 = vld [vmem:[%s635 + $0x60] sm:$0xf]
      %v1631 = vld [vmem:[%s635 + $0x64] sm:$0xf]
      %v1632 = vld [vmem:[%s635 + $0x68] sm:$0x1]
      %v1633 = vld [vmem:[%s635 + $0x6c] sm:$0xf]
      %v1634 = vld [vmem:[%s635 + $0x70] sm:$0xf]
      %v1635 = vld [vmem:[%s635 + $0x74] sm:$0x1]
      %v1636 = vld [vmem:[%s635 + $0x78] sm:$0xf]
      %v1637 = vld [vmem:[%s635 + $0x7c] sm:$0xf]
      %v1638 = vld [vmem:[%s635 + $0x80] sm:$0x1]
      %v1639 = vld [vmem:[%s635 + $0x84] sm:$0xf]
      %v1640 = vld [vmem:[%s635 + $0x88] sm:$0xf]
      %v1641 = vld [vmem:[%s635 + $0x8c] sm:$0x1]
      %v1642 = vld [vmem:[%s635 + $0x90] sm:$0xf]
      %v1643 = vld [vmem:[%s635 + $0x94] sm:$0xf]
      %v1644 = vld [vmem:[%s635 + $0x98] sm:$0x1]
      %v1645 = vld [vmem:[%s635 + $0x9c] sm:$0xf]
      %v1646 = vld [vmem:[%s635 + $0xa0] sm:$0xf]
      %v1647 = vld [vmem:[%s635 + $0xa4] sm:$0x1]
      %v1648 = vld [vmem:[%s635 + $0xa8] sm:$0xf]
      %v1649 = vld [vmem:[%s635 + $0xac] sm:$0xf]
      %v1650 = vld [vmem:[%s635 + $0xb0] sm:$0x1]
      %v1651 = vld [vmem:[%s635 + $0xb4] sm:$0xf]
      %v1652 = vld [vmem:[%s635 + $0xb8] sm:$0xf]
      %v1653 = vld [vmem:[%s635 + $0xbc] sm:$0x1]
      %v1686 = vunpack.c.l.b16 %v1606
      %v1687 = vunpack.c.l.b16 %v1607
      %v1688 = vunpack.c.l.b16 %v1609
      %v1689 = vunpack.c.l.b16 %v1610
      %v1690 = vunpack.c.l.b16 %v1612
      %v1691 = vunpack.c.l.b16 %v1613
      %v1692 = vunpack.c.l.b16 %v1615
      %v1693 = vunpack.c.l.b16 %v1616
      %v1694 = vunpack.c.l.b16 %v1618
      %v1695 = vunpack.c.l.b16 %v1619
      %v1696 = vunpack.c.l.b16 %v1621
      %v1697 = vunpack.c.l.b16 %v1622
      %v1698 = vunpack.c.l.b16 %v1624
      %v1699 = vunpack.c.l.b16 %v1625
      %v1700 = vunpack.c.l.b16 %v1627
      %v1701 = vunpack.c.l.b16 %v1628
      %v1702 = vunpack.c.l.b16 %v1630
      %v1703 = vunpack.c.l.b16 %v1631
      %v1704 = vunpack.c.l.b16 %v1633
      %v1705 = vunpack.c.l.b16 %v1634
      %v1706 = vunpack.c.l.b16 %v1636
      %v1707 = vunpack.c.l.b16 %v1637
      %v1708 = vunpack.c.l.b16 %v1639
      %v1709 = vunpack.c.l.b16 %v1640
      %v1710 = vunpack.c.l.b16 %v1642
      %v1711 = vunpack.c.l.b16 %v1643
      %v1712 = vunpack.c.l.b16 %v1645
      %v1713 = vunpack.c.l.b16 %v1646
      %v1714 = vunpack.c.l.b16 %v1648
      %v1715 = vunpack.c.l.b16 %v1649
      %v1716 = vunpack.c.l.b16 %v1651
      %v1717 = vunpack.c.l.b16 %v1652
      %v1718 = vpack.c.b16 %v1687, %v1686
      %v1719 = vpack.c.b16 %v1689, %v1688
      %v1720 = vpack.c.b16 %v1691, %v1690
      %v1721 = vpack.c.b16 %v1693, %v1692
      %v1722 = vpack.c.b16 %v1695, %v1694
      %v1723 = vpack.c.b16 %v1697, %v1696
      %v1724 = vpack.c.b16 %v1699, %v1698
      %v1725 = vpack.c.b16 %v1701, %v1700
      %v1726 = vpack.c.b16 %v1703, %v1702
      %v1727 = vpack.c.b16 %v1705, %v1704
      %v1728 = vpack.c.b16 %v1707, %v1706
      %v1729 = vpack.c.b16 %v1709, %v1708
      %v1730 = vpack.c.b16 %v1711, %v1710
      %v1731 = vpack.c.b16 %v1713, %v1712
      %v1732 = vpack.c.b16 %v1715, %v1714
      %v1733 = vpack.c.b16 %v1717, %v1716
      %v1750 = vunpack.c.l.b16 %v1608
      %v1751 = vunpack.c.l.b16 %v1611
      %v1752 = vunpack.c.l.b16 %v1614
      %v1753 = vunpack.c.l.b16 %v1617
      %v1754 = vunpack.c.l.b16 %v1620
      %v1755 = vunpack.c.l.b16 %v1623
      %v1756 = vunpack.c.l.b16 %v1626
      %v1757 = vunpack.c.l.b16 %v1629
      %v1758 = vunpack.c.l.b16 %v1632
      %v1759 = vunpack.c.l.b16 %v1635
      %v1760 = vunpack.c.l.b16 %v1638
      %v1761 = vunpack.c.l.b16 %v1641
      %v1762 = vunpack.c.l.b16 %v1644
      %v1763 = vunpack.c.l.b16 %v1647
      %v1764 = vunpack.c.l.b16 %v1650
      %v1765 = vunpack.c.l.b16 %v1653
      %v1766 = vpack.c.b16 %v1750, %v1750
      %v1767 = vpack.c.b16 %v1751, %v1751
      %v1768 = vpack.c.b16 %v1752, %v1752
      %v1769 = vpack.c.b16 %v1753, %v1753
      %v1770 = vpack.c.b16 %v1754, %v1754
      %v1771 = vpack.c.b16 %v1755, %v1755
      %v1772 = vpack.c.b16 %v1756, %v1756
      %v1773 = vpack.c.b16 %v1757, %v1757
      %v1774 = vpack.c.b16 %v1758, %v1758
      %v1775 = vpack.c.b16 %v1759, %v1759
      %v1776 = vpack.c.b16 %v1760, %v1760
      %v1777 = vpack.c.b16 %v1761, %v1761
      %v1778 = vpack.c.b16 %v1762, %v1762
      %v1779 = vpack.c.b16 %v1763, %v1763
      %v1780 = vpack.c.b16 %v1764, %v1764
      %v1781 = vpack.c.b16 %v1765, %v1765
      %v1783 = vshrl.u32 %v1718, 16
      %v1785 = vshll.u32 %v1718, 16
      %v1787 = vrot.slane %v1785, 1
      %v1788 = vor.u32 %v1783, %v1787
      %v1790 = vshll.u32 %v1766, 16
      %v1792 = vrot.slane %v1790, 1
      %v1793 = vsel %vm1234, %v1788, %v1792
      %v1795 = vshrl.u32 %v1719, 16
      %v1797 = vshll.u32 %v1719, 16
      %v1799 = vrot.slane %v1797, 1
      %v1800 = vor.u32 %v1795, %v1799
      %v1802 = vshll.u32 %v1767, 16
      %v1804 = vrot.slane %v1802, 1
      %v1805 = vsel %vm1234, %v1800, %v1804
      %v1807 = vshrl.u32 %v1720, 16
      %v1809 = vshll.u32 %v1720, 16
      %v1811 = vrot.slane %v1809, 1
      %v1812 = vor.u32 %v1807, %v1811
      %v1814 = vshll.u32 %v1768, 16
      %v1816 = vrot.slane %v1814, 1
      %v1817 = vsel %vm1234, %v1812, %v1816
      %v1819 = vshrl.u32 %v1721, 16
      %v1821 = vshll.u32 %v1721, 16
      %v1823 = vrot.slane %v1821, 1
      %v1824 = vor.u32 %v1819, %v1823
      %v1826 = vshll.u32 %v1769, 16
      %v1828 = vrot.slane %v1826, 1
      %v1829 = vsel %vm1234, %v1824, %v1828
      %v1831 = vshrl.u32 %v1722, 16
      %v1833 = vshll.u32 %v1722, 16
      %v1835 = vrot.slane %v1833, 1
      %v1836 = vor.u32 %v1831, %v1835
      %v1838 = vshll.u32 %v1770, 16
      %v1840 = vrot.slane %v1838, 1
      %v1841 = vsel %vm1234, %v1836, %v1840
      %v1843 = vshrl.u32 %v1723, 16
      %v1845 = vshll.u32 %v1723, 16
      %v1847 = vrot.slane %v1845, 1
      %v1848 = vor.u32 %v1843, %v1847
      %v1850 = vshll.u32 %v1771, 16
      %v1852 = vrot.slane %v1850, 1
      %v1853 = vsel %vm1234, %v1848, %v1852
      %v1855 = vshrl.u32 %v1724, 16
      %v1857 = vshll.u32 %v1724, 16
      %v1859 = vrot.slane %v1857, 1
      %v1860 = vor.u32 %v1855, %v1859
      %v1862 = vshll.u32 %v1772, 16
      %v1864 = vrot.slane %v1862, 1
      %v1865 = vsel %vm1234, %v1860, %v1864
      %v1867 = vshrl.u32 %v1725, 16
      %v1869 = vshll.u32 %v1725, 16
      %v1871 = vrot.slane %v1869, 1
      %v1872 = vor.u32 %v1867, %v1871
      %v1874 = vshll.u32 %v1773, 16
      %v1876 = vrot.slane %v1874, 1
      %v1877 = vsel %vm1234, %v1872, %v1876
      %v1879 = vshrl.u32 %v1726, 16
      %v1881 = vshll.u32 %v1726, 16
      %v1883 = vrot.slane %v1881, 1
      %v1884 = vor.u32 %v1879, %v1883
      %v1886 = vshll.u32 %v1774, 16
      %v1888 = vrot.slane %v1886, 1
      %v1889 = vsel %vm1234, %v1884, %v1888
      %v1891 = vshrl.u32 %v1727, 16
      %v1893 = vshll.u32 %v1727, 16
      %v1895 = vrot.slane %v1893, 1
      %v1896 = vor.u32 %v1891, %v1895
      %v1898 = vshll.u32 %v1775, 16
      %v1900 = vrot.slane %v1898, 1
      %v1901 = vsel %vm1234, %v1896, %v1900
      %v1903 = vshrl.u32 %v1728, 16
      %v1905 = vshll.u32 %v1728, 16
      %v1907 = vrot.slane %v1905, 1
      %v1908 = vor.u32 %v1903, %v1907
      %v1910 = vshll.u32 %v1776, 16
      %v1912 = vrot.slane %v1910, 1
      %v1913 = vsel %vm1234, %v1908, %v1912
      %v1915 = vshrl.u32 %v1729, 16
      %v1917 = vshll.u32 %v1729, 16
      %v1919 = vrot.slane %v1917, 1
      %v1920 = vor.u32 %v1915, %v1919
      %v1922 = vshll.u32 %v1777, 16
      %v1924 = vrot.slane %v1922, 1
      %v1925 = vsel %vm1234, %v1920, %v1924
      %v1927 = vshrl.u32 %v1730, 16
      %v1929 = vshll.u32 %v1730, 16
      %v1931 = vrot.slane %v1929, 1
      %v1932 = vor.u32 %v1927, %v1931
      %v1934 = vshll.u32 %v1778, 16
      %v1936 = vrot.slane %v1934, 1
      %v1937 = vsel %vm1234, %v1932, %v1936
      %v1939 = vshrl.u32 %v1731, 16
      %v1941 = vshll.u32 %v1731, 16
      %v1943 = vrot.slane %v1941, 1
      %v1944 = vor.u32 %v1939, %v1943
      %v1946 = vshll.u32 %v1779, 16
      %v1948 = vrot.slane %v1946, 1
      %v1949 = vsel %vm1234, %v1944, %v1948
      %v1951 = vshrl.u32 %v1732, 16
      %v1953 = vshll.u32 %v1732, 16
      %v1955 = vrot.slane %v1953, 1
      %v1956 = vor.u32 %v1951, %v1955
      %v1958 = vshll.u32 %v1780, 16
      %v1960 = vrot.slane %v1958, 1
      %v1961 = vsel %vm1234, %v1956, %v1960
      %v1963 = vshrl.u32 %v1733, 16
      %v1965 = vshll.u32 %v1733, 16
      %v1967 = vrot.slane %v1965, 1
      %v1968 = vor.u32 %v1963, %v1967
      %v1970 = vshll.u32 %v1781, 16
      %v1972 = vrot.slane %v1970, 1
      %v1973 = vsel %vm1234, %v1968, %v1972
      %1974 = vrot.lane.b32.xlu0 %v1793, 4
      %v1975 = vpop.permute.xlu0 %1974
      %1976 = vrot.lane.b32.xlu0 %v1805, 4
      %v1977 = vpop.permute.xlu0 %1976
      %1978 = vrot.lane.b32.xlu0 %v1817, 4
      %v1979 = vpop.permute.xlu0 %1978
      %1980 = vrot.lane.b32.xlu0 %v1829, 4
      %v1981 = vpop.permute.xlu0 %1980
      %1982 = vrot.lane.b32.xlu0 %v1841, 4
      %v1983 = vpop.permute.xlu0 %1982
      %1984 = vrot.lane.b32.xlu0 %v1853, 4
      %v1985 = vpop.permute.xlu0 %1984
      %1986 = vrot.lane.b32.xlu0 %v1865, 4
      %v1987 = vpop.permute.xlu0 %1986
      %1988 = vrot.lane.b32.xlu0 %v1877, 4
      %v1989 = vpop.permute.xlu0 %1988
      %1990 = vrot.lane.b32.xlu0 %v1889, 4
      %v1991 = vpop.permute.xlu0 %1990
      %1992 = vrot.lane.b32.xlu0 %v1901, 4
      %v1993 = vpop.permute.xlu0 %1992
      %1994 = vrot.lane.b32.xlu0 %v1913, 4
      %v1995 = vpop.permute.xlu0 %1994
      %1996 = vrot.lane.b32.xlu0 %v1925, 4
      %v1997 = vpop.permute.xlu0 %1996
      %1998 = vrot.lane.b32.xlu0 %v1937, 4
      %v1999 = vpop.permute.xlu0 %1998
      %2000 = vrot.lane.b32.xlu0 %v1949, 4
      %v2001 = vpop.permute.xlu0 %2000
      %2002 = vrot.lane.b32.xlu0 %v1961, 4
      %v2003 = vpop.permute.xlu0 %2002
      %2004 = vrot.lane.b32.xlu0 %v1973, 4
      %v2005 = vpop.permute.xlu0 %2004
      %v2006 = vrot.slane %v1718, 1
      %v2007 = vrot.slane %v1766, 1
      %v2008 = vsel %vm1459, %v2006, %v2007
      %v2009 = vrot.slane %v1719, 1
      %v2010 = vrot.slane %v1767, 1
      %v2011 = vsel %vm1459, %v2009, %v2010
      %v2012 = vrot.slane %v1720, 1
      %v2013 = vrot.slane %v1768, 1
      %v2014 = vsel %vm1459, %v2012, %v2013
      %v2015 = vrot.slane %v1721, 1
      %v2016 = vrot.slane %v1769, 1
      %v2017 = vsel %vm1459, %v2015, %v2016
      %v2018 = vrot.slane %v1722, 1
      %v2019 = vrot.slane %v1770, 1
      %v2020 = vsel %vm1459, %v2018, %v2019
      %v2021 = vrot.slane %v1723, 1
      %v2022 = vrot.slane %v1771, 1
      %v2023 = vsel %vm1459, %v2021, %v2022
      %v2024 = vrot.slane %v1724, 1
      %v2025 = vrot.slane %v1772, 1
      %v2026 = vsel %vm1459, %v2024, %v2025
      %v2027 = vrot.slane %v1725, 1
      %v2028 = vrot.slane %v1773, 1
      %v2029 = vsel %vm1459, %v2027, %v2028
      %v2030 = vrot.slane %v1726, 1
      %v2031 = vrot.slane %v1774, 1
      %v2032 = vsel %vm1459, %v2030, %v2031
      %v2033 = vrot.slane %v1727, 1
      %v2034 = vrot.slane %v1775, 1
      %v2035 = vsel %vm1459, %v2033, %v2034
      %v2036 = vrot.slane %v1728, 1
      %v2037 = vrot.slane %v1776, 1
      %v2038 = vsel %vm1459, %v2036, %v2037
      %v2039 = vrot.slane %v1729, 1
      %v2040 = vrot.slane %v1777, 1
      %v2041 = vsel %vm1459, %v2039, %v2040
      %v2042 = vrot.slane %v1730, 1
      %v2043 = vrot.slane %v1778, 1
      %v2044 = vsel %vm1459, %v2042, %v2043
      %v2045 = vrot.slane %v1731, 1
      %v2046 = vrot.slane %v1779, 1
      %v2047 = vsel %vm1459, %v2045, %v2046
      %v2048 = vrot.slane %v1732, 1
      %v2049 = vrot.slane %v1780, 1
      %v2050 = vsel %vm1459, %v2048, %v2049
      %v2051 = vrot.slane %v1733, 1
      %v2052 = vrot.slane %v1781, 1
      %v2053 = vsel %vm1459, %v2051, %v2052
      %2054 = vrot.lane.b32.xlu0 %v2008, 8
      %v2055 = vpop.permute.xlu0 %2054
      %2056 = vrot.lane.b32.xlu0 %v2011, 8
      %v2057 = vpop.permute.xlu0 %2056
      %2058 = vrot.lane.b32.xlu0 %v2014, 8
      %v2059 = vpop.permute.xlu0 %2058
      %2060 = vrot.lane.b32.xlu0 %v2017, 8
      %v2061 = vpop.permute.xlu0 %2060
      %2062 = vrot.lane.b32.xlu0 %v2020, 8
      %v2063 = vpop.permute.xlu0 %2062
      %2064 = vrot.lane.b32.xlu0 %v2023, 8
      %v2065 = vpop.permute.xlu0 %2064
      %2066 = vrot.lane.b32.xlu0 %v2026, 8
      %v2067 = vpop.permute.xlu0 %2066
      %2068 = vrot.lane.b32.xlu0 %v2029, 8
      %v2069 = vpop.permute.xlu0 %2068
      %2070 = vrot.lane.b32.xlu0 %v2032, 8
      %v2071 = vpop.permute.xlu0 %2070
      %2072 = vrot.lane.b32.xlu0 %v2035, 8
      %v2073 = vpop.permute.xlu0 %2072
      %2074 = vrot.lane.b32.xlu0 %v2038, 8
      %v2075 = vpop.permute.xlu0 %2074
      %2076 = vrot.lane.b32.xlu0 %v2041, 8
      %v2077 = vpop.permute.xlu0 %2076
      %2078 = vrot.lane.b32.xlu0 %v2044, 8
      %v2079 = vpop.permute.xlu0 %2078
      %2080 = vrot.lane.b32.xlu0 %v2047, 8
      %v2081 = vpop.permute.xlu0 %2080
      %2082 = vrot.lane.b32.xlu0 %v2050, 8
      %v2083 = vpop.permute.xlu0 %2082
      %2084 = vrot.lane.b32.xlu0 %v2053, 8
      %v2085 = vpop.permute.xlu0 %2084
      %v2087 = vsel %vm1540, %v1718, %v1975
      %v2089 = vsel %vm1540, %v1719, %v1977
      %v2091 = vsel %vm1540, %v1720, %v1979
      %v2093 = vsel %vm1540, %v1721, %v1981
      %v2095 = vsel %vm1540, %v1722, %v1983
      %v2097 = vsel %vm1540, %v1723, %v1985
      %v2099 = vsel %vm1540, %v1724, %v1987
      %v2101 = vsel %vm1540, %v1725, %v1989
      %v2103 = vsel %vm1540, %v1726, %v1991
      %v2105 = vsel %vm1540, %v1727, %v1993
      %v2107 = vsel %vm1540, %v1728, %v1995
      %v2109 = vsel %vm1540, %v1729, %v1997
      %v2111 = vsel %vm1540, %v1730, %v1999
      %v2113 = vsel %vm1540, %v1731, %v2001
      %v2115 = vsel %vm1540, %v1732, %v2003
      %v2117 = vsel %vm1540, %v1733, %v2005
      %v2119 = vsel %vm1573, %v2087, %v2055
      %v2121 = vsel %vm1573, %v2089, %v2057
      %v2123 = vsel %vm1573, %v2091, %v2059
      %v2125 = vsel %vm1573, %v2093, %v2061
      %v2127 = vsel %vm1573, %v2095, %v2063
      %v2129 = vsel %vm1573, %v2097, %v2065
      %v2131 = vsel %vm1573, %v2099, %v2067
      %v2133 = vsel %vm1573, %v2101, %v2069
      %v2135 = vsel %vm1573, %v2103, %v2071
      %v2137 = vsel %vm1573, %v2105, %v2073
      %v2139 = vsel %vm1573, %v2107, %v2075
      %v2141 = vsel %vm1573, %v2109, %v2077
      %v2143 = vsel %vm1573, %v2111, %v2079
      %v2145 = vsel %vm1573, %v2113, %v2081
      %v2147 = vsel %vm1573, %v2115, %v2083
      %v2149 = vsel %vm1573, %v2117, %v2085
      %v2152 = vunpack.c.l.b16 %v174
      %v2153 = vunpack.c.l.b16 %v175
      %v2154 = vpack.c.b16 %v2153, %v2152
      %vm2155 = vcmask 97280
      %v2156 = vsel %vm2155, %v2119, 0
      %v2158 = vsel %vm2155, %v2121, 0
      %v2160 = vsel %vm2155, %v2123, 0
      %v2162 = vsel %vm2155, %v2125, 0
      %v2164 = vsel %vm2155, %v2127, 0
      %v2166 = vsel %vm2155, %v2129, 0
      %v2168 = vsel %vm2155, %v2131, 0
      %v2170 = vsel %vm2155, %v2133, 0
      %v2172 = vsel %vm2155, %v2135, 0
      %v2174 = vsel %vm2155, %v2137, 0
      %v2176 = vsel %vm2155, %v2139, 0
      %v2178 = vsel %vm2155, %v2141, 0
      %v2180 = vsel %vm2155, %v2143, 0
      %v2182 = vsel %vm2155, %v2145, 0
      %v2184 = vsel %vm2155, %v2147, 0
      %v2186 = vsel %vm2155, %v2149, 0
      %vm2188 = vcmask 1045504
      %v2190 = vsel %vm2188, %v2154, 0
      %2192 = vmatprep.subr.bf16.mxu0 0
      %2193 = vmatpush1.bf16.msra.mxu0 0
      %2194 = vmatprep.subr.bf16.mxu0 0
      %2195 = vmatpush1.bf16.msra.mxu0 0
      %2196 = vmatprep.subr.bf16.mxu0 0
      %2197 = vmatpush1.bf16.msra.mxu0 0
      %2198 = vmatprep.subr.bf16.mxu0 0
      %2199 = vmatpush1.bf16.msra.mxu0 0
      %2200 = vmatprep.subr.bf16.mxu0 0
      %2201 = vmatpush1.bf16.msra.mxu0 0
      %2202 = vmatprep.subr.bf16.mxu0 0
      %2203 = vmatpush1.bf16.msra.mxu0 0
      %2204 = vmatprep.subr.bf16.mxu0 0
      %2205 = vmatpush1.bf16.msra.mxu0 0
      %2206 = vmatprep.subr.bf16.mxu0 0
      %2207 = vmatpush1.bf16.msra.mxu0 %v2190
      %2208 = vmatprep.subr.bf16.mxu0 0
      %2209 = vmatpush2.bf16.msra.mxu0 0
      %2210 = vmatprep.subr.bf16.mxu0 0
      %2211 = vmatpush2.bf16.msra.mxu0 0
      %2212 = vmatprep.subr.bf16.mxu0 0
      %2213 = vmatpush2.bf16.msra.mxu0 0
      %2214 = vmatprep.subr.bf16.mxu0 0
      %2215 = vmatpush2.bf16.msra.mxu0 0
      %2216 = vmatprep.subr.bf16.mxu0 0
      %2217 = vmatpush2.bf16.msra.mxu0 0
      %2218 = vmatprep.subr.bf16.mxu0 0
      %2219 = vmatpush2.bf16.msra.mxu0 0
      %2220 = vmatprep.subr.bf16.mxu0 0
      %2221 = vmatpush2.bf16.msra.mxu0 0
      %2222 = vmatprep.subr.bf16.mxu0 0
      %2223 = vmatpush2.bf16.msra.mxu0 0
      %2224 = vmatprep.mubr.bf16.mxu0 0
      %2225 = vmatmul.mubr.bf16.gmra.mxu0 %v2156
      %v2226 = vpop.f32.mrf.mxu0
      %v2227 = vadd.f32 0.0, %v2226
      %v2228 = vpop.f32.mrf.mxu0
      %v2229 = vpop.f32.mrf.mxu0
      %v2230 = vadd.f32 0.0, %v2229
      %v2231 = vpop.f32.mrf.mxu0
      %2232 = vmatprep.mubr.bf16.mxu0 0
      %2233 = vmatmul.mubr.bf16.gmra.mxu0 %v2158
      %v2234 = vpop.f32.mrf.mxu0
      %v2235 = vadd.f32 0.0, %v2234
      %v2236 = vpop.f32.mrf.mxu0
      %v2237 = vpop.f32.mrf.mxu0
      %v2238 = vadd.f32 0.0, %v2237
      %v2239 = vpop.f32.mrf.mxu0
      %2240 = vmatprep.mubr.bf16.mxu0 0
      %2241 = vmatmul.mubr.bf16.gmra.mxu0 %v2160
      %v2242 = vpop.f32.mrf.mxu0
      %v2243 = vadd.f32 0.0, %v2242
      %v2244 = vpop.f32.mrf.mxu0
      %v2245 = vpop.f32.mrf.mxu0
      %v2246 = vadd.f32 0.0, %v2245
      %v2247 = vpop.f32.mrf.mxu0
      %2248 = vmatprep.mubr.bf16.mxu0 0
      %2249 = vmatmul.mubr.bf16.gmra.mxu0 %v2162
      %v2250 = vpop.f32.mrf.mxu0
      %v2251 = vadd.f32 0.0, %v2250
      %v2252 = vpop.f32.mrf.mxu0
      %v2253 = vpop.f32.mrf.mxu0
      %v2254 = vadd.f32 0.0, %v2253
      %v2255 = vpop.f32.mrf.mxu0
      %2256 = vmatprep.mubr.bf16.mxu0 0
      %2257 = vmatmul.mubr.bf16.gmra.mxu0 %v2164
      %v2258 = vpop.f32.mrf.mxu0
      %v2259 = vadd.f32 0.0, %v2258
      %v2260 = vpop.f32.mrf.mxu0
      %v2261 = vpop.f32.mrf.mxu0
      %v2262 = vadd.f32 0.0, %v2261
      %v2263 = vpop.f32.mrf.mxu0
      %2264 = vmatprep.mubr.bf16.mxu0 0
      %2265 = vmatmul.mubr.bf16.gmra.mxu0 %v2166
      %v2266 = vpop.f32.mrf.mxu0
      %v2267 = vadd.f32 0.0, %v2266
      %v2268 = vpop.f32.mrf.mxu0
      %v2269 = vpop.f32.mrf.mxu0
      %v2270 = vadd.f32 0.0, %v2269
      %v2271 = vpop.f32.mrf.mxu0
      %2272 = vmatprep.mubr.bf16.mxu0 0
      %2273 = vmatmul.mubr.bf16.gmra.mxu0 %v2168
      %v2274 = vpop.f32.mrf.mxu0
      %v2275 = vadd.f32 0.0, %v2274
      %v2276 = vpop.f32.mrf.mxu0
      %v2277 = vpop.f32.mrf.mxu0
      %v2278 = vadd.f32 0.0, %v2277
      %v2279 = vpop.f32.mrf.mxu0
      %2280 = vmatprep.mubr.bf16.mxu0 0
      %2281 = vmatmul.mubr.bf16.gmra.mxu0 %v2170
      %v2282 = vpop.f32.mrf.mxu0
      %v2283 = vadd.f32 0.0, %v2282
      %v2284 = vpop.f32.mrf.mxu0
      %v2285 = vpop.f32.mrf.mxu0
      %v2286 = vadd.f32 0.0, %v2285
      %v2287 = vpop.f32.mrf.mxu0
      %2288 = vmatprep.mubr.bf16.mxu0 0
      %2289 = vmatmul.mubr.bf16.gmra.mxu0 %v2172
      %v2290 = vpop.f32.mrf.mxu0
      %v2291 = vadd.f32 0.0, %v2290
      %v2292 = vpop.f32.mrf.mxu0
      %v2293 = vpop.f32.mrf.mxu0
      %v2294 = vadd.f32 0.0, %v2293
      %v2295 = vpop.f32.mrf.mxu0
      %2296 = vmatprep.mubr.bf16.mxu0 0
      %2297 = vmatmul.mubr.bf16.gmra.mxu0 %v2174
      %v2298 = vpop.f32.mrf.mxu0
      %v2299 = vadd.f32 0.0, %v2298
      %v2300 = vpop.f32.mrf.mxu0
      %v2301 = vpop.f32.mrf.mxu0
      %v2302 = vadd.f32 0.0, %v2301
      %v2303 = vpop.f32.mrf.mxu0
      %2304 = vmatprep.mubr.bf16.mxu0 0
      %2305 = vmatmul.mubr.bf16.gmra.mxu0 %v2176
      %v2306 = vpop.f32.mrf.mxu0
      %v2307 = vadd.f32 0.0, %v2306
      %v2308 = vpop.f32.mrf.mxu0
      %v2309 = vpop.f32.mrf.mxu0
      %v2310 = vadd.f32 0.0, %v2309
      %v2311 = vpop.f32.mrf.mxu0
      %2312 = vmatprep.mubr.bf16.mxu0 0
      %2313 = vmatmul.mubr.bf16.gmra.mxu0 %v2178
      %v2314 = vpop.f32.mrf.mxu0
      %v2315 = vadd.f32 0.0, %v2314
      %v2316 = vpop.f32.mrf.mxu0
      %v2317 = vpop.f32.mrf.mxu0
      %v2318 = vadd.f32 0.0, %v2317
      %v2319 = vpop.f32.mrf.mxu0
      %2320 = vmatprep.mubr.bf16.mxu0 0
      %2321 = vmatmul.mubr.bf16.gmra.mxu0 %v2180
      %v2322 = vpop.f32.mrf.mxu0
      %v2323 = vadd.f32 0.0, %v2322
      %v2324 = vpop.f32.mrf.mxu0
      %v2325 = vpop.f32.mrf.mxu0
      %v2326 = vadd.f32 0.0, %v2325
      %v2327 = vpop.f32.mrf.mxu0
      %2328 = vmatprep.mubr.bf16.mxu0 0
      %2329 = vmatmul.mubr.bf16.gmra.mxu0 %v2182
      %v2330 = vpop.f32.mrf.mxu0
      %v2331 = vadd.f32 0.0, %v2330
      %v2332 = vpop.f32.mrf.mxu0
      %v2333 = vpop.f32.mrf.mxu0
      %v2334 = vadd.f32 0.0, %v2333
      %v2335 = vpop.f32.mrf.mxu0
      %2336 = vmatprep.mubr.bf16.mxu0 0
      %2337 = vmatmul.mubr.bf16.gmra.mxu0 %v2184
      %v2338 = vpop.f32.mrf.mxu0
      %v2339 = vadd.f32 0.0, %v2338
      %v2340 = vpop.f32.mrf.mxu0
      %v2341 = vpop.f32.mrf.mxu0
      %v2342 = vadd.f32 0.0, %v2341
      %v2343 = vpop.f32.mrf.mxu0
      %2344 = vmatprep.mubr.bf16.mxu0 0
      %2345 = vmatmul.mubr.bf16.gmra.mxu0 %v2186
      %v2346 = vpop.f32.mrf.mxu0
      %v2347 = vadd.f32 0.0, %v2346
      %v2348 = vpop.f32.mrf.mxu0
      %v2349 = vpop.f32.mrf.mxu0
      %v2350 = vadd.f32 0.0, %v2349
      %v2351 = vpop.f32.mrf.mxu0
      %2352 = vdwg.mxu0
      %v2355 = vunpack.c.l.b16 %v172
      %v2356 = vunpack.c.l.b16 %v173
      %v2357 = vpack.c.b16 %v2356, %v2355
      %v2358 = vsel %vm2155, %v1575, 0
      %v2360 = vsel %vm2155, %v1577, 0
      %v2362 = vsel %vm2155, %v1579, 0
      %v2364 = vsel %vm2155, %v1581, 0
      %v2366 = vsel %vm2155, %v1583, 0
      %v2368 = vsel %vm2155, %v1585, 0
      %v2370 = vsel %vm2155, %v1587, 0
      %v2372 = vsel %vm2155, %v1589, 0
      %v2374 = vsel %vm2155, %v1591, 0
      %v2376 = vsel %vm2155, %v1593, 0
      %v2378 = vsel %vm2155, %v1595, 0
      %v2380 = vsel %vm2155, %v1597, 0
      %v2382 = vsel %vm2155, %v1599, 0
      %v2384 = vsel %vm2155, %v1601, 0
      %v2386 = vsel %vm2155, %v1603, 0
      %v2388 = vsel %vm2155, %v1605, 0
      %v2391 = vsel %vm2188, %v2357, 0
      %2393 = vmatprep.subr.bf16.mxu0 0
      %2394 = vmatpush1.bf16.msra.mxu0 0
      %2395 = vmatprep.subr.bf16.mxu0 0
      %2396 = vmatpush1.bf16.msra.mxu0 0
      %2397 = vmatprep.subr.bf16.mxu0 0
      %2398 = vmatpush1.bf16.msra.mxu0 0
      %2399 = vmatprep.subr.bf16.mxu0 0
      %2400 = vmatpush1.bf16.msra.mxu0 0
      %2401 = vmatprep.subr.bf16.mxu0 0
      %2402 = vmatpush1.bf16.msra.mxu0 0
      %2403 = vmatprep.subr.bf16.mxu0 0
      %2404 = vmatpush1.bf16.msra.mxu0 0
      %2405 = vmatprep.subr.bf16.mxu0 0
      %2406 = vmatpush1.bf16.msra.mxu0 0
      %2407 = vmatprep.subr.bf16.mxu0 0
      %2408 = vmatpush1.bf16.msra.mxu0 %v2391
      %2409 = vmatprep.subr.bf16.mxu0 0
      %2410 = vmatpush2.bf16.msra.mxu0 0
      %2411 = vmatprep.subr.bf16.mxu0 0
      %2412 = vmatpush2.bf16.msra.mxu0 0
      %2413 = vmatprep.subr.bf16.mxu0 0
      %2414 = vmatpush2.bf16.msra.mxu0 0
      %2415 = vmatprep.subr.bf16.mxu0 0
      %2416 = vmatpush2.bf16.msra.mxu0 0
      %2417 = vmatprep.subr.bf16.mxu0 0
      %2418 = vmatpush2.bf16.msra.mxu0 0
      %2419 = vmatprep.subr.bf16.mxu0 0
      %2420 = vmatpush2.bf16.msra.mxu0 0
      %2421 = vmatprep.subr.bf16.mxu0 0
      %2422 = vmatpush2.bf16.msra.mxu0 0
      %2423 = vmatprep.subr.bf16.mxu0 0
      %2424 = vmatpush2.bf16.msra.mxu0 0
      %2425 = vmatprep.mubr.bf16.mxu0 0
      %2426 = vmatmul.mubr.bf16.gmra.mxu0 %v2358
      %v2427 = vpop.f32.mrf.mxu0
      %v2428 = vadd.f32 %v2227, %v2427
      %v2429 = vpop.f32.mrf.mxu0
      %v2430 = vpop.f32.mrf.mxu0
      %v2431 = vadd.f32 %v2230, %v2430
      %v2432 = vpop.f32.mrf.mxu0
      %2433 = vmatprep.mubr.bf16.mxu0 0
      %2434 = vmatmul.mubr.bf16.gmra.mxu0 %v2360
      %v2435 = vpop.f32.mrf.mxu0
      %v2436 = vadd.f32 %v2235, %v2435
      %v2437 = vpop.f32.mrf.mxu0
      %v2438 = vpop.f32.mrf.mxu0
      %v2439 = vadd.f32 %v2238, %v2438
      %v2440 = vpop.f32.mrf.mxu0
      %2441 = vmatprep.mubr.bf16.mxu0 0
      %2442 = vmatmul.mubr.bf16.gmra.mxu0 %v2362
      %v2443 = vpop.f32.mrf.mxu0
      %v2444 = vadd.f32 %v2243, %v2443
      %v2445 = vpop.f32.mrf.mxu0
      %v2446 = vpop.f32.mrf.mxu0
      %v2447 = vadd.f32 %v2246, %v2446
      %v2448 = vpop.f32.mrf.mxu0
      %2449 = vmatprep.mubr.bf16.mxu0 0
      %2450 = vmatmul.mubr.bf16.gmra.mxu0 %v2364
      %v2451 = vpop.f32.mrf.mxu0
      %v2452 = vadd.f32 %v2251, %v2451
      %v2453 = vpop.f32.mrf.mxu0
      %v2454 = vpop.f32.mrf.mxu0
      %v2455 = vadd.f32 %v2254, %v2454
      %v2456 = vpop.f32.mrf.mxu0
      %2457 = vmatprep.mubr.bf16.mxu0 0
      %2458 = vmatmul.mubr.bf16.gmra.mxu0 %v2366
      %v2459 = vpop.f32.mrf.mxu0
      %v2460 = vadd.f32 %v2259, %v2459
      %v2461 = vpop.f32.mrf.mxu0
      %v2462 = vpop.f32.mrf.mxu0
      %v2463 = vadd.f32 %v2262, %v2462
      %v2464 = vpop.f32.mrf.mxu0
      %2465 = vmatprep.mubr.bf16.mxu0 0
      %2466 = vmatmul.mubr.bf16.gmra.mxu0 %v2368
      %v2467 = vpop.f32.mrf.mxu0
      %v2468 = vadd.f32 %v2267, %v2467
      %v2469 = vpop.f32.mrf.mxu0
      %v2470 = vpop.f32.mrf.mxu0
      %v2471 = vadd.f32 %v2270, %v2470
      %v2472 = vpop.f32.mrf.mxu0
      %2473 = vmatprep.mubr.bf16.mxu0 0
      %2474 = vmatmul.mubr.bf16.gmra.mxu0 %v2370
      %v2475 = vpop.f32.mrf.mxu0
      %v2476 = vadd.f32 %v2275, %v2475
      %v2477 = vpop.f32.mrf.mxu0
      %v2478 = vpop.f32.mrf.mxu0
      %v2479 = vadd.f32 %v2278, %v2478
      %v2480 = vpop.f32.mrf.mxu0
      %2481 = vmatprep.mubr.bf16.mxu0 0
      %2482 = vmatmul.mubr.bf16.gmra.mxu0 %v2372
      %v2483 = vpop.f32.mrf.mxu0
      %v2484 = vadd.f32 %v2283, %v2483
      %v2485 = vpop.f32.mrf.mxu0
      %v2486 = vpop.f32.mrf.mxu0
      %v2487 = vadd.f32 %v2286, %v2486
      %v2488 = vpop.f32.mrf.mxu0
      %2489 = vmatprep.mubr.bf16.mxu0 0
      %2490 = vmatmul.mubr.bf16.gmra.mxu0 %v2374
      %v2491 = vpop.f32.mrf.mxu0
      %v2492 = vadd.f32 %v2291, %v2491
      %v2493 = vpop.f32.mrf.mxu0
      %v2494 = vpop.f32.mrf.mxu0
      %v2495 = vadd.f32 %v2294, %v2494
      %v2496 = vpop.f32.mrf.mxu0
      %2497 = vmatprep.mubr.bf16.mxu0 0
      %2498 = vmatmul.mubr.bf16.gmra.mxu0 %v2376
      %v2499 = vpop.f32.mrf.mxu0
      %v2500 = vadd.f32 %v2299, %v2499
      %v2501 = vpop.f32.mrf.mxu0
      %v2502 = vpop.f32.mrf.mxu0
      %v2503 = vadd.f32 %v2302, %v2502
      %v2504 = vpop.f32.mrf.mxu0
      %2505 = vmatprep.mubr.bf16.mxu0 0
      %2506 = vmatmul.mubr.bf16.gmra.mxu0 %v2378
      %v2507 = vpop.f32.mrf.mxu0
      %v2508 = vadd.f32 %v2307, %v2507
      %v2509 = vpop.f32.mrf.mxu0
      %v2510 = vpop.f32.mrf.mxu0
      %v2511 = vadd.f32 %v2310, %v2510
      %v2512 = vpop.f32.mrf.mxu0
      %2513 = vmatprep.mubr.bf16.mxu0 0
      %2514 = vmatmul.mubr.bf16.gmra.mxu0 %v2380
      %v2515 = vpop.f32.mrf.mxu0
      %v2516 = vadd.f32 %v2315, %v2515
      %v2517 = vpop.f32.mrf.mxu0
      %v2518 = vpop.f32.mrf.mxu0
      %v2519 = vadd.f32 %v2318, %v2518
      %v2520 = vpop.f32.mrf.mxu0
      %2521 = vmatprep.mubr.bf16.mxu0 0
      %2522 = vmatmul.mubr.bf16.gmra.mxu0 %v2382
      %v2523 = vpop.f32.mrf.mxu0
      %v2524 = vadd.f32 %v2323, %v2523
      %v2525 = vpop.f32.mrf.mxu0
      %v2526 = vpop.f32.mrf.mxu0
      %v2527 = vadd.f32 %v2326, %v2526
      %v2528 = vpop.f32.mrf.mxu0
      %2529 = vmatprep.mubr.bf16.mxu0 0
      %2530 = vmatmul.mubr.bf16.gmra.mxu0 %v2384
      %v2531 = vpop.f32.mrf.mxu0
      %v2532 = vadd.f32 %v2331, %v2531
      %v2533 = vpop.f32.mrf.mxu0
      %v2534 = vpop.f32.mrf.mxu0
      %v2535 = vadd.f32 %v2334, %v2534
      %v2536 = vpop.f32.mrf.mxu0
      %2537 = vmatprep.mubr.bf16.mxu0 0
      %2538 = vmatmul.mubr.bf16.gmra.mxu0 %v2386
      %v2539 = vpop.f32.mrf.mxu0
      %v2540 = vadd.f32 %v2339, %v2539
      %v2541 = vpop.f32.mrf.mxu0
      %v2542 = vpop.f32.mrf.mxu0
      %v2543 = vadd.f32 %v2342, %v2542
      %v2544 = vpop.f32.mrf.mxu0
      %2545 = vmatprep.mubr.bf16.mxu0 0
      %2546 = vmatmul.mubr.bf16.gmra.mxu0 %v2388
      %v2547 = vpop.f32.mrf.mxu0
      %v2548 = vadd.f32 %v2347, %v2547
      %v2549 = vpop.f32.mrf.mxu0
      %v2550 = vpop.f32.mrf.mxu0
      %v2551 = vadd.f32 %v2350, %v2550
      %v2552 = vpop.f32.mrf.mxu0
      %2553 = vdwg.mxu0
      %s2554 = scalar_lea.vmem [#allocation2], 24
      %v2555 = vld [vmem:[%s2554] sm:$0xf]
      %v2556 = vld [vmem:[%s2554 + $0x4] sm:$0xf]
      %v2557 = vld [vmem:[%s2554 + $0x8] sm:$0x1]
      %v2558 = vld [vmem:[%s2554 + $0xc] sm:$0xf]
      %v2559 = vld [vmem:[%s2554 + $0x10] sm:$0xf]
      %v2560 = vld [vmem:[%s2554 + $0x14] sm:$0x1]
      %v2561 = vld [vmem:[%s2554 + $0x18] sm:$0xf]
      %v2562 = vld [vmem:[%s2554 + $0x1c] sm:$0xf]
      %v2563 = vld [vmem:[%s2554 + $0x20] sm:$0x1]
      %v2564 = vld [vmem:[%s2554 + $0x24] sm:$0xf]
      %v2565 = vld [vmem:[%s2554 + $0x28] sm:$0xf]
      %v2566 = vld [vmem:[%s2554 + $0x2c] sm:$0x1]
      %v2567 = vld [vmem:[%s2554 + $0x30] sm:$0xf]
      %v2568 = vld [vmem:[%s2554 + $0x34] sm:$0xf]
      %v2569 = vld [vmem:[%s2554 + $0x38] sm:$0x1]
      %v2570 = vld [vmem:[%s2554 + $0x3c] sm:$0xf]
      %v2571 = vld [vmem:[%s2554 + $0x40] sm:$0xf]
      %v2572 = vld [vmem:[%s2554 + $0x44] sm:$0x1]
      %v2573 = vld [vmem:[%s2554 + $0x48] sm:$0xf]
      %v2574 = vld [vmem:[%s2554 + $0x4c] sm:$0xf]
      %v2575 = vld [vmem:[%s2554 + $0x50] sm:$0x1]
      %v2576 = vld [vmem:[%s2554 + $0x54] sm:$0xf]
      %v2577 = vld [vmem:[%s2554 + $0x58] sm:$0xf]
      %v2578 = vld [vmem:[%s2554 + $0x5c] sm:$0x1]
      %v2579 = vld [vmem:[%s2554 + $0x60] sm:$0xf]
      %v2580 = vld [vmem:[%s2554 + $0x64] sm:$0xf]
      %v2581 = vld [vmem:[%s2554 + $0x68] sm:$0x1]
      %v2582 = vld [vmem:[%s2554 + $0x6c] sm:$0xf]
      %v2583 = vld [vmem:[%s2554 + $0x70] sm:$0xf]
      %v2584 = vld [vmem:[%s2554 + $0x74] sm:$0x1]
      %v2585 = vld [vmem:[%s2554 + $0x78] sm:$0xf]
      %v2586 = vld [vmem:[%s2554 + $0x7c] sm:$0xf]
      %v2587 = vld [vmem:[%s2554 + $0x80] sm:$0x1]
      %v2588 = vld [vmem:[%s2554 + $0x84] sm:$0xf]
      %v2589 = vld [vmem:[%s2554 + $0x88] sm:$0xf]
      %v2590 = vld [vmem:[%s2554 + $0x8c] sm:$0x1]
      %v2591 = vld [vmem:[%s2554 + $0x90] sm:$0xf]
      %v2592 = vld [vmem:[%s2554 + $0x94] sm:$0xf]
      %v2593 = vld [vmem:[%s2554 + $0x98] sm:$0x1]
      %v2594 = vld [vmem:[%s2554 + $0x9c] sm:$0xf]
      %v2595 = vld [vmem:[%s2554 + $0xa0] sm:$0xf]
      %v2596 = vld [vmem:[%s2554 + $0xa4] sm:$0x1]
      %v2597 = vld [vmem:[%s2554 + $0xa8] sm:$0xf]
      %v2598 = vld [vmem:[%s2554 + $0xac] sm:$0xf]
      %v2599 = vld [vmem:[%s2554 + $0xb0] sm:$0x1]
      %v2600 = vld [vmem:[%s2554 + $0xb4] sm:$0xf]
      %v2601 = vld [vmem:[%s2554 + $0xb8] sm:$0xf]
      %v2602 = vld [vmem:[%s2554 + $0xbc] sm:$0x1]
      %v2635 = vunpack.c.l.b16 %v2555
      %v2636 = vunpack.c.l.b16 %v2556
      %v2637 = vunpack.c.l.b16 %v2558
      %v2638 = vunpack.c.l.b16 %v2559
      %v2639 = vunpack.c.l.b16 %v2561
      %v2640 = vunpack.c.l.b16 %v2562
      %v2641 = vunpack.c.l.b16 %v2564
      %v2642 = vunpack.c.l.b16 %v2565
      %v2643 = vunpack.c.l.b16 %v2567
      %v2644 = vunpack.c.l.b16 %v2568
      %v2645 = vunpack.c.l.b16 %v2570
      %v2646 = vunpack.c.l.b16 %v2571
      %v2647 = vunpack.c.l.b16 %v2573
      %v2648 = vunpack.c.l.b16 %v2574
      %v2649 = vunpack.c.l.b16 %v2576
      %v2650 = vunpack.c.l.b16 %v2577
      %v2651 = vunpack.c.l.b16 %v2579
      %v2652 = vunpack.c.l.b16 %v2580
      %v2653 = vunpack.c.l.b16 %v2582
      %v2654 = vunpack.c.l.b16 %v2583
      %v2655 = vunpack.c.l.b16 %v2585
      %v2656 = vunpack.c.l.b16 %v2586
      %v2657 = vunpack.c.l.b16 %v2588
      %v2658 = vunpack.c.l.b16 %v2589
      %v2659 = vunpack.c.l.b16 %v2591
      %v2660 = vunpack.c.l.b16 %v2592
      %v2661 = vunpack.c.l.b16 %v2594
      %v2662 = vunpack.c.l.b16 %v2595
      %v2663 = vunpack.c.l.b16 %v2597
      %v2664 = vunpack.c.l.b16 %v2598
      %v2665 = vunpack.c.l.b16 %v2600
      %v2666 = vunpack.c.l.b16 %v2601
      %v2667 = vpack.c.b16 %v2636, %v2635
      %v2668 = vpack.c.b16 %v2638, %v2637
      %v2669 = vpack.c.b16 %v2640, %v2639
      %v2670 = vpack.c.b16 %v2642, %v2641
      %v2671 = vpack.c.b16 %v2644, %v2643
      %v2672 = vpack.c.b16 %v2646, %v2645
      %v2673 = vpack.c.b16 %v2648, %v2647
      %v2674 = vpack.c.b16 %v2650, %v2649
      %v2675 = vpack.c.b16 %v2652, %v2651
      %v2676 = vpack.c.b16 %v2654, %v2653
      %v2677 = vpack.c.b16 %v2656, %v2655
      %v2678 = vpack.c.b16 %v2658, %v2657
      %v2679 = vpack.c.b16 %v2660, %v2659
      %v2680 = vpack.c.b16 %v2662, %v2661
      %v2681 = vpack.c.b16 %v2664, %v2663
      %v2682 = vpack.c.b16 %v2666, %v2665
      %v2699 = vunpack.c.l.b16 %v2557
      %v2700 = vunpack.c.l.b16 %v2560
      %v2701 = vunpack.c.l.b16 %v2563
      %v2702 = vunpack.c.l.b16 %v2566
      %v2703 = vunpack.c.l.b16 %v2569
      %v2704 = vunpack.c.l.b16 %v2572
      %v2705 = vunpack.c.l.b16 %v2575
      %v2706 = vunpack.c.l.b16 %v2578
      %v2707 = vunpack.c.l.b16 %v2581
      %v2708 = vunpack.c.l.b16 %v2584
      %v2709 = vunpack.c.l.b16 %v2587
      %v2710 = vunpack.c.l.b16 %v2590
      %v2711 = vunpack.c.l.b16 %v2593
      %v2712 = vunpack.c.l.b16 %v2596
      %v2713 = vunpack.c.l.b16 %v2599
      %v2714 = vunpack.c.l.b16 %v2602
      %v2715 = vpack.c.b16 %v2699, %v2699
      %v2716 = vpack.c.b16 %v2700, %v2700
      %v2717 = vpack.c.b16 %v2701, %v2701
      %v2718 = vpack.c.b16 %v2702, %v2702
      %v2719 = vpack.c.b16 %v2703, %v2703
      %v2720 = vpack.c.b16 %v2704, %v2704
      %v2721 = vpack.c.b16 %v2705, %v2705
      %v2722 = vpack.c.b16 %v2706, %v2706
      %v2723 = vpack.c.b16 %v2707, %v2707
      %v2724 = vpack.c.b16 %v2708, %v2708
      %v2725 = vpack.c.b16 %v2709, %v2709
      %v2726 = vpack.c.b16 %v2710, %v2710
      %v2727 = vpack.c.b16 %v2711, %v2711
      %v2728 = vpack.c.b16 %v2712, %v2712
      %v2729 = vpack.c.b16 %v2713, %v2713
      %v2730 = vpack.c.b16 %v2714, %v2714
      %v2732 = vshrl.u32 %v2667, 16
      %v2734 = vshll.u32 %v2667, 16
      %v2736 = vrot.slane %v2734, 1
      %v2737 = vor.u32 %v2732, %v2736
      %v2739 = vshll.u32 %v2715, 16
      %v2741 = vrot.slane %v2739, 1
      %v2742 = vsel %vm1234, %v2737, %v2741
      %v2744 = vshrl.u32 %v2668, 16
      %v2746 = vshll.u32 %v2668, 16
      %v2748 = vrot.slane %v2746, 1
      %v2749 = vor.u32 %v2744, %v2748
      %v2751 = vshll.u32 %v2716, 16
      %v2753 = vrot.slane %v2751, 1
      %v2754 = vsel %vm1234, %v2749, %v2753
      %v2756 = vshrl.u32 %v2669, 16
      %v2758 = vshll.u32 %v2669, 16
      %v2760 = vrot.slane %v2758, 1
      %v2761 = vor.u32 %v2756, %v2760
      %v2763 = vshll.u32 %v2717, 16
      %v2765 = vrot.slane %v2763, 1
      %v2766 = vsel %vm1234, %v2761, %v2765
      %v2768 = vshrl.u32 %v2670, 16
      %v2770 = vshll.u32 %v2670, 16
      %v2772 = vrot.slane %v2770, 1
      %v2773 = vor.u32 %v2768, %v2772
      %v2775 = vshll.u32 %v2718, 16
      %v2777 = vrot.slane %v2775, 1
      %v2778 = vsel %vm1234, %v2773, %v2777
      %v2780 = vshrl.u32 %v2671, 16
      %v2782 = vshll.u32 %v2671, 16
      %v2784 = vrot.slane %v2782, 1
      %v2785 = vor.u32 %v2780, %v2784
      %v2787 = vshll.u32 %v2719, 16
      %v2789 = vrot.slane %v2787, 1
      %v2790 = vsel %vm1234, %v2785, %v2789
      %v2792 = vshrl.u32 %v2672, 16
      %v2794 = vshll.u32 %v2672, 16
      %v2796 = vrot.slane %v2794, 1
      %v2797 = vor.u32 %v2792, %v2796
      %v2799 = vshll.u32 %v2720, 16
      %v2801 = vrot.slane %v2799, 1
      %v2802 = vsel %vm1234, %v2797, %v2801
      %v2804 = vshrl.u32 %v2673, 16
      %v2806 = vshll.u32 %v2673, 16
      %v2808 = vrot.slane %v2806, 1
      %v2809 = vor.u32 %v2804, %v2808
      %v2811 = vshll.u32 %v2721, 16
      %v2813 = vrot.slane %v2811, 1
      %v2814 = vsel %vm1234, %v2809, %v2813
      %v2816 = vshrl.u32 %v2674, 16
      %v2818 = vshll.u32 %v2674, 16
      %v2820 = vrot.slane %v2818, 1
      %v2821 = vor.u32 %v2816, %v2820
      %v2823 = vshll.u32 %v2722, 16
      %v2825 = vrot.slane %v2823, 1
      %v2826 = vsel %vm1234, %v2821, %v2825
      %v2828 = vshrl.u32 %v2675, 16
      %v2830 = vshll.u32 %v2675, 16
      %v2832 = vrot.slane %v2830, 1
      %v2833 = vor.u32 %v2828, %v2832
      %v2835 = vshll.u32 %v2723, 16
      %v2837 = vrot.slane %v2835, 1
      %v2838 = vsel %vm1234, %v2833, %v2837
      %v2840 = vshrl.u32 %v2676, 16
      %v2842 = vshll.u32 %v2676, 16
      %v2844 = vrot.slane %v2842, 1
      %v2845 = vor.u32 %v2840, %v2844
      %v2847 = vshll.u32 %v2724, 16
      %v2849 = vrot.slane %v2847, 1
      %v2850 = vsel %vm1234, %v2845, %v2849
      %v2852 = vshrl.u32 %v2677, 16
      %v2854 = vshll.u32 %v2677, 16
      %v2856 = vrot.slane %v2854, 1
      %v2857 = vor.u32 %v2852, %v2856
      %v2859 = vshll.u32 %v2725, 16
      %v2861 = vrot.slane %v2859, 1
      %v2862 = vsel %vm1234, %v2857, %v2861
      %v2864 = vshrl.u32 %v2678, 16
      %v2866 = vshll.u32 %v2678, 16
      %v2868 = vrot.slane %v2866, 1
      %v2869 = vor.u32 %v2864, %v2868
      %v2871 = vshll.u32 %v2726, 16
      %v2873 = vrot.slane %v2871, 1
      %v2874 = vsel %vm1234, %v2869, %v2873
      %v2876 = vshrl.u32 %v2679, 16
      %v2878 = vshll.u32 %v2679, 16
      %v2880 = vrot.slane %v2878, 1
      %v2881 = vor.u32 %v2876, %v2880
      %v2883 = vshll.u32 %v2727, 16
      %v2885 = vrot.slane %v2883, 1
      %v2886 = vsel %vm1234, %v2881, %v2885
      %v2888 = vshrl.u32 %v2680, 16
      %v2890 = vshll.u32 %v2680, 16
      %v2892 = vrot.slane %v2890, 1
      %v2893 = vor.u32 %v2888, %v2892
      %v2895 = vshll.u32 %v2728, 16
      %v2897 = vrot.slane %v2895, 1
      %v2898 = vsel %vm1234, %v2893, %v2897
      %v2900 = vshrl.u32 %v2681, 16
      %v2902 = vshll.u32 %v2681, 16
      %v2904 = vrot.slane %v2902, 1
      %v2905 = vor.u32 %v2900, %v2904
      %v2907 = vshll.u32 %v2729, 16
      %v2909 = vrot.slane %v2907, 1
      %v2910 = vsel %vm1234, %v2905, %v2909
      %v2912 = vshrl.u32 %v2682, 16
      %v2914 = vshll.u32 %v2682, 16
      %v2916 = vrot.slane %v2914, 1
      %v2917 = vor.u32 %v2912, %v2916
      %v2919 = vshll.u32 %v2730, 16
      %v2921 = vrot.slane %v2919, 1
      %v2922 = vsel %vm1234, %v2917, %v2921
      %2923 = vrot.lane.b32.xlu0 %v2742, 4
      %v2924 = vpop.permute.xlu0 %2923
      %2925 = vrot.lane.b32.xlu0 %v2754, 4
      %v2926 = vpop.permute.xlu0 %2925
      %2927 = vrot.lane.b32.xlu0 %v2766, 4
      %v2928 = vpop.permute.xlu0 %2927
      %2929 = vrot.lane.b32.xlu0 %v2778, 4
      %v2930 = vpop.permute.xlu0 %2929
      %2931 = vrot.lane.b32.xlu0 %v2790, 4
      %v2932 = vpop.permute.xlu0 %2931
      %2933 = vrot.lane.b32.xlu0 %v2802, 4
      %v2934 = vpop.permute.xlu0 %2933
      %2935 = vrot.lane.b32.xlu0 %v2814, 4
      %v2936 = vpop.permute.xlu0 %2935
      %2937 = vrot.lane.b32.xlu0 %v2826, 4
      %v2938 = vpop.permute.xlu0 %2937
      %2939 = vrot.lane.b32.xlu0 %v2838, 4
      %v2940 = vpop.permute.xlu0 %2939
      %2941 = vrot.lane.b32.xlu0 %v2850, 4
      %v2942 = vpop.permute.xlu0 %2941
      %2943 = vrot.lane.b32.xlu0 %v2862, 4
      %v2944 = vpop.permute.xlu0 %2943
      %2945 = vrot.lane.b32.xlu0 %v2874, 4
      %v2946 = vpop.permute.xlu0 %2945
      %2947 = vrot.lane.b32.xlu0 %v2886, 4
      %v2948 = vpop.permute.xlu0 %2947
      %2949 = vrot.lane.b32.xlu0 %v2898, 4
      %v2950 = vpop.permute.xlu0 %2949
      %2951 = vrot.lane.b32.xlu0 %v2910, 4
      %v2952 = vpop.permute.xlu0 %2951
      %2953 = vrot.lane.b32.xlu0 %v2922, 4
      %v2954 = vpop.permute.xlu0 %2953
      %v2955 = vrot.slane %v2667, 1
      %v2956 = vrot.slane %v2715, 1
      %v2957 = vsel %vm1459, %v2955, %v2956
      %v2958 = vrot.slane %v2668, 1
      %v2959 = vrot.slane %v2716, 1
      %v2960 = vsel %vm1459, %v2958, %v2959
      %v2961 = vrot.slane %v2669, 1
      %v2962 = vrot.slane %v2717, 1
      %v2963 = vsel %vm1459, %v2961, %v2962
      %v2964 = vrot.slane %v2670, 1
      %v2965 = vrot.slane %v2718, 1
      %v2966 = vsel %vm1459, %v2964, %v2965
      %v2967 = vrot.slane %v2671, 1
      %v2968 = vrot.slane %v2719, 1
      %v2969 = vsel %vm1459, %v2967, %v2968
      %v2970 = vrot.slane %v2672, 1
      %v2971 = vrot.slane %v2720, 1
      %v2972 = vsel %vm1459, %v2970, %v2971
      %v2973 = vrot.slane %v2673, 1
      %v2974 = vrot.slane %v2721, 1
      %v2975 = vsel %vm1459, %v2973, %v2974
      %v2976 = vrot.slane %v2674, 1
      %v2977 = vrot.slane %v2722, 1
      %v2978 = vsel %vm1459, %v2976, %v2977
      %v2979 = vrot.slane %v2675, 1
      %v2980 = vrot.slane %v2723, 1
      %v2981 = vsel %vm1459, %v2979, %v2980
      %v2982 = vrot.slane %v2676, 1
      %v2983 = vrot.slane %v2724, 1
      %v2984 = vsel %vm1459, %v2982, %v2983
      %v2985 = vrot.slane %v2677, 1
      %v2986 = vrot.slane %v2725, 1
      %v2987 = vsel %vm1459, %v2985, %v2986
      %v2988 = vrot.slane %v2678, 1
      %v2989 = vrot.slane %v2726, 1
      %v2990 = vsel %vm1459, %v2988, %v2989
      %v2991 = vrot.slane %v2679, 1
      %v2992 = vrot.slane %v2727, 1
      %v2993 = vsel %vm1459, %v2991, %v2992
      %v2994 = vrot.slane %v2680, 1
      %v2995 = vrot.slane %v2728, 1
      %v2996 = vsel %vm1459, %v2994, %v2995
      %v2997 = vrot.slane %v2681, 1
      %v2998 = vrot.slane %v2729, 1
      %v2999 = vsel %vm1459, %v2997, %v2998
      %v3000 = vrot.slane %v2682, 1
      %v3001 = vrot.slane %v2730, 1
      %v3002 = vsel %vm1459, %v3000, %v3001
      %3003 = vrot.lane.b32.xlu0 %v2957, 8
      %v3004 = vpop.permute.xlu0 %3003
      %3005 = vrot.lane.b32.xlu0 %v2960, 8
      %v3006 = vpop.permute.xlu0 %3005
      %3007 = vrot.lane.b32.xlu0 %v2963, 8
      %v3008 = vpop.permute.xlu0 %3007
      %3009 = vrot.lane.b32.xlu0 %v2966, 8
      %v3010 = vpop.permute.xlu0 %3009
      %3011 = vrot.lane.b32.xlu0 %v2969, 8
      %v3012 = vpop.permute.xlu0 %3011
      %3013 = vrot.lane.b32.xlu0 %v2972, 8
      %v3014 = vpop.permute.xlu0 %3013
      %3015 = vrot.lane.b32.xlu0 %v2975, 8
      %v3016 = vpop.permute.xlu0 %3015
      %3017 = vrot.lane.b32.xlu0 %v2978, 8
      %v3018 = vpop.permute.xlu0 %3017
      %3019 = vrot.lane.b32.xlu0 %v2981, 8
      %v3020 = vpop.permute.xlu0 %3019
      %3021 = vrot.lane.b32.xlu0 %v2984, 8
      %v3022 = vpop.permute.xlu0 %3021
      %3023 = vrot.lane.b32.xlu0 %v2987, 8
      %v3024 = vpop.permute.xlu0 %3023
      %3025 = vrot.lane.b32.xlu0 %v2990, 8
      %v3026 = vpop.permute.xlu0 %3025
      %3027 = vrot.lane.b32.xlu0 %v2993, 8
      %v3028 = vpop.permute.xlu0 %3027
      %3029 = vrot.lane.b32.xlu0 %v2996, 8
      %v3030 = vpop.permute.xlu0 %3029
      %3031 = vrot.lane.b32.xlu0 %v2999, 8
      %v3032 = vpop.permute.xlu0 %3031
      %3033 = vrot.lane.b32.xlu0 %v3002, 8
      %v3034 = vpop.permute.xlu0 %3033
      %v3036 = vsel %vm1540, %v2667, %v2924
      %v3038 = vsel %vm1540, %v2668, %v2926
      %v3040 = vsel %vm1540, %v2669, %v2928
      %v3042 = vsel %vm1540, %v2670, %v2930
      %v3044 = vsel %vm1540, %v2671, %v2932
      %v3046 = vsel %vm1540, %v2672, %v2934
      %v3048 = vsel %vm1540, %v2673, %v2936
      %v3050 = vsel %vm1540, %v2674, %v2938
      %v3052 = vsel %vm1540, %v2675, %v2940
      %v3054 = vsel %vm1540, %v2676, %v2942
      %v3056 = vsel %vm1540, %v2677, %v2944
      %v3058 = vsel %vm1540, %v2678, %v2946
      %v3060 = vsel %vm1540, %v2679, %v2948
      %v3062 = vsel %vm1540, %v2680, %v2950
      %v3064 = vsel %vm1540, %v2681, %v2952
      %v3066 = vsel %vm1540, %v2682, %v2954
      %v3068 = vsel %vm1573, %v3036, %v3004
      %v3070 = vsel %vm1573, %v3038, %v3006
      %v3072 = vsel %vm1573, %v3040, %v3008
      %v3074 = vsel %vm1573, %v3042, %v3010
      %v3076 = vsel %vm1573, %v3044, %v3012
      %v3078 = vsel %vm1573, %v3046, %v3014
      %v3080 = vsel %vm1573, %v3048, %v3016
      %v3082 = vsel %vm1573, %v3050, %v3018
      %v3084 = vsel %vm1573, %v3052, %v3020
      %v3086 = vsel %vm1573, %v3054, %v3022
      %v3088 = vsel %vm1573, %v3056, %v3024
      %v3090 = vsel %vm1573, %v3058, %v3026
      %v3092 = vsel %vm1573, %v3060, %v3028
      %v3094 = vsel %vm1573, %v3062, %v3030
      %v3096 = vsel %vm1573, %v3064, %v3032
      %v3098 = vsel %vm1573, %v3066, %v3034
      %v3101 = vunpack.c.l.b16 %v176
      %v3102 = vunpack.c.l.b16 %v177
      %v3103 = vpack.c.b16 %v3102, %v3101
      %v3104 = vsel %vm2155, %v3068, 0
      %v3106 = vsel %vm2155, %v3070, 0
      %v3108 = vsel %vm2155, %v3072, 0
      %v3110 = vsel %vm2155, %v3074, 0
      %v3112 = vsel %vm2155, %v3076, 0
      %v3114 = vsel %vm2155, %v3078, 0
      %v3116 = vsel %vm2155, %v3080, 0
      %v3118 = vsel %vm2155, %v3082, 0
      %v3120 = vsel %vm2155, %v3084, 0
      %v3122 = vsel %vm2155, %v3086, 0
      %v3124 = vsel %vm2155, %v3088, 0
      %v3126 = vsel %vm2155, %v3090, 0
      %v3128 = vsel %vm2155, %v3092, 0
      %v3130 = vsel %vm2155, %v3094, 0
      %v3132 = vsel %vm2155, %v3096, 0
      %v3134 = vsel %vm2155, %v3098, 0
      %v3137 = vsel %vm2188, %v3103, 0
      %3139 = vmatprep.subr.bf16.mxu0 0
      %3140 = vmatpush1.bf16.msra.mxu0 0
      %3141 = vmatprep.subr.bf16.mxu0 0
      %3142 = vmatpush1.bf16.msra.mxu0 0
      %3143 = vmatprep.subr.bf16.mxu0 0
      %3144 = vmatpush1.bf16.msra.mxu0 0
      %3145 = vmatprep.subr.bf16.mxu0 0
      %3146 = vmatpush1.bf16.msra.mxu0 0
      %3147 = vmatprep.subr.bf16.mxu0 0
      %3148 = vmatpush1.bf16.msra.mxu0 0
      %3149 = vmatprep.subr.bf16.mxu0 0
      %3150 = vmatpush1.bf16.msra.mxu0 0
      %3151 = vmatprep.subr.bf16.mxu0 0
      %3152 = vmatpush1.bf16.msra.mxu0 0
      %3153 = vmatprep.subr.bf16.mxu0 0
      %3154 = vmatpush1.bf16.msra.mxu0 %v3137
      %3155 = vmatprep.subr.bf16.mxu0 0
      %3156 = vmatpush2.bf16.msra.mxu0 0
      %3157 = vmatprep.subr.bf16.mxu0 0
      %3158 = vmatpush2.bf16.msra.mxu0 0
      %3159 = vmatprep.subr.bf16.mxu0 0
      %3160 = vmatpush2.bf16.msra.mxu0 0
      %3161 = vmatprep.subr.bf16.mxu0 0
      %3162 = vmatpush2.bf16.msra.mxu0 0
      %3163 = vmatprep.subr.bf16.mxu0 0
      %3164 = vmatpush2.bf16.msra.mxu0 0
      %3165 = vmatprep.subr.bf16.mxu0 0
      %3166 = vmatpush2.bf16.msra.mxu0 0
      %3167 = vmatprep.subr.bf16.mxu0 0
      %3168 = vmatpush2.bf16.msra.mxu0 0
      %3169 = vmatprep.subr.bf16.mxu0 0
      %3170 = vmatpush2.bf16.msra.mxu0 0
      %3171 = vmatprep.mubr.bf16.mxu0 0
      %3172 = vmatmul.mubr.bf16.gmra.mxu0 %v3104
      %v3173 = vpop.f32.mrf.mxu0
      %v3174 = vadd.f32 0.0, %v3173
      %v3175 = vpop.f32.mrf.mxu0
      %v3176 = vpop.f32.mrf.mxu0
      %v3177 = vadd.f32 0.0, %v3176
      %v3178 = vpop.f32.mrf.mxu0
      %3179 = vmatprep.mubr.bf16.mxu0 0
      %3180 = vmatmul.mubr.bf16.gmra.mxu0 %v3106
      %v3181 = vpop.f32.mrf.mxu0
      %v3182 = vadd.f32 0.0, %v3181
      %v3183 = vpop.f32.mrf.mxu0
      %v3184 = vpop.f32.mrf.mxu0
      %v3185 = vadd.f32 0.0, %v3184
      %v3186 = vpop.f32.mrf.mxu0
      %3187 = vmatprep.mubr.bf16.mxu0 0
      %3188 = vmatmul.mubr.bf16.gmra.mxu0 %v3108
      %v3189 = vpop.f32.mrf.mxu0
      %v3190 = vadd.f32 0.0, %v3189
      %v3191 = vpop.f32.mrf.mxu0
      %v3192 = vpop.f32.mrf.mxu0
      %v3193 = vadd.f32 0.0, %v3192
      %v3194 = vpop.f32.mrf.mxu0
      %3195 = vmatprep.mubr.bf16.mxu0 0
      %3196 = vmatmul.mubr.bf16.gmra.mxu0 %v3110
      %v3197 = vpop.f32.mrf.mxu0
      %v3198 = vadd.f32 0.0, %v3197
      %v3199 = vpop.f32.mrf.mxu0
      %v3200 = vpop.f32.mrf.mxu0
      %v3201 = vadd.f32 0.0, %v3200
      %v3202 = vpop.f32.mrf.mxu0
      %3203 = vmatprep.mubr.bf16.mxu0 0
      %3204 = vmatmul.mubr.bf16.gmra.mxu0 %v3112
      %v3205 = vpop.f32.mrf.mxu0
      %v3206 = vadd.f32 0.0, %v3205
      %v3207 = vpop.f32.mrf.mxu0
      %v3208 = vpop.f32.mrf.mxu0
      %v3209 = vadd.f32 0.0, %v3208
      %v3210 = vpop.f32.mrf.mxu0
      %3211 = vmatprep.mubr.bf16.mxu0 0
      %3212 = vmatmul.mubr.bf16.gmra.mxu0 %v3114
      %v3213 = vpop.f32.mrf.mxu0
      %v3214 = vadd.f32 0.0, %v3213
      %v3215 = vpop.f32.mrf.mxu0
      %v3216 = vpop.f32.mrf.mxu0
      %v3217 = vadd.f32 0.0, %v3216
      %v3218 = vpop.f32.mrf.mxu0
      %3219 = vmatprep.mubr.bf16.mxu0 0
      %3220 = vmatmul.mubr.bf16.gmra.mxu0 %v3116
      %v3221 = vpop.f32.mrf.mxu0
      %v3222 = vadd.f32 0.0, %v3221
      %v3223 = vpop.f32.mrf.mxu0
      %v3224 = vpop.f32.mrf.mxu0
      %v3225 = vadd.f32 0.0, %v3224
      %v3226 = vpop.f32.mrf.mxu0
      %3227 = vmatprep.mubr.bf16.mxu0 0
      %3228 = vmatmul.mubr.bf16.gmra.mxu0 %v3118
      %v3229 = vpop.f32.mrf.mxu0
      %v3230 = vadd.f32 0.0, %v3229
      %v3231 = vpop.f32.mrf.mxu0
      %v3232 = vpop.f32.mrf.mxu0
      %v3233 = vadd.f32 0.0, %v3232
      %v3234 = vpop.f32.mrf.mxu0
      %3235 = vmatprep.mubr.bf16.mxu0 0
      %3236 = vmatmul.mubr.bf16.gmra.mxu0 %v3120
      %v3237 = vpop.f32.mrf.mxu0
      %v3238 = vadd.f32 0.0, %v3237
      %v3239 = vpop.f32.mrf.mxu0
      %v3240 = vpop.f32.mrf.mxu0
      %v3241 = vadd.f32 0.0, %v3240
      %v3242 = vpop.f32.mrf.mxu0
      %3243 = vmatprep.mubr.bf16.mxu0 0
      %3244 = vmatmul.mubr.bf16.gmra.mxu0 %v3122
      %v3245 = vpop.f32.mrf.mxu0
      %v3246 = vadd.f32 0.0, %v3245
      %v3247 = vpop.f32.mrf.mxu0
      %v3248 = vpop.f32.mrf.mxu0
      %v3249 = vadd.f32 0.0, %v3248
      %v3250 = vpop.f32.mrf.mxu0
      %3251 = vmatprep.mubr.bf16.mxu0 0
      %3252 = vmatmul.mubr.bf16.gmra.mxu0 %v3124
      %v3253 = vpop.f32.mrf.mxu0
      %v3254 = vadd.f32 0.0, %v3253
      %v3255 = vpop.f32.mrf.mxu0
      %v3256 = vpop.f32.mrf.mxu0
      %v3257 = vadd.f32 0.0, %v3256
      %v3258 = vpop.f32.mrf.mxu0
      %3259 = vmatprep.mubr.bf16.mxu0 0
      %3260 = vmatmul.mubr.bf16.gmra.mxu0 %v3126
      %v3261 = vpop.f32.mrf.mxu0
      %v3262 = vadd.f32 0.0, %v3261
      %v3263 = vpop.f32.mrf.mxu0
      %v3264 = vpop.f32.mrf.mxu0
      %v3265 = vadd.f32 0.0, %v3264
      %v3266 = vpop.f32.mrf.mxu0
      %3267 = vmatprep.mubr.bf16.mxu0 0
      %3268 = vmatmul.mubr.bf16.gmra.mxu0 %v3128
      %v3269 = vpop.f32.mrf.mxu0
      %v3270 = vadd.f32 0.0, %v3269
      %v3271 = vpop.f32.mrf.mxu0
      %v3272 = vpop.f32.mrf.mxu0
      %v3273 = vadd.f32 0.0, %v3272
      %v3274 = vpop.f32.mrf.mxu0
      %3275 = vmatprep.mubr.bf16.mxu0 0
      %3276 = vmatmul.mubr.bf16.gmra.mxu0 %v3130
      %v3277 = vpop.f32.mrf.mxu0
      %v3278 = vadd.f32 0.0, %v3277
      %v3279 = vpop.f32.mrf.mxu0
      %v3280 = vpop.f32.mrf.mxu0
      %v3281 = vadd.f32 0.0, %v3280
      %v3282 = vpop.f32.mrf.mxu0
      %3283 = vmatprep.mubr.bf16.mxu0 0
      %3284 = vmatmul.mubr.bf16.gmra.mxu0 %v3132
      %v3285 = vpop.f32.mrf.mxu0
      %v3286 = vadd.f32 0.0, %v3285
      %v3287 = vpop.f32.mrf.mxu0
      %v3288 = vpop.f32.mrf.mxu0
      %v3289 = vadd.f32 0.0, %v3288
      %v3290 = vpop.f32.mrf.mxu0
      %3291 = vmatprep.mubr.bf16.mxu0 0
      %3292 = vmatmul.mubr.bf16.gmra.mxu0 %v3134
      %v3293 = vpop.f32.mrf.mxu0
      %v3294 = vadd.f32 0.0, %v3293
      %v3295 = vpop.f32.mrf.mxu0
      %v3296 = vpop.f32.mrf.mxu0
      %v3297 = vadd.f32 0.0, %v3296
      %v3298 = vpop.f32.mrf.mxu0
      %3299 = vdwg.mxu0
      %v3300 = vadd.f32 %v2428, %v3174
      %v3301 = vadd.f32 %v2431, %v3177
      %v3302 = vadd.f32 %v2436, %v3182
      %v3303 = vadd.f32 %v2439, %v3185
      %v3304 = vadd.f32 %v2444, %v3190
      %v3305 = vadd.f32 %v2447, %v3193
      %v3306 = vadd.f32 %v2452, %v3198
      %v3307 = vadd.f32 %v2455, %v3201
      %v3308 = vadd.f32 %v2460, %v3206
      %v3309 = vadd.f32 %v2463, %v3209
      %v3310 = vadd.f32 %v2468, %v3214
      %v3311 = vadd.f32 %v2471, %v3217
      %v3312 = vadd.f32 %v2476, %v3222
      %v3313 = vadd.f32 %v2479, %v3225
      %v3314 = vadd.f32 %v2484, %v3230
      %v3315 = vadd.f32 %v2487, %v3233
      %v3316 = vadd.f32 %v2492, %v3238
      %v3317 = vadd.f32 %v2495, %v3241
      %v3318 = vadd.f32 %v2500, %v3246
      %v3319 = vadd.f32 %v2503, %v3249
      %v3320 = vadd.f32 %v2508, %v3254
      %v3321 = vadd.f32 %v2511, %v3257
      %v3322 = vadd.f32 %v2516, %v3262
      %v3323 = vadd.f32 %v2519, %v3265
      %v3324 = vadd.f32 %v2524, %v3270
      %v3325 = vadd.f32 %v2527, %v3273
      %v3326 = vadd.f32 %v2532, %v3278
      %v3327 = vadd.f32 %v2535, %v3281
      %v3328 = vadd.f32 %v2540, %v3286
      %v3329 = vadd.f32 %v2543, %v3289
      %v3330 = vadd.f32 %v2548, %v3294
      %v3331 = vadd.f32 %v2551, %v3297
      %v3332 = vsel %vm1540, %v3300, 0.0
      %v3333 = vsel %vm1540, %v3301, 0.0
      %v3334 = vadd.f32 %v3332, %v3333
      %v3335 = vsel %vm1540, %v3302, 0.0
      %v3336 = vadd.f32 %v3334, %v3335
      %v3337 = vsel %vm1540, %v3303, 0.0
      %v3338 = vadd.f32 %v3336, %v3337
      %v3339 = vsel %vm1540, %v3304, 0.0
      %v3340 = vadd.f32 %v3338, %v3339
      %v3341 = vsel %vm1540, %v3305, 0.0
      %v3342 = vadd.f32 %v3340, %v3341
      %v3343 = vsel %vm1540, %v3306, 0.0
      %v3344 = vadd.f32 %v3342, %v3343
      %v3345 = vsel %vm1540, %v3307, 0.0
      %v3346 = vadd.f32 %v3344, %v3345
      %v3347 = vsel %vm1540, %v3308, 0.0
      %v3348 = vadd.f32 %v3346, %v3347
      %v3349 = vsel %vm1540, %v3309, 0.0
      %v3350 = vadd.f32 %v3348, %v3349
      %v3351 = vsel %vm1540, %v3310, 0.0
      %v3352 = vadd.f32 %v3350, %v3351
      %v3353 = vsel %vm1540, %v3311, 0.0
      %v3354 = vadd.f32 %v3352, %v3353
      %v3355 = vsel %vm1540, %v3312, 0.0
      %v3356 = vadd.f32 %v3354, %v3355
      %v3357 = vsel %vm1540, %v3313, 0.0
      %v3358 = vadd.f32 %v3356, %v3357
      %v3359 = vsel %vm1540, %v3314, 0.0
      %v3360 = vadd.f32 %v3358, %v3359
      %v3361 = vsel %vm1540, %v3315, 0.0
      %v3362 = vadd.f32 %v3360, %v3361
      %v3363 = vsel %vm1540, %v3316, 0.0
      %v3364 = vadd.f32 %v3362, %v3363
      %v3365 = vsel %vm1540, %v3317, 0.0
      %v3366 = vadd.f32 %v3364, %v3365
      %v3367 = vsel %vm1540, %v3318, 0.0
      %v3368 = vadd.f32 %v3366, %v3367
      %v3369 = vsel %vm1540, %v3319, 0.0
      %v3370 = vadd.f32 %v3368, %v3369
      %v3371 = vsel %vm1540, %v3320, 0.0
      %v3372 = vadd.f32 %v3370, %v3371
      %v3373 = vsel %vm1540, %v3321, 0.0
      %v3374 = vadd.f32 %v3372, %v3373
      %v3375 = vsel %vm1540, %v3322, 0.0
      %v3376 = vadd.f32 %v3374, %v3375
      %v3377 = vsel %vm1540, %v3323, 0.0
      %v3378 = vadd.f32 %v3376, %v3377
      %v3379 = vsel %vm1540, %v3324, 0.0
      %v3380 = vadd.f32 %v3378, %v3379
      %v3381 = vsel %vm1540, %v3325, 0.0
      %v3382 = vadd.f32 %v3380, %v3381
      %v3383 = vsel %vm1540, %v3326, 0.0
      %v3384 = vadd.f32 %v3382, %v3383
      %v3385 = vsel %vm1540, %v3327, 0.0
      %v3386 = vadd.f32 %v3384, %v3385
      %v3387 = vsel %vm1540, %v3328, 0.0
      %v3388 = vadd.f32 %v3386, %v3387
      %v3389 = vsel %vm1540, %v3329, 0.0
      %v3390 = vadd.f32 %v3388, %v3389
      %v3391 = vsel %vm1540, %v3330, 0.0
      %v3392 = vadd.f32 %v3390, %v3391
      %v3393 = vsel %vm1540, %v3331, 0.0
      %v3394 = vadd.f32 %v3392, %v3393
      %v3395 = vrot.slane %v3394, 4
      %v3396 = vadd.f32 %v3394, %v3395
      %v3397 = vrot.slane %v3396, 2
      %v3398 = vadd.f32 %v3396, %v3397
      %v3399 = vrot.slane %v3398, 1
      %v3400 = vadd.f32 %v3398, %v3399
      %v3401 = vmul.f32 %v3400, 0.00390625
      %v3402 = vmul.f32 %v3300, %v3300
      %v3403 = vmul.f32 %v3301, %v3301
      %v3404 = vmul.f32 %v3302, %v3302
      %v3405 = vmul.f32 %v3303, %v3303
      %v3406 = vmul.f32 %v3304, %v3304
      %v3407 = vmul.f32 %v3305, %v3305
      %v3408 = vmul.f32 %v3306, %v3306
      %v3409 = vmul.f32 %v3307, %v3307
      %v3410 = vmul.f32 %v3308, %v3308
      %v3411 = vmul.f32 %v3309, %v3309
      %v3412 = vmul.f32 %v3310, %v3310
      %v3413 = vmul.f32 %v3311, %v3311
      %v3414 = vmul.f32 %v3312, %v3312
      %v3415 = vmul.f32 %v3313, %v3313
      %v3416 = vmul.f32 %v3314, %v3314
      %v3417 = vmul.f32 %v3315, %v3315
      %v3418 = vmul.f32 %v3316, %v3316
      %v3419 = vmul.f32 %v3317, %v3317
      %v3420 = vmul.f32 %v3318, %v3318
      %v3421 = vmul.f32 %v3319, %v3319
      %v3422 = vmul.f32 %v3320, %v3320
      %v3423 = vmul.f32 %v3321, %v3321
      %v3424 = vmul.f32 %v3322, %v3322
      %v3425 = vmul.f32 %v3323, %v3323
      %v3426 = vmul.f32 %v3324, %v3324
      %v3427 = vmul.f32 %v3325, %v3325
      %v3428 = vmul.f32 %v3326, %v3326
      %v3429 = vmul.f32 %v3327, %v3327
      %v3430 = vmul.f32 %v3328, %v3328
      %v3431 = vmul.f32 %v3329, %v3329
      %v3432 = vmul.f32 %v3330, %v3330
      %v3433 = vmul.f32 %v3331, %v3331
      %v3434 = vsel %vm1540, %v3402, 0.0
      %v3435 = vsel %vm1540, %v3403, 0.0
      %v3436 = vadd.f32 %v3434, %v3435
      %v3437 = vsel %vm1540, %v3404, 0.0
      %v3438 = vadd.f32 %v3436, %v3437
      %v3439 = vsel %vm1540, %v3405, 0.0
      %v3440 = vadd.f32 %v3438, %v3439
      %v3441 = vsel %vm1540, %v3406, 0.0
      %v3442 = vadd.f32 %v3440, %v3441
      %v3443 = vsel %vm1540, %v3407, 0.0
      %v3444 = vadd.f32 %v3442, %v3443
      %v3445 = vsel %vm1540, %v3408, 0.0
      %v3446 = vadd.f32 %v3444, %v3445
      %v3447 = vsel %vm1540, %v3409, 0.0
      %v3448 = vadd.f32 %v3446, %v3447
      %v3449 = vsel %vm1540, %v3410, 0.0
      %v3450 = vadd.f32 %v3448, %v3449
      %v3451 = vsel %vm1540, %v3411, 0.0
      %v3452 = vadd.f32 %v3450, %v3451
      %v3453 = vsel %vm1540, %v3412, 0.0
      %v3454 = vadd.f32 %v3452, %v3453
      %v3455 = vsel %vm1540, %v3413, 0.0
      %v3456 = vadd.f32 %v3454, %v3455
      %v3457 = vsel %vm1540, %v3414, 0.0
      %v3458 = vadd.f32 %v3456, %v3457
      %v3459 = vsel %vm1540, %v3415, 0.0
      %v3460 = vadd.f32 %v3458, %v3459
      %v3461 = vsel %vm1540, %v3416, 0.0
      %v3462 = vadd.f32 %v3460, %v3461
      %v3463 = vsel %vm1540, %v3417, 0.0
      %v3464 = vadd.f32 %v3462, %v3463
      %v3465 = vsel %vm1540, %v3418, 0.0
      %v3466 = vadd.f32 %v3464, %v3465
      %v3467 = vsel %vm1540, %v3419, 0.0
      %v3468 = vadd.f32 %v3466, %v3467
      %v3469 = vsel %vm1540, %v3420, 0.0
      %v3470 = vadd.f32 %v3468, %v3469
      %v3471 = vsel %vm1540, %v3421, 0.0
      %v3472 = vadd.f32 %v3470, %v3471
      %v3473 = vsel %vm1540, %v3422, 0.0
      %v3474 = vadd.f32 %v3472, %v3473
      %v3475 = vsel %vm1540, %v3423, 0.0
      %v3476 = vadd.f32 %v3474, %v3475
      %v3477 = vsel %vm1540, %v3424, 0.0
      %v3478 = vadd.f32 %v3476, %v3477
      %v3479 = vsel %vm1540, %v3425, 0.0
      %v3480 = vadd.f32 %v3478, %v3479
      %v3481 = vsel %vm1540, %v3426, 0.0
      %v3482 = vadd.f32 %v3480, %v3481
      %v3483 = vsel %vm1540, %v3427, 0.0
      %v3484 = vadd.f32 %v3482, %v3483
      %v3485 = vsel %vm1540, %v3428, 0.0
      %v3486 = vadd.f32 %v3484, %v3485
      %v3487 = vsel %vm1540, %v3429, 0.0
      %v3488 = vadd.f32 %v3486, %v3487
      %v3489 = vsel %vm1540, %v3430, 0.0
      %v3490 = vadd.f32 %v3488, %v3489
      %v3491 = vsel %vm1540, %v3431, 0.0
      %v3492 = vadd.f32 %v3490, %v3491
      %v3493 = vsel %vm1540, %v3432, 0.0
      %v3494 = vadd.f32 %v3492, %v3493
      %v3495 = vsel %vm1540, %v3433, 0.0
      %v3496 = vadd.f32 %v3494, %v3495
      %v3497 = vrot.slane %v3496, 4
      %v3498 = vadd.f32 %v3496, %v3497
      %v3499 = vrot.slane %v3498, 2
      %v3500 = vadd.f32 %v3498, %v3499
      %v3501 = vrot.slane %v3500, 1
      %v3502 = vadd.f32 %v3500, %v3501
      %v3503 = vmul.f32 %v3502, 0.00390625
      %v3504 = vmul.f32 %v3401, %v3401
      %v3505 = vsub.f32 %v3503, %v3504
      %v3506 = vsub.f32 %v3300, %v3401
      %v3507 = vsub.f32 %v3301, %v3401
      %v3508 = vsub.f32 %v3302, %v3401
      %v3509 = vsub.f32 %v3303, %v3401
      %v3510 = vsub.f32 %v3304, %v3401
      %v3511 = vsub.f32 %v3305, %v3401
      %v3512 = vsub.f32 %v3306, %v3401
      %v3513 = vsub.f32 %v3307, %v3401
      %v3514 = vsub.f32 %v3308, %v3401
      %v3515 = vsub.f32 %v3309, %v3401
      %v3516 = vsub.f32 %v3310, %v3401
      %v3517 = vsub.f32 %v3311, %v3401
      %v3518 = vsub.f32 %v3312, %v3401
      %v3519 = vsub.f32 %v3313, %v3401
      %v3520 = vsub.f32 %v3314, %v3401
      %v3521 = vsub.f32 %v3315, %v3401
      %v3522 = vsub.f32 %v3316, %v3401
      %v3523 = vsub.f32 %v3317, %v3401
      %v3524 = vsub.f32 %v3318, %v3401
      %v3525 = vsub.f32 %v3319, %v3401
      %v3526 = vsub.f32 %v3320, %v3401
      %v3527 = vsub.f32 %v3321, %v3401
      %v3528 = vsub.f32 %v3322, %v3401
      %v3529 = vsub.f32 %v3323, %v3401
      %v3530 = vsub.f32 %v3324, %v3401
      %v3531 = vsub.f32 %v3325, %v3401
      %v3532 = vsub.f32 %v3326, %v3401
      %v3533 = vsub.f32 %v3327, %v3401
      %v3534 = vsub.f32 %v3328, %v3401
      %v3535 = vsub.f32 %v3329, %v3401
      %v3536 = vsub.f32 %v3330, %v3401
      %v3537 = vsub.f32 %v3331, %v3401
      %v3538 = vadd.f32 %v3505, 1e-05
      %v3539 = vrsqrt.pop %v3538
      %v3540 = vmul.f32 %v3506, %v3539
      %v3541 = vmul.f32 %v3507, %v3539
      %v3542 = vmul.f32 %v3508, %v3539
      %v3543 = vmul.f32 %v3509, %v3539
      %v3544 = vmul.f32 %v3510, %v3539
      %v3545 = vmul.f32 %v3511, %v3539
      %v3546 = vmul.f32 %v3512, %v3539
      %v3547 = vmul.f32 %v3513, %v3539
      %v3548 = vmul.f32 %v3514, %v3539
      %v3549 = vmul.f32 %v3515, %v3539
      %v3550 = vmul.f32 %v3516, %v3539
      %v3551 = vmul.f32 %v3517, %v3539
      %v3552 = vmul.f32 %v3518, %v3539
      %v3553 = vmul.f32 %v3519, %v3539
      %v3554 = vmul.f32 %v3520, %v3539
      %v3555 = vmul.f32 %v3521, %v3539
      %v3556 = vmul.f32 %v3522, %v3539
      %v3557 = vmul.f32 %v3523, %v3539
      %v3558 = vmul.f32 %v3524, %v3539
      %v3559 = vmul.f32 %v3525, %v3539
      %v3560 = vmul.f32 %v3526, %v3539
      %v3561 = vmul.f32 %v3527, %v3539
      %v3562 = vmul.f32 %v3528, %v3539
      %v3563 = vmul.f32 %v3529, %v3539
      %v3564 = vmul.f32 %v3530, %v3539
      %v3565 = vmul.f32 %v3531, %v3539
      %v3566 = vmul.f32 %v3532, %v3539
      %v3567 = vmul.f32 %v3533, %v3539
      %v3568 = vmul.f32 %v3534, %v3539
      %v3569 = vmul.f32 %v3535, %v3539
      %v3570 = vmul.f32 %v3536, %v3539
      %v3571 = vmul.f32 %v3537, %v3539
      %v3572 = vmax.f32 %v3540, 0.0
      %v3573 = vmax.f32 %v3541, 0.0
      %v3574 = vmax.f32 %v3542, 0.0
      %v3575 = vmax.f32 %v3543, 0.0
      %v3576 = vmax.f32 %v3544, 0.0
      %v3577 = vmax.f32 %v3545, 0.0
      %v3578 = vmax.f32 %v3546, 0.0
      %v3579 = vmax.f32 %v3547, 0.0
      %v3580 = vmax.f32 %v3548, 0.0
      %v3581 = vmax.f32 %v3549, 0.0
      %v3582 = vmax.f32 %v3550, 0.0
      %v3583 = vmax.f32 %v3551, 0.0
      %v3584 = vmax.f32 %v3552, 0.0
      %v3585 = vmax.f32 %v3553, 0.0
      %v3586 = vmax.f32 %v3554, 0.0
      %v3587 = vmax.f32 %v3555, 0.0
      %v3588 = vmax.f32 %v3556, 0.0
      %v3589 = vmax.f32 %v3557, 0.0
      %v3590 = vmax.f32 %v3558, 0.0
      %v3591 = vmax.f32 %v3559, 0.0
      %v3592 = vmax.f32 %v3560, 0.0
      %v3593 = vmax.f32 %v3561, 0.0
      %v3594 = vmax.f32 %v3562, 0.0
      %v3595 = vmax.f32 %v3563, 0.0
      %v3596 = vmax.f32 %v3564, 0.0
      %v3597 = vmax.f32 %v3565, 0.0
      %v3598 = vmax.f32 %v3566, 0.0
      %v3599 = vmax.f32 %v3567, 0.0
      %v3600 = vmax.f32 %v3568, 0.0
      %v3601 = vmax.f32 %v3569, 0.0
      %v3602 = vmax.f32 %v3570, 0.0
      %v3603 = vmax.f32 %v3571, 0.0
      %v3604 = vpack.c.bf16 %v3573, %v3572
      %v3605 = vpack.c.bf16 %v3575, %v3574
      %v3606 = vpack.c.bf16 %v3577, %v3576
      %v3607 = vpack.c.bf16 %v3579, %v3578
      %v3608 = vpack.c.bf16 %v3581, %v3580
      %v3609 = vpack.c.bf16 %v3583, %v3582
      %v3610 = vpack.c.bf16 %v3585, %v3584
      %v3611 = vpack.c.bf16 %v3587, %v3586
      %v3612 = vpack.c.bf16 %v3589, %v3588
      %v3613 = vpack.c.bf16 %v3591, %v3590
      %v3614 = vpack.c.bf16 %v3593, %v3592
      %v3615 = vpack.c.bf16 %v3595, %v3594
      %v3616 = vpack.c.bf16 %v3597, %v3596
      %v3617 = vpack.c.bf16 %v3599, %v3598
      %v3618 = vpack.c.bf16 %v3601, %v3600
      %v3619 = vpack.c.bf16 %v3603, %v3602
      %v3636 = vunpack.c.l.b16 %v3604
      %v3637 = vunpack.c.h.b16 %v3604
      %v3638 = vunpack.c.l.b16 %v3605
      %v3639 = vunpack.c.h.b16 %v3605
      %v3640 = vunpack.c.l.b16 %v3606
      %v3641 = vunpack.c.h.b16 %v3606
      %v3642 = vunpack.c.l.b16 %v3607
      %v3643 = vunpack.c.h.b16 %v3607
      %v3644 = vunpack.c.l.b16 %v3608
      %v3645 = vunpack.c.h.b16 %v3608
      %v3646 = vunpack.c.l.b16 %v3609
      %v3647 = vunpack.c.h.b16 %v3609
      %v3648 = vunpack.c.l.b16 %v3610
      %v3649 = vunpack.c.h.b16 %v3610
      %v3650 = vunpack.c.l.b16 %v3611
      %v3651 = vunpack.c.h.b16 %v3611
      %v3652 = vunpack.c.l.b16 %v3612
      %v3653 = vunpack.c.h.b16 %v3612
      %v3654 = vunpack.c.l.b16 %v3613
      %v3655 = vunpack.c.h.b16 %v3613
      %v3656 = vunpack.c.l.b16 %v3614
      %v3657 = vunpack.c.h.b16 %v3614
      %v3658 = vunpack.c.l.b16 %v3615
      %v3659 = vunpack.c.h.b16 %v3615
      %v3660 = vunpack.c.l.b16 %v3616
      %v3661 = vunpack.c.h.b16 %v3616
      %v3662 = vunpack.c.l.b16 %v3617
      %v3663 = vunpack.c.h.b16 %v3617
      %v3664 = vunpack.c.l.b16 %v3618
      %v3665 = vunpack.c.h.b16 %v3618
      %v3666 = vunpack.c.l.b16 %v3619
      %v3667 = vunpack.c.h.b16 %v3619
      %v3668 = vpack.c.b16 %v3636, %v3636
      %v3669 = vpack.c.b16 %v3637, %v3637
      %v3670 = vpack.c.b16 %v3638, %v3638
      %v3671 = vpack.c.b16 %v3639, %v3639
      %v3672 = vpack.c.b16 %v3640, %v3640
      %v3673 = vpack.c.b16 %v3641, %v3641
      %v3674 = vpack.c.b16 %v3642, %v3642
      %v3675 = vpack.c.b16 %v3643, %v3643
      %v3676 = vpack.c.b16 %v3644, %v3644
      %v3677 = vpack.c.b16 %v3645, %v3645
      %v3678 = vpack.c.b16 %v3646, %v3646
      %v3679 = vpack.c.b16 %v3647, %v3647
      %v3680 = vpack.c.b16 %v3648, %v3648
      %v3681 = vpack.c.b16 %v3649, %v3649
      %v3682 = vpack.c.b16 %v3650, %v3650
      %v3683 = vpack.c.b16 %v3651, %v3651
      %v3684 = vpack.c.b16 %v3652, %v3652
      %v3685 = vpack.c.b16 %v3653, %v3653
      %v3686 = vpack.c.b16 %v3654, %v3654
      %v3687 = vpack.c.b16 %v3655, %v3655
      %v3688 = vpack.c.b16 %v3656, %v3656
      %v3689 = vpack.c.b16 %v3657, %v3657
      %v3690 = vpack.c.b16 %v3658, %v3658
      %v3691 = vpack.c.b16 %v3659, %v3659
      %v3692 = vpack.c.b16 %v3660, %v3660
      %v3693 = vpack.c.b16 %v3661, %v3661
      %v3694 = vpack.c.b16 %v3662, %v3662
      %v3695 = vpack.c.b16 %v3663, %v3663
      %v3696 = vpack.c.b16 %v3664, %v3664
      %v3697 = vpack.c.b16 %v3665, %v3665
      %v3698 = vpack.c.b16 %v3666, %v3666
      %v3699 = vpack.c.b16 %v3667, %v3667
      %v3701 = vshrl.u32 %v3668, 16
      %v3703 = vrot.slane %v3701, 7
      %v3704 = vshll.u32 %v3668, 16
      %v3706 = vor.u32 %v3703, %v3704
      %v3707 = vrot.slane %v3703, 4
      %v3709 = vshrl.u32 %v3669, 16
      %v3711 = vrot.slane %v3709, 7
      %v3712 = vshll.u32 %v3669, 16
      %v3714 = vor.u32 %v3711, %v3712
      %v3715 = vsel %vm314, %v3707, %v3714
      %v3716 = vrot.slane %v3711, 4
      %v3718 = vshrl.u32 %v3670, 16
      %v3720 = vrot.slane %v3718, 7
      %v3721 = vshll.u32 %v3670, 16
      %v3723 = vor.u32 %v3720, %v3721
      %v3724 = vrot.slane %v3720, 4
      %v3726 = vshrl.u32 %v3671, 16
      %v3728 = vrot.slane %v3726, 7
      %v3729 = vshll.u32 %v3671, 16
      %v3731 = vor.u32 %v3728, %v3729
      %v3732 = vsel %vm314, %v3724, %v3731
      %v3733 = vrot.slane %v3728, 4
      %v3735 = vshrl.u32 %v3672, 16
      %v3737 = vrot.slane %v3735, 7
      %v3738 = vshll.u32 %v3672, 16
      %v3740 = vor.u32 %v3737, %v3738
      %v3741 = vrot.slane %v3737, 4
      %v3743 = vshrl.u32 %v3673, 16
      %v3745 = vrot.slane %v3743, 7
      %v3746 = vshll.u32 %v3673, 16
      %v3748 = vor.u32 %v3745, %v3746
      %v3749 = vsel %vm314, %v3741, %v3748
      %v3750 = vrot.slane %v3745, 4
      %v3752 = vshrl.u32 %v3674, 16
      %v3754 = vrot.slane %v3752, 7
      %v3755 = vshll.u32 %v3674, 16
      %v3757 = vor.u32 %v3754, %v3755
      %v3758 = vrot.slane %v3754, 4
      %v3760 = vshrl.u32 %v3675, 16
      %v3762 = vrot.slane %v3760, 7
      %v3763 = vshll.u32 %v3675, 16
      %v3765 = vor.u32 %v3762, %v3763
      %v3766 = vsel %vm314, %v3758, %v3765
      %v3767 = vrot.slane %v3762, 4
      %v3769 = vshrl.u32 %v3676, 16
      %v3771 = vrot.slane %v3769, 7
      %v3772 = vshll.u32 %v3676, 16
      %v3774 = vor.u32 %v3771, %v3772
      %v3775 = vrot.slane %v3771, 4
      %v3777 = vshrl.u32 %v3677, 16
      %v3779 = vrot.slane %v3777, 7
      %v3780 = vshll.u32 %v3677, 16
      %v3782 = vor.u32 %v3779, %v3780
      %v3783 = vsel %vm314, %v3775, %v3782
      %v3784 = vrot.slane %v3779, 4
      %v3786 = vshrl.u32 %v3678, 16
      %v3788 = vrot.slane %v3786, 7
      %v3789 = vshll.u32 %v3678, 16
      %v3791 = vor.u32 %v3788, %v3789
      %v3792 = vrot.slane %v3788, 4
      %v3794 = vshrl.u32 %v3679, 16
      %v3796 = vrot.slane %v3794, 7
      %v3797 = vshll.u32 %v3679, 16
      %v3799 = vor.u32 %v3796, %v3797
      %v3800 = vsel %vm314, %v3792, %v3799
      %v3801 = vrot.slane %v3796, 4
      %v3803 = vshrl.u32 %v3680, 16
      %v3805 = vrot.slane %v3803, 7
      %v3806 = vshll.u32 %v3680, 16
      %v3808 = vor.u32 %v3805, %v3806
      %v3809 = vrot.slane %v3805, 4
      %v3811 = vshrl.u32 %v3681, 16
      %v3813 = vrot.slane %v3811, 7
      %v3814 = vshll.u32 %v3681, 16
      %v3816 = vor.u32 %v3813, %v3814
      %v3817 = vsel %vm314, %v3809, %v3816
      %v3818 = vrot.slane %v3813, 4
      %v3820 = vshrl.u32 %v3682, 16
      %v3822 = vrot.slane %v3820, 7
      %v3823 = vshll.u32 %v3682, 16
      %v3825 = vor.u32 %v3822, %v3823
      %v3826 = vrot.slane %v3822, 4
      %v3828 = vshrl.u32 %v3683, 16
      %v3830 = vrot.slane %v3828, 7
      %v3831 = vshll.u32 %v3683, 16
      %v3833 = vor.u32 %v3830, %v3831
      %v3834 = vsel %vm314, %v3826, %v3833
      %v3835 = vrot.slane %v3830, 4
      %v3837 = vshrl.u32 %v3684, 16
      %v3839 = vrot.slane %v3837, 7
      %v3840 = vshll.u32 %v3684, 16
      %v3842 = vor.u32 %v3839, %v3840
      %v3843 = vrot.slane %v3839, 4
      %v3845 = vshrl.u32 %v3685, 16
      %v3847 = vrot.slane %v3845, 7
      %v3848 = vshll.u32 %v3685, 16
      %v3850 = vor.u32 %v3847, %v3848
      %v3851 = vsel %vm314, %v3843, %v3850
      %v3852 = vrot.slane %v3847, 4
      %v3854 = vshrl.u32 %v3686, 16
      %v3856 = vrot.slane %v3854, 7
      %v3857 = vshll.u32 %v3686, 16
      %v3859 = vor.u32 %v3856, %v3857
      %v3860 = vrot.slane %v3856, 4
      %v3862 = vshrl.u32 %v3687, 16
      %v3864 = vrot.slane %v3862, 7
      %v3865 = vshll.u32 %v3687, 16
      %v3867 = vor.u32 %v3864, %v3865
      %v3868 = vsel %vm314, %v3860, %v3867
      %v3869 = vrot.slane %v3864, 4
      %v3871 = vshrl.u32 %v3688, 16
      %v3873 = vrot.slane %v3871, 7
      %v3874 = vshll.u32 %v3688, 16
      %v3876 = vor.u32 %v3873, %v3874
      %v3877 = vrot.slane %v3873, 4
      %v3879 = vshrl.u32 %v3689, 16
      %v3881 = vrot.slane %v3879, 7
      %v3882 = vshll.u32 %v3689, 16
      %v3884 = vor.u32 %v3881, %v3882
      %v3885 = vsel %vm314, %v3877, %v3884
      %v3886 = vrot.slane %v3881, 4
      %v3888 = vshrl.u32 %v3690, 16
      %v3890 = vrot.slane %v3888, 7
      %v3891 = vshll.u32 %v3690, 16
      %v3893 = vor.u32 %v3890, %v3891
      %v3894 = vrot.slane %v3890, 4
      %v3896 = vshrl.u32 %v3691, 16
      %v3898 = vrot.slane %v3896, 7
      %v3899 = vshll.u32 %v3691, 16
      %v3901 = vor.u32 %v3898, %v3899
      %v3902 = vsel %vm314, %v3894, %v3901
      %v3903 = vrot.slane %v3898, 4
      %v3905 = vshrl.u32 %v3692, 16
      %v3907 = vrot.slane %v3905, 7
      %v3908 = vshll.u32 %v3692, 16
      %v3910 = vor.u32 %v3907, %v3908
      %v3911 = vrot.slane %v3907, 4
      %v3913 = vshrl.u32 %v3693, 16
      %v3915 = vrot.slane %v3913, 7
      %v3916 = vshll.u32 %v3693, 16
      %v3918 = vor.u32 %v3915, %v3916
      %v3919 = vsel %vm314, %v3911, %v3918
      %v3920 = vrot.slane %v3915, 4
      %v3922 = vshrl.u32 %v3694, 16
      %v3924 = vrot.slane %v3922, 7
      %v3925 = vshll.u32 %v3694, 16
      %v3927 = vor.u32 %v3924, %v3925
      %v3928 = vrot.slane %v3924, 4
      %v3930 = vshrl.u32 %v3695, 16
      %v3932 = vrot.slane %v3930, 7
      %v3933 = vshll.u32 %v3695, 16
      %v3935 = vor.u32 %v3932, %v3933
      %v3936 = vsel %vm314, %v3928, %v3935
      %v3937 = vrot.slane %v3932, 4
      %v3939 = vshrl.u32 %v3696, 16
      %v3941 = vrot.slane %v3939, 7
      %v3942 = vshll.u32 %v3696, 16
      %v3944 = vor.u32 %v3941, %v3942
      %v3945 = vrot.slane %v3941, 4
      %v3947 = vshrl.u32 %v3697, 16
      %v3949 = vrot.slane %v3947, 7
      %v3950 = vshll.u32 %v3697, 16
      %v3952 = vor.u32 %v3949, %v3950
      %v3953 = vsel %vm314, %v3945, %v3952
      %v3954 = vrot.slane %v3949, 4
      %v3956 = vshrl.u32 %v3698, 16
      %v3958 = vrot.slane %v3956, 7
      %v3959 = vshll.u32 %v3698, 16
      %v3961 = vor.u32 %v3958, %v3959
      %v3962 = vrot.slane %v3958, 4
      %v3964 = vshrl.u32 %v3699, 16
      %v3966 = vrot.slane %v3964, 7
      %v3967 = vshll.u32 %v3699, 16
      %v3969 = vor.u32 %v3966, %v3967
      %v3970 = vsel %vm314, %v3962, %v3969
      %v3971 = vrot.slane %v3966, 4
      %v4020 = vsel %vm638, %v3706, %v1606
      %4021 = vst [vmem:[%s635] sm:$0xf] %v4020
      %4022 = vst.msk [vmem:[%s635 + $0x4] sm:$0xf] %vm642, %v3715
      %v4023 = vld [vmem:[%s635 + $0x8] sm:$0x1]
      %v4024 = vsel %vm645, %v3716, %v4023
      %4025 = vst [vmem:[%s635 + $0x8] sm:$0x1] %v4024
      %v4026 = vld [vmem:[%s635 + $0xc] sm:$0xf]
      %v4027 = vsel %vm638, %v3723, %v4026
      %4028 = vst [vmem:[%s635 + $0xc] sm:$0xf] %v4027
      %4029 = vst.msk [vmem:[%s635 + $0x10] sm:$0xf] %vm642, %v3732
      %v4030 = vld [vmem:[%s635 + $0x14] sm:$0x1]
      %v4031 = vsel %vm645, %v3733, %v4030
      %4032 = vst [vmem:[%s635 + $0x14] sm:$0x1] %v4031
      %v4033 = vld [vmem:[%s635 + $0x18] sm:$0xf]
      %v4034 = vsel %vm638, %v3740, %v4033
      %4035 = vst [vmem:[%s635 + $0x18] sm:$0xf] %v4034
      %4036 = vst.msk [vmem:[%s635 + $0x1c] sm:$0xf] %vm642, %v3749
      %v4037 = vld [vmem:[%s635 + $0x20] sm:$0x1]
      %v4038 = vsel %vm645, %v3750, %v4037
      %4039 = vst [vmem:[%s635 + $0x20] sm:$0x1] %v4038
      %v4040 = vld [vmem:[%s635 + $0x24] sm:$0xf]
      %v4041 = vsel %vm638, %v3757, %v4040
      %4042 = vst [vmem:[%s635 + $0x24] sm:$0xf] %v4041
      %4043 = vst.msk [vmem:[%s635 + $0x28] sm:$0xf] %vm642, %v3766
      %v4044 = vld [vmem:[%s635 + $0x2c] sm:$0x1]
      %v4045 = vsel %vm645, %v3767, %v4044
      %4046 = vst [vmem:[%s635 + $0x2c] sm:$0x1] %v4045
      %v4047 = vld [vmem:[%s635 + $0x30] sm:$0xf]
      %v4048 = vsel %vm638, %v3774, %v4047
      %4049 = vst [vmem:[%s635 + $0x30] sm:$0xf] %v4048
      %4050 = vst.msk [vmem:[%s635 + $0x34] sm:$0xf] %vm642, %v3783
      %v4051 = vld [vmem:[%s635 + $0x38] sm:$0x1]
      %v4052 = vsel %vm645, %v3784, %v4051
      %4053 = vst [vmem:[%s635 + $0x38] sm:$0x1] %v4052
      %v4054 = vld [vmem:[%s635 + $0x3c] sm:$0xf]
      %v4055 = vsel %vm638, %v3791, %v4054
      %4056 = vst [vmem:[%s635 + $0x3c] sm:$0xf] %v4055
      %4057 = vst.msk [vmem:[%s635 + $0x40] sm:$0xf] %vm642, %v3800
      %v4058 = vld [vmem:[%s635 + $0x44] sm:$0x1]
      %v4059 = vsel %vm645, %v3801, %v4058
      %4060 = vst [vmem:[%s635 + $0x44] sm:$0x1] %v4059
      %v4061 = vld [vmem:[%s635 + $0x48] sm:$0xf]
      %v4062 = vsel %vm638, %v3808, %v4061
      %4063 = vst [vmem:[%s635 + $0x48] sm:$0xf] %v4062
      %4064 = vst.msk [vmem:[%s635 + $0x4c] sm:$0xf] %vm642, %v3817
      %v4065 = vld [vmem:[%s635 + $0x50] sm:$0x1]
      %v4066 = vsel %vm645, %v3818, %v4065
      %4067 = vst [vmem:[%s635 + $0x50] sm:$0x1] %v4066
      %v4068 = vld [vmem:[%s635 + $0x54] sm:$0xf]
      %v4069 = vsel %vm638, %v3825, %v4068
      %4070 = vst [vmem:[%s635 + $0x54] sm:$0xf] %v4069
      %4071 = vst.msk [vmem:[%s635 + $0x58] sm:$0xf] %vm642, %v3834
      %v4072 = vld [vmem:[%s635 + $0x5c] sm:$0x1]
      %v4073 = vsel %vm645, %v3835, %v4072
      %4074 = vst [vmem:[%s635 + $0x5c] sm:$0x1] %v4073
      %v4075 = vld [vmem:[%s635 + $0x60] sm:$0xf]
      %v4076 = vsel %vm638, %v3842, %v4075
      %4077 = vst [vmem:[%s635 + $0x60] sm:$0xf] %v4076
      %4078 = vst.msk [vmem:[%s635 + $0x64] sm:$0xf] %vm642, %v3851
      %v4079 = vld [vmem:[%s635 + $0x68] sm:$0x1]
      %v4080 = vsel %vm645, %v3852, %v4079
      %4081 = vst [vmem:[%s635 + $0x68] sm:$0x1] %v4080
      %v4082 = vld [vmem:[%s635 + $0x6c] sm:$0xf]
      %v4083 = vsel %vm638, %v3859, %v4082
      %4084 = vst [vmem:[%s635 + $0x6c] sm:$0xf] %v4083
      %4085 = vst.msk [vmem:[%s635 + $0x70] sm:$0xf] %vm642, %v3868
      %v4086 = vld [vmem:[%s635 + $0x74] sm:$0x1]
      %v4087 = vsel %vm645, %v3869, %v4086
      %4088 = vst [vmem:[%s635 + $0x74] sm:$0x1] %v4087
      %v4089 = vld [vmem:[%s635 + $0x78] sm:$0xf]
      %v4090 = vsel %vm638, %v3876, %v4089
      %4091 = vst [vmem:[%s635 + $0x78] sm:$0xf] %v4090
      %4092 = vst.msk [vmem:[%s635 + $0x7c] sm:$0xf] %vm642, %v3885
      %v4093 = vld [vmem:[%s635 + $0x80] sm:$0x1]
      %v4094 = vsel %vm645, %v3886, %v4093
      %4095 = vst [vmem:[%s635 + $0x80] sm:$0x1] %v4094
      %v4096 = vld [vmem:[%s635 + $0x84] sm:$0xf]
      %v4097 = vsel %vm638, %v3893, %v4096
      %4098 = vst [vmem:[%s635 + $0x84] sm:$0xf] %v4097
      %4099 = vst.msk [vmem:[%s635 + $0x88] sm:$0xf] %vm642, %v3902
      %v4100 = vld [vmem:[%s635 + $0x8c] sm:$0x1]
      %v4101 = vsel %vm645, %v3903, %v4100
      %4102 = vst [vmem:[%s635 + $0x8c] sm:$0x1] %v4101
      %v4103 = vld [vmem:[%s635 + $0x90] sm:$0xf]
      %v4104 = vsel %vm638, %v3910, %v4103
      %4105 = vst [vmem:[%s635 + $0x90] sm:$0xf] %v4104
      %4106 = vst.msk [vmem:[%s635 + $0x94] sm:$0xf] %vm642, %v3919
      %v4107 = vld [vmem:[%s635 + $0x98] sm:$0x1]
      %v4108 = vsel %vm645, %v3920, %v4107
      %4109 = vst [vmem:[%s635 + $0x98] sm:$0x1] %v4108
      %v4110 = vld [vmem:[%s635 + $0x9c] sm:$0xf]
      %v4111 = vsel %vm638, %v3927, %v4110
      %4112 = vst [vmem:[%s635 + $0x9c] sm:$0xf] %v4111
      %4113 = vst.msk [vmem:[%s635 + $0xa0] sm:$0xf] %vm642, %v3936
      %v4114 = vld [vmem:[%s635 + $0xa4] sm:$0x1]
      %v4115 = vsel %vm645, %v3937, %v4114
      %4116 = vst [vmem:[%s635 + $0xa4] sm:$0x1] %v4115
      %v4117 = vld [vmem:[%s635 + $0xa8] sm:$0xf]
      %v4118 = vsel %vm638, %v3944, %v4117
      %4119 = vst [vmem:[%s635 + $0xa8] sm:$0xf] %v4118
      %4120 = vst.msk [vmem:[%s635 + $0xac] sm:$0xf] %vm642, %v3953
      %v4121 = vld [vmem:[%s635 + $0xb0] sm:$0x1]
      %v4122 = vsel %vm645, %v3954, %v4121
      %4123 = vst [vmem:[%s635 + $0xb0] sm:$0x1] %v4122
      %v4124 = vld [vmem:[%s635 + $0xb4] sm:$0xf]
      %v4125 = vsel %vm638, %v3961, %v4124
      %4126 = vst [vmem:[%s635 + $0xb4] sm:$0xf] %v4125
      %4127 = vst.msk [vmem:[%s635 + $0xb8] sm:$0xf] %vm642, %v3970
      %v4128 = vld [vmem:[%s635 + $0xbc] sm:$0x1]
      %v4129 = vsel %vm645, %v3971, %v4128
      %4130 = vst [vmem:[%s635 + $0xbc] sm:$0x1] %v4129
      %v4131 = vld [vmem:[#allocation2] sm:$0xf]
      %v4132 = vsel %vm638, %v3723, %v4131
      %4133 = vst [vmem:[#allocation2] sm:$0xf] %v4132
      %4134 = vst.msk [vmem:[#allocation2 + $0x4] sm:$0xf] %vm642, %v3732
      %v4135 = vld [vmem:[#allocation2 + $0x8] sm:$0x1]
      %v4136 = vsel %vm645, %v3733, %v4135
      %4137 = vst [vmem:[#allocation2 + $0x8] sm:$0x1] %v4136
      %v4138 = vld [vmem:[%s761] sm:$0xf]
      %v4139 = vsel %vm638, %v3944, %v4138
      %4140 = vst [vmem:[%s761] sm:$0xf] %v4139
      %4141 = vst.msk [vmem:[%s761 + $0x4] sm:$0xf] %vm642, %v3953
      %v4142 = vld [vmem:[%s761 + $0x8] sm:$0x1]
      %v4143 = vsel %vm645, %v3954, %v4142
      %4144 = vst [vmem:[%s761 + $0x8] sm:$0x1] %v4143
      %v4145 = vld [vmem:[#allocation2] sm:$0x2]
      %v4146 = vld [vmem:[#allocation2 + $0xc] sm:$0x2]
      %v4147 = vld [vmem:[#allocation2 + $0x18] sm:$0x2]
      %v4148 = vld [vmem:[#allocation2 + $0x24] sm:$0x2]
      %v4149 = vld [vmem:[#allocation2 + $0x30] sm:$0x2]
      %v4150 = vld [vmem:[#allocation2 + $0x3c] sm:$0x2]
      %v4151 = vld [vmem:[#allocation2 + $0x48] sm:$0x2]
      %v4152 = vld [vmem:[#allocation2 + $0x54] sm:$0x2]
      %v4153 = vld [vmem:[#allocation2 + $0x60] sm:$0x2]
      %v4154 = vld [vmem:[#allocation2 + $0x6c] sm:$0x2]
      %v4155 = vld [vmem:[#allocation2 + $0x78] sm:$0x2]
      %v4156 = vld [vmem:[#allocation2 + $0x84] sm:$0x2]
      %v4157 = vld [vmem:[#allocation2 + $0x90] sm:$0x2]
      %v4158 = vld [vmem:[#allocation2 + $0x9c] sm:$0x2]
      %v4159 = vld [vmem:[#allocation2 + $0xa8] sm:$0x2]
      %v4160 = vld [vmem:[#allocation2 + $0xb4] sm:$0x2]
      %v4161 = vld [vmem:[#allocation2 + $0xc0] sm:$0x2]
      %v4162 = vld [vmem:[#allocation2 + $0xcc] sm:$0x2]
      %v4181 = vrot.slane %v4145, 5
      %v4182 = vrot.slane %v4181, 4
      %v4183 = vrot.slane %v4146, 5
      %v4184 = vrot.slane %v4183, 4
      %v4185 = vrot.slane %v4147, 5
      %v4186 = vrot.slane %v4185, 4
      %v4187 = vrot.slane %v4148, 5
      %v4188 = vrot.slane %v4187, 4
      %v4189 = vrot.slane %v4149, 5
      %v4190 = vrot.slane %v4189, 4
      %v4191 = vrot.slane %v4150, 5
      %v4192 = vrot.slane %v4191, 4
      %v4193 = vrot.slane %v4151, 5
      %v4194 = vrot.slane %v4193, 4
      %v4195 = vrot.slane %v4152, 5
      %v4196 = vrot.slane %v4195, 4
      %v4197 = vrot.slane %v4153, 5
      %v4198 = vrot.slane %v4197, 4
      %v4199 = vrot.slane %v4154, 5
      %v4200 = vrot.slane %v4199, 4
      %v4201 = vrot.slane %v4155, 5
      %v4202 = vrot.slane %v4201, 4
      %v4203 = vrot.slane %v4156, 5
      %v4204 = vrot.slane %v4203, 4
      %v4205 = vrot.slane %v4157, 5
      %v4206 = vrot.slane %v4205, 4
      %v4207 = vrot.slane %v4158, 5
      %v4208 = vrot.slane %v4207, 4
      %v4209 = vrot.slane %v4159, 5
      %v4210 = vrot.slane %v4209, 4
      %v4211 = vrot.slane %v4160, 5
      %v4212 = vrot.slane %v4211, 4
      %v4213 = vrot.slane %v4161, 5
      %v4214 = vrot.slane %v4213, 4
      %v4215 = vrot.slane %v4162, 5
      %v4216 = vrot.slane %v4215, 4
      %v4235 = vld [vmem:[#allocation2] sm:$0x1]
      %v4236 = vsel %vm645, %v4182, %v4235
      %4237 = vst [vmem:[#allocation2] sm:$0x1] %v4236
      %v4238 = vld [vmem:[#allocation2 + $0xc] sm:$0x1]
      %v4239 = vsel %vm645, %v4184, %v4238
      %4240 = vst [vmem:[#allocation2 + $0xc] sm:$0x1] %v4239
      %v4241 = vld [vmem:[#allocation2 + $0x18] sm:$0x1]
      %v4242 = vsel %vm645, %v4186, %v4241
      %4243 = vst [vmem:[#allocation2 + $0x18] sm:$0x1] %v4242
      %v4244 = vld [vmem:[#allocation2 + $0x24] sm:$0x1]
      %v4245 = vsel %vm645, %v4188, %v4244
      %4246 = vst [vmem:[#allocation2 + $0x24] sm:$0x1] %v4245
      %v4247 = vld [vmem:[#allocation2 + $0x30] sm:$0x1]
      %v4248 = vsel %vm645, %v4190, %v4247
      %4249 = vst [vmem:[#allocation2 + $0x30] sm:$0x1] %v4248
      %v4250 = vld [vmem:[#allocation2 + $0x3c] sm:$0x1]
      %v4251 = vsel %vm645, %v4192, %v4250
      %4252 = vst [vmem:[#allocation2 + $0x3c] sm:$0x1] %v4251
      %v4253 = vld [vmem:[#allocation2 + $0x48] sm:$0x1]
      %v4254 = vsel %vm645, %v4194, %v4253
      %4255 = vst [vmem:[#allocation2 + $0x48] sm:$0x1] %v4254
      %v4256 = vld [vmem:[#allocation2 + $0x54] sm:$0x1]
      %v4257 = vsel %vm645, %v4196, %v4256
      %4258 = vst [vmem:[#allocation2 + $0x54] sm:$0x1] %v4257
      %v4259 = vld [vmem:[#allocation2 + $0x60] sm:$0x1]
      %v4260 = vsel %vm645, %v4198, %v4259
      %4261 = vst [vmem:[#allocation2 + $0x60] sm:$0x1] %v4260
      %v4262 = vld [vmem:[#allocation2 + $0x6c] sm:$0x1]
      %v4263 = vsel %vm645, %v4200, %v4262
      %4264 = vst [vmem:[#allocation2 + $0x6c] sm:$0x1] %v4263
      %v4265 = vld [vmem:[#allocation2 + $0x78] sm:$0x1]
      %v4266 = vsel %vm645, %v4202, %v4265
      %4267 = vst [vmem:[#allocation2 + $0x78] sm:$0x1] %v4266
      %v4268 = vld [vmem:[#allocation2 + $0x84] sm:$0x1]
      %v4269 = vsel %vm645, %v4204, %v4268
      %4270 = vst [vmem:[#allocation2 + $0x84] sm:$0x1] %v4269
      %v4271 = vld [vmem:[#allocation2 + $0x90] sm:$0x1]
      %v4272 = vsel %vm645, %v4206, %v4271
      %4273 = vst [vmem:[#allocation2 + $0x90] sm:$0x1] %v4272
      %v4274 = vld [vmem:[#allocation2 + $0x9c] sm:$0x1]
      %v4275 = vsel %vm645, %v4208, %v4274
      %4276 = vst [vmem:[#allocation2 + $0x9c] sm:$0x1] %v4275
      %v4277 = vld [vmem:[#allocation2 + $0xa8] sm:$0x1]
      %v4278 = vsel %vm645, %v4210, %v4277
      %4279 = vst [vmem:[#allocation2 + $0xa8] sm:$0x1] %v4278
      %v4280 = vld [vmem:[#allocation2 + $0xb4] sm:$0x1]
      %v4281 = vsel %vm645, %v4212, %v4280
      %4282 = vst [vmem:[#allocation2 + $0xb4] sm:$0x1] %v4281
      %v4283 = vld [vmem:[#allocation2 + $0xc0] sm:$0x1]
      %v4284 = vsel %vm645, %v4214, %v4283
      %4285 = vst [vmem:[#allocation2 + $0xc0] sm:$0x1] %v4284
      %v4286 = vld [vmem:[#allocation2 + $0xcc] sm:$0x1]
      %v4287 = vsel %vm645, %v4216, %v4286
      %4288 = vst [vmem:[#allocation2 + $0xcc] sm:$0x1] %v4287
      %v4289 = vld [vmem:[#allocation2 + $0x4] sm:$0x8]
      %v4290 = vld [vmem:[#allocation2 + $0x10] sm:$0x8]
      %v4291 = vld [vmem:[#allocation2 + $0x1c] sm:$0x8]
      %v4292 = vld [vmem:[#allocation2 + $0x28] sm:$0x8]
      %v4293 = vld [vmem:[#allocation2 + $0x34] sm:$0x8]
      %v4294 = vld [vmem:[#allocation2 + $0x40] sm:$0x8]
      %v4295 = vld [vmem:[#allocation2 + $0x4c] sm:$0x8]
      %v4296 = vld [vmem:[#allocation2 + $0x58] sm:$0x8]
      %v4297 = vld [vmem:[#allocation2 + $0x64] sm:$0x8]
      %v4298 = vld [vmem:[#allocation2 + $0x70] sm:$0x8]
      %v4299 = vld [vmem:[#allocation2 + $0x7c] sm:$0x8]
      %v4300 = vld [vmem:[#allocation2 + $0x88] sm:$0x8]
      %v4301 = vld [vmem:[#allocation2 + $0x94] sm:$0x8]
      %v4302 = vld [vmem:[#allocation2 + $0xa0] sm:$0x8]
      %v4303 = vld [vmem:[#allocation2 + $0xac] sm:$0x8]
      %v4304 = vld [vmem:[#allocation2 + $0xb8] sm:$0x8]
      %v4305 = vld [vmem:[#allocation2 + $0xc4] sm:$0x8]
      %v4306 = vld [vmem:[#allocation2 + $0xd0] sm:$0x8]
      %v4325 = vrot.slane %v4289, 7
      %v4326 = vrot.slane %v4325, 4
      %v4327 = vrot.slane %v4290, 7
      %v4328 = vrot.slane %v4327, 4
      %v4329 = vrot.slane %v4291, 7
      %v4330 = vrot.slane %v4329, 4
      %v4331 = vrot.slane %v4292, 7
      %v4332 = vrot.slane %v4331, 4
      %v4333 = vrot.slane %v4293, 7
      %v4334 = vrot.slane %v4333, 4
      %v4335 = vrot.slane %v4294, 7
      %v4336 = vrot.slane %v4335, 4
      %v4337 = vrot.slane %v4295, 7
      %v4338 = vrot.slane %v4337, 4
      %v4339 = vrot.slane %v4296, 7
      %v4340 = vrot.slane %v4339, 4
      %v4341 = vrot.slane %v4297, 7
      %v4342 = vrot.slane %v4341, 4
      %v4343 = vrot.slane %v4298, 7
      %v4344 = vrot.slane %v4343, 4
      %v4345 = vrot.slane %v4299, 7
      %v4346 = vrot.slane %v4345, 4
      %v4347 = vrot.slane %v4300, 7
      %v4348 = vrot.slane %v4347, 4
      %v4349 = vrot.slane %v4301, 7
      %v4350 = vrot.slane %v4349, 4
      %v4351 = vrot.slane %v4302, 7
      %v4352 = vrot.slane %v4351, 4
      %v4353 = vrot.slane %v4303, 7
      %v4354 = vrot.slane %v4353, 4
      %v4355 = vrot.slane %v4304, 7
      %v4356 = vrot.slane %v4355, 4
      %v4357 = vrot.slane %v4305, 7
      %v4358 = vrot.slane %v4357, 4
      %v4359 = vrot.slane %v4306, 7
      %v4360 = vrot.slane %v4359, 4
      %v4379 = vld [vmem:[#allocation2 + $0x8] sm:$0x1]
      %v4380 = vsel %vm1003, %v4326, %v4379
      %4381 = vst [vmem:[#allocation2 + $0x8] sm:$0x1] %v4380
      %v4382 = vld [vmem:[#allocation2 + $0x14] sm:$0x1]
      %v4383 = vsel %vm1003, %v4328, %v4382
      %4384 = vst [vmem:[#allocation2 + $0x14] sm:$0x1] %v4383
      %v4385 = vld [vmem:[#allocation2 + $0x20] sm:$0x1]
      %v4386 = vsel %vm1003, %v4330, %v4385
      %4387 = vst [vmem:[#allocation2 + $0x20] sm:$0x1] %v4386
      %v4388 = vld [vmem:[#allocation2 + $0x2c] sm:$0x1]
      %v4389 = vsel %vm1003, %v4332, %v4388
      %4390 = vst [vmem:[#allocation2 + $0x2c] sm:$0x1] %v4389
      %v4391 = vld [vmem:[#allocation2 + $0x38] sm:$0x1]
      %v4392 = vsel %vm1003, %v4334, %v4391
      %4393 = vst [vmem:[#allocation2 + $0x38] sm:$0x1] %v4392
      %v4394 = vld [vmem:[#allocation2 + $0x44] sm:$0x1]
      %v4395 = vsel %vm1003, %v4336, %v4394
      %4396 = vst [vmem:[#allocation2 + $0x44] sm:$0x1] %v4395
      %v4397 = vld [vmem:[#allocation2 + $0x50] sm:$0x1]
      %v4398 = vsel %vm1003, %v4338, %v4397
      %4399 = vst [vmem:[#allocation2 + $0x50] sm:$0x1] %v4398
      %v4400 = vld [vmem:[#allocation2 + $0x5c] sm:$0x1]
      %v4401 = vsel %vm1003, %v4340, %v4400
      %4402 = vst [vmem:[#allocation2 + $0x5c] sm:$0x1] %v4401
      %v4403 = vld [vmem:[#allocation2 + $0x68] sm:$0x1]
      %v4404 = vsel %vm1003, %v4342, %v4403
      %4405 = vst [vmem:[#allocation2 + $0x68] sm:$0x1] %v4404
      %v4406 = vld [vmem:[#allocation2 + $0x74] sm:$0x1]
      %v4407 = vsel %vm1003, %v4344, %v4406
      %4408 = vst [vmem:[#allocation2 + $0x74] sm:$0x1] %v4407
      %v4409 = vld [vmem:[#allocation2 + $0x80] sm:$0x1]
      %v4410 = vsel %vm1003, %v4346, %v4409
      %4411 = vst [vmem:[#allocation2 + $0x80] sm:$0x1] %v4410
      %v4412 = vld [vmem:[#allocation2 + $0x8c] sm:$0x1]
      %v4413 = vsel %vm1003, %v4348, %v4412
      %4414 = vst [vmem:[#allocation2 + $0x8c] sm:$0x1] %v4413
      %v4415 = vld [vmem:[#allocation2 + $0x98] sm:$0x1]
      %v4416 = vsel %vm1003, %v4350, %v4415
      %4417 = vst [vmem:[#allocation2 + $0x98] sm:$0x1] %v4416
      %v4418 = vld [vmem:[#allocation2 + $0xa4] sm:$0x1]
      %v4419 = vsel %vm1003, %v4352, %v4418
      %4420 = vst [vmem:[#allocation2 + $0xa4] sm:$0x1] %v4419
      %v4421 = vld [vmem:[#allocation2 + $0xb0] sm:$0x1]
      %v4422 = vsel %vm1003, %v4354, %v4421
      %4423 = vst [vmem:[#allocation2 + $0xb0] sm:$0x1] %v4422
      %v4424 = vld [vmem:[#allocation2 + $0xbc] sm:$0x1]
      %v4425 = vsel %vm1003, %v4356, %v4424
      %4426 = vst [vmem:[#allocation2 + $0xbc] sm:$0x1] %v4425
      %v4427 = vld [vmem:[#allocation2 + $0xc8] sm:$0x1]
      %v4428 = vsel %vm1003, %v4358, %v4427
      %4429 = vst [vmem:[#allocation2 + $0xc8] sm:$0x1] %v4428
      %v4430 = vld [vmem:[#allocation2 + $0xd4] sm:$0x1]
      %v4431 = vsel %vm1003, %v4360, %v4430
      %4432 = vst [vmem:[#allocation2 + $0xd4] sm:$0x1] %v4431
      %v4433 = vld [vmem:[#allocation2] sm:$0xf]
      %v4434 = vld [vmem:[#allocation2 + $0x4] sm:$0xf]
      %v4435 = vld [vmem:[#allocation2 + $0x8] sm:$0x1]
      %v4436 = vld [vmem:[#allocation2 + $0xc] sm:$0xf]
      %v4437 = vld [vmem:[#allocation2 + $0x10] sm:$0xf]
      %v4438 = vld [vmem:[#allocation2 + $0x14] sm:$0x1]
      %v4439 = vld [vmem:[#allocation2 + $0x18] sm:$0xf]
      %v4440 = vld [vmem:[#allocation2 + $0x1c] sm:$0xf]
      %v4441 = vld [vmem:[#allocation2 + $0x20] sm:$0x1]
      %v4442 = vld [vmem:[#allocation2 + $0x24] sm:$0xf]
      %v4443 = vld [vmem:[#allocation2 + $0x28] sm:$0xf]
      %v4444 = vld [vmem:[#allocation2 + $0x2c] sm:$0x1]
      %v4445 = vld [vmem:[#allocation2 + $0x30] sm:$0xf]
      %v4446 = vld [vmem:[#allocation2 + $0x34] sm:$0xf]
      %v4447 = vld [vmem:[#allocation2 + $0x38] sm:$0x1]
      %v4448 = vld [vmem:[#allocation2 + $0x3c] sm:$0xf]
      %v4449 = vld [vmem:[#allocation2 + $0x40] sm:$0xf]
      %v4450 = vld [vmem:[#allocation2 + $0x44] sm:$0x1]
      %v4451 = vld [vmem:[#allocation2 + $0x48] sm:$0xf]
      %v4452 = vld [vmem:[#allocation2 + $0x4c] sm:$0xf]
      %v4453 = vld [vmem:[#allocation2 + $0x50] sm:$0x1]
      %v4454 = vld [vmem:[#allocation2 + $0x54] sm:$0xf]
      %v4455 = vld [vmem:[#allocation2 + $0x58] sm:$0xf]
      %v4456 = vld [vmem:[#allocation2 + $0x5c] sm:$0x1]
      %v4457 = vld [vmem:[#allocation2 + $0x60] sm:$0xf]
      %v4458 = vld [vmem:[#allocation2 + $0x64] sm:$0xf]
      %v4459 = vld [vmem:[#allocation2 + $0x68] sm:$0x1]
      %v4460 = vld [vmem:[#allocation2 + $0x6c] sm:$0xf]
      %v4461 = vld [vmem:[#allocation2 + $0x70] sm:$0xf]
      %v4462 = vld [vmem:[#allocation2 + $0x74] sm:$0x1]
      %v4463 = vld [vmem:[#allocation2 + $0x78] sm:$0xf]
      %v4464 = vld [vmem:[#allocation2 + $0x7c] sm:$0xf]
      %v4465 = vld [vmem:[#allocation2 + $0x80] sm:$0x1]
      %v4466 = vld [vmem:[#allocation2 + $0x84] sm:$0xf]
      %v4467 = vld [vmem:[#allocation2 + $0x88] sm:$0xf]
      %v4468 = vld [vmem:[#allocation2 + $0x8c] sm:$0x1]
      %v4469 = vld [vmem:[#allocation2 + $0x90] sm:$0xf]
      %v4470 = vld [vmem:[#allocation2 + $0x94] sm:$0xf]
      %v4471 = vld [vmem:[#allocation2 + $0x98] sm:$0x1]
      %v4472 = vld [vmem:[#allocation2 + $0x9c] sm:$0xf]
      %v4473 = vld [vmem:[#allocation2 + $0xa0] sm:$0xf]
      %v4474 = vld [vmem:[#allocation2 + $0xa4] sm:$0x1]
      %v4475 = vld [vmem:[#allocation2 + $0xa8] sm:$0xf]
      %v4476 = vld [vmem:[#allocation2 + $0xac] sm:$0xf]
      %v4477 = vld [vmem:[#allocation2 + $0xb0] sm:$0x1]
      %v4478 = vld [vmem:[#allocation2 + $0xb4] sm:$0xf]
      %v4479 = vld [vmem:[#allocation2 + $0xb8] sm:$0xf]
      %v4480 = vld [vmem:[#allocation2 + $0xbc] sm:$0x1]
      %v4513 = vunpack.c.l.b16 %v4433
      %v4514 = vunpack.c.l.b16 %v4434
      %v4515 = vunpack.c.l.b16 %v4436
      %v4516 = vunpack.c.l.b16 %v4437
      %v4517 = vunpack.c.l.b16 %v4439
      %v4518 = vunpack.c.l.b16 %v4440
      %v4519 = vunpack.c.l.b16 %v4442
      %v4520 = vunpack.c.l.b16 %v4443
      %v4521 = vunpack.c.l.b16 %v4445
      %v4522 = vunpack.c.l.b16 %v4446
      %v4523 = vunpack.c.l.b16 %v4448
      %v4524 = vunpack.c.l.b16 %v4449
      %v4525 = vunpack.c.l.b16 %v4451
      %v4526 = vunpack.c.l.b16 %v4452
      %v4527 = vunpack.c.l.b16 %v4454
      %v4528 = vunpack.c.l.b16 %v4455
      %v4529 = vunpack.c.l.b16 %v4457
      %v4530 = vunpack.c.l.b16 %v4458
      %v4531 = vunpack.c.l.b16 %v4460
      %v4532 = vunpack.c.l.b16 %v4461
      %v4533 = vunpack.c.l.b16 %v4463
      %v4534 = vunpack.c.l.b16 %v4464
      %v4535 = vunpack.c.l.b16 %v4466
      %v4536 = vunpack.c.l.b16 %v4467
      %v4537 = vunpack.c.l.b16 %v4469
      %v4538 = vunpack.c.l.b16 %v4470
      %v4539 = vunpack.c.l.b16 %v4472
      %v4540 = vunpack.c.l.b16 %v4473
      %v4541 = vunpack.c.l.b16 %v4475
      %v4542 = vunpack.c.l.b16 %v4476
      %v4543 = vunpack.c.l.b16 %v4478
      %v4544 = vunpack.c.l.b16 %v4479
      %v4545 = vpack.c.b16 %v4514, %v4513
      %v4546 = vpack.c.b16 %v4516, %v4515
      %v4547 = vpack.c.b16 %v4518, %v4517
      %v4548 = vpack.c.b16 %v4520, %v4519
      %v4549 = vpack.c.b16 %v4522, %v4521
      %v4550 = vpack.c.b16 %v4524, %v4523
      %v4551 = vpack.c.b16 %v4526, %v4525
      %v4552 = vpack.c.b16 %v4528, %v4527
      %v4553 = vpack.c.b16 %v4530, %v4529
      %v4554 = vpack.c.b16 %v4532, %v4531
      %v4555 = vpack.c.b16 %v4534, %v4533
      %v4556 = vpack.c.b16 %v4536, %v4535
      %v4557 = vpack.c.b16 %v4538, %v4537
      %v4558 = vpack.c.b16 %v4540, %v4539
      %v4559 = vpack.c.b16 %v4542, %v4541
      %v4560 = vpack.c.b16 %v4544, %v4543
      %v4577 = vunpack.c.l.b16 %v4435
      %v4578 = vunpack.c.l.b16 %v4438
      %v4579 = vunpack.c.l.b16 %v4441
      %v4580 = vunpack.c.l.b16 %v4444
      %v4581 = vunpack.c.l.b16 %v4447
      %v4582 = vunpack.c.l.b16 %v4450
      %v4583 = vunpack.c.l.b16 %v4453
      %v4584 = vunpack.c.l.b16 %v4456
      %v4585 = vunpack.c.l.b16 %v4459
      %v4586 = vunpack.c.l.b16 %v4462
      %v4587 = vunpack.c.l.b16 %v4465
      %v4588 = vunpack.c.l.b16 %v4468
      %v4589 = vunpack.c.l.b16 %v4471
      %v4590 = vunpack.c.l.b16 %v4474
      %v4591 = vunpack.c.l.b16 %v4477
      %v4592 = vunpack.c.l.b16 %v4480
      %v4593 = vpack.c.b16 %v4577, %v4577
      %v4594 = vpack.c.b16 %v4578, %v4578
      %v4595 = vpack.c.b16 %v4579, %v4579
      %v4596 = vpack.c.b16 %v4580, %v4580
      %v4597 = vpack.c.b16 %v4581, %v4581
      %v4598 = vpack.c.b16 %v4582, %v4582
      %v4599 = vpack.c.b16 %v4583, %v4583
      %v4600 = vpack.c.b16 %v4584, %v4584
      %v4601 = vpack.c.b16 %v4585, %v4585
      %v4602 = vpack.c.b16 %v4586, %v4586
      %v4603 = vpack.c.b16 %v4587, %v4587
      %v4604 = vpack.c.b16 %v4588, %v4588
      %v4605 = vpack.c.b16 %v4589, %v4589
      %v4606 = vpack.c.b16 %v4590, %v4590
      %v4607 = vpack.c.b16 %v4591, %v4591
      %v4608 = vpack.c.b16 %v4592, %v4592
      %v4610 = vshrl.u32 %v4545, 16
      %v4612 = vshll.u32 %v4545, 16
      %v4614 = vrot.slane %v4612, 1
      %v4615 = vor.u32 %v4610, %v4614
      %v4617 = vshll.u32 %v4593, 16
      %v4619 = vrot.slane %v4617, 1
      %v4620 = vsel %vm1234, %v4615, %v4619
      %v4622 = vshrl.u32 %v4546, 16
      %v4624 = vshll.u32 %v4546, 16
      %v4626 = vrot.slane %v4624, 1
      %v4627 = vor.u32 %v4622, %v4626
      %v4629 = vshll.u32 %v4594, 16
      %v4631 = vrot.slane %v4629, 1
      %v4632 = vsel %vm1234, %v4627, %v4631
      %v4634 = vshrl.u32 %v4547, 16
      %v4636 = vshll.u32 %v4547, 16
      %v4638 = vrot.slane %v4636, 1
      %v4639 = vor.u32 %v4634, %v4638
      %v4641 = vshll.u32 %v4595, 16
      %v4643 = vrot.slane %v4641, 1
      %v4644 = vsel %vm1234, %v4639, %v4643
      %v4646 = vshrl.u32 %v4548, 16
      %v4648 = vshll.u32 %v4548, 16
      %v4650 = vrot.slane %v4648, 1
      %v4651 = vor.u32 %v4646, %v4650
      %v4653 = vshll.u32 %v4596, 16
      %v4655 = vrot.slane %v4653, 1
      %v4656 = vsel %vm1234, %v4651, %v4655
      %v4658 = vshrl.u32 %v4549, 16
      %v4660 = vshll.u32 %v4549, 16
      %v4662 = vrot.slane %v4660, 1
      %v4663 = vor.u32 %v4658, %v4662
      %v4665 = vshll.u32 %v4597, 16
      %v4667 = vrot.slane %v4665, 1
      %v4668 = vsel %vm1234, %v4663, %v4667
      %v4670 = vshrl.u32 %v4550, 16
      %v4672 = vshll.u32 %v4550, 16
      %v4674 = vrot.slane %v4672, 1
      %v4675 = vor.u32 %v4670, %v4674
      %v4677 = vshll.u32 %v4598, 16
      %v4679 = vrot.slane %v4677, 1
      %v4680 = vsel %vm1234, %v4675, %v4679
      %v4682 = vshrl.u32 %v4551, 16
      %v4684 = vshll.u32 %v4551, 16
      %v4686 = vrot.slane %v4684, 1
      %v4687 = vor.u32 %v4682, %v4686
      %v4689 = vshll.u32 %v4599, 16
      %v4691 = vrot.slane %v4689, 1
      %v4692 = vsel %vm1234, %v4687, %v4691
      %v4694 = vshrl.u32 %v4552, 16
      %v4696 = vshll.u32 %v4552, 16
      %v4698 = vrot.slane %v4696, 1
      %v4699 = vor.u32 %v4694, %v4698
      %v4701 = vshll.u32 %v4600, 16
      %v4703 = vrot.slane %v4701, 1
      %v4704 = vsel %vm1234, %v4699, %v4703
      %v4706 = vshrl.u32 %v4553, 16
      %v4708 = vshll.u32 %v4553, 16
      %v4710 = vrot.slane %v4708, 1
      %v4711 = vor.u32 %v4706, %v4710
      %v4713 = vshll.u32 %v4601, 16
      %v4715 = vrot.slane %v4713, 1
      %v4716 = vsel %vm1234, %v4711, %v4715
      %v4718 = vshrl.u32 %v4554, 16
      %v4720 = vshll.u32 %v4554, 16
      %v4722 = vrot.slane %v4720, 1
      %v4723 = vor.u32 %v4718, %v4722
      %v4725 = vshll.u32 %v4602, 16
      %v4727 = vrot.slane %v4725, 1
      %v4728 = vsel %vm1234, %v4723, %v4727
      %v4730 = vshrl.u32 %v4555, 16
      %v4732 = vshll.u32 %v4555, 16
      %v4734 = vrot.slane %v4732, 1
      %v4735 = vor.u32 %v4730, %v4734
      %v4737 = vshll.u32 %v4603, 16
      %v4739 = vrot.slane %v4737, 1
      %v4740 = vsel %vm1234, %v4735, %v4739
      %v4742 = vshrl.u32 %v4556, 16
      %v4744 = vshll.u32 %v4556, 16
      %v4746 = vrot.slane %v4744, 1
      %v4747 = vor.u32 %v4742, %v4746
      %v4749 = vshll.u32 %v4604, 16
      %v4751 = vrot.slane %v4749, 1
      %v4752 = vsel %vm1234, %v4747, %v4751
      %v4754 = vshrl.u32 %v4557, 16
      %v4756 = vshll.u32 %v4557, 16
      %v4758 = vrot.slane %v4756, 1
      %v4759 = vor.u32 %v4754, %v4758
      %v4761 = vshll.u32 %v4605, 16
      %v4763 = vrot.slane %v4761, 1
      %v4764 = vsel %vm1234, %v4759, %v4763
      %v4766 = vshrl.u32 %v4558, 16
      %v4768 = vshll.u32 %v4558, 16
      %v4770 = vrot.slane %v4768, 1
      %v4771 = vor.u32 %v4766, %v4770
      %v4773 = vshll.u32 %v4606, 16
      %v4775 = vrot.slane %v4773, 1
      %v4776 = vsel %vm1234, %v4771, %v4775
      %v4778 = vshrl.u32 %v4559, 16
      %v4780 = vshll.u32 %v4559, 16
      %v4782 = vrot.slane %v4780, 1
      %v4783 = vor.u32 %v4778, %v4782
      %v4785 = vshll.u32 %v4607, 16
      %v4787 = vrot.slane %v4785, 1
      %v4788 = vsel %vm1234, %v4783, %v4787
      %v4790 = vshrl.u32 %v4560, 16
      %v4792 = vshll.u32 %v4560, 16
      %v4794 = vrot.slane %v4792, 1
      %v4795 = vor.u32 %v4790, %v4794
      %v4797 = vshll.u32 %v4608, 16
      %v4799 = vrot.slane %v4797, 1
      %v4800 = vsel %vm1234, %v4795, %v4799
      %4801 = vrot.lane.b32.xlu0 %v4620, 4
      %v4802 = vpop.permute.xlu0 %4801
      %4803 = vrot.lane.b32.xlu0 %v4632, 4
      %v4804 = vpop.permute.xlu0 %4803
      %4805 = vrot.lane.b32.xlu0 %v4644, 4
      %v4806 = vpop.permute.xlu0 %4805
      %4807 = vrot.lane.b32.xlu0 %v4656, 4
      %v4808 = vpop.permute.xlu0 %4807
      %4809 = vrot.lane.b32.xlu0 %v4668, 4
      %v4810 = vpop.permute.xlu0 %4809
      %4811 = vrot.lane.b32.xlu0 %v4680, 4
      %v4812 = vpop.permute.xlu0 %4811
      %4813 = vrot.lane.b32.xlu0 %v4692, 4
      %v4814 = vpop.permute.xlu0 %4813
      %4815 = vrot.lane.b32.xlu0 %v4704, 4
      %v4816 = vpop.permute.xlu0 %4815
      %4817 = vrot.lane.b32.xlu0 %v4716, 4
      %v4818 = vpop.permute.xlu0 %4817
      %4819 = vrot.lane.b32.xlu0 %v4728, 4
      %v4820 = vpop.permute.xlu0 %4819
      %4821 = vrot.lane.b32.xlu0 %v4740, 4
      %v4822 = vpop.permute.xlu0 %4821
      %4823 = vrot.lane.b32.xlu0 %v4752, 4
      %v4824 = vpop.permute.xlu0 %4823
      %4825 = vrot.lane.b32.xlu0 %v4764, 4
      %v4826 = vpop.permute.xlu0 %4825
      %4827 = vrot.lane.b32.xlu0 %v4776, 4
      %v4828 = vpop.permute.xlu0 %4827
      %4829 = vrot.lane.b32.xlu0 %v4788, 4
      %v4830 = vpop.permute.xlu0 %4829
      %4831 = vrot.lane.b32.xlu0 %v4800, 4
      %v4832 = vpop.permute.xlu0 %4831
      %v4833 = vrot.slane %v4545, 1
      %v4834 = vrot.slane %v4593, 1
      %v4835 = vsel %vm1459, %v4833, %v4834
      %v4836 = vrot.slane %v4546, 1
      %v4837 = vrot.slane %v4594, 1
      %v4838 = vsel %vm1459, %v4836, %v4837
      %v4839 = vrot.slane %v4547, 1
      %v4840 = vrot.slane %v4595, 1
      %v4841 = vsel %vm1459, %v4839, %v4840
      %v4842 = vrot.slane %v4548, 1
      %v4843 = vrot.slane %v4596, 1
      %v4844 = vsel %vm1459, %v4842, %v4843
      %v4845 = vrot.slane %v4549, 1
      %v4846 = vrot.slane %v4597, 1
      %v4847 = vsel %vm1459, %v4845, %v4846
      %v4848 = vrot.slane %v4550, 1
      %v4849 = vrot.slane %v4598, 1
      %v4850 = vsel %vm1459, %v4848, %v4849
      %v4851 = vrot.slane %v4551, 1
      %v4852 = vrot.slane %v4599, 1
      %v4853 = vsel %vm1459, %v4851, %v4852
      %v4854 = vrot.slane %v4552, 1
      %v4855 = vrot.slane %v4600, 1
      %v4856 = vsel %vm1459, %v4854, %v4855
      %v4857 = vrot.slane %v4553, 1
      %v4858 = vrot.slane %v4601, 1
      %v4859 = vsel %vm1459, %v4857, %v4858
      %v4860 = vrot.slane %v4554, 1
      %v4861 = vrot.slane %v4602, 1
      %v4862 = vsel %vm1459, %v4860, %v4861
      %v4863 = vrot.slane %v4555, 1
      %v4864 = vrot.slane %v4603, 1
      %v4865 = vsel %vm1459, %v4863, %v4864
      %v4866 = vrot.slane %v4556, 1
      %v4867 = vrot.slane %v4604, 1
      %v4868 = vsel %vm1459, %v4866, %v4867
      %v4869 = vrot.slane %v4557, 1
      %v4870 = vrot.slane %v4605, 1
      %v4871 = vsel %vm1459, %v4869, %v4870
      %v4872 = vrot.slane %v4558, 1
      %v4873 = vrot.slane %v4606, 1
      %v4874 = vsel %vm1459, %v4872, %v4873
      %v4875 = vrot.slane %v4559, 1
      %v4876 = vrot.slane %v4607, 1
      %v4877 = vsel %vm1459, %v4875, %v4876
      %v4878 = vrot.slane %v4560, 1
      %v4879 = vrot.slane %v4608, 1
      %v4880 = vsel %vm1459, %v4878, %v4879
      %4881 = vrot.lane.b32.xlu0 %v4835, 8
      %v4882 = vpop.permute.xlu0 %4881
      %4883 = vrot.lane.b32.xlu0 %v4838, 8
      %v4884 = vpop.permute.xlu0 %4883
      %4885 = vrot.lane.b32.xlu0 %v4841, 8
      %v4886 = vpop.permute.xlu0 %4885
      %4887 = vrot.lane.b32.xlu0 %v4844, 8
      %v4888 = vpop.permute.xlu0 %4887
      %4889 = vrot.lane.b32.xlu0 %v4847, 8
      %v4890 = vpop.permute.xlu0 %4889
      %4891 = vrot.lane.b32.xlu0 %v4850, 8
      %v4892 = vpop.permute.xlu0 %4891
      %4893 = vrot.lane.b32.xlu0 %v4853, 8
      %v4894 = vpop.permute.xlu0 %4893
      %4895 = vrot.lane.b32.xlu0 %v4856, 8
      %v4896 = vpop.permute.xlu0 %4895
      %4897 = vrot.lane.b32.xlu0 %v4859, 8
      %v4898 = vpop.permute.xlu0 %4897
      %4899 = vrot.lane.b32.xlu0 %v4862, 8
      %v4900 = vpop.permute.xlu0 %4899
      %4901 = vrot.lane.b32.xlu0 %v4865, 8
      %v4902 = vpop.permute.xlu0 %4901
      %4903 = vrot.lane.b32.xlu0 %v4868, 8
      %v4904 = vpop.permute.xlu0 %4903
      %4905 = vrot.lane.b32.xlu0 %v4871, 8
      %v4906 = vpop.permute.xlu0 %4905
      %4907 = vrot.lane.b32.xlu0 %v4874, 8
      %v4908 = vpop.permute.xlu0 %4907
      %4909 = vrot.lane.b32.xlu0 %v4877, 8
      %v4910 = vpop.permute.xlu0 %4909
      %4911 = vrot.lane.b32.xlu0 %v4880, 8
      %v4912 = vpop.permute.xlu0 %4911
      %v4914 = vsel %vm1540, %v4545, %v4802
      %v4916 = vsel %vm1540, %v4546, %v4804
      %v4918 = vsel %vm1540, %v4547, %v4806
      %v4920 = vsel %vm1540, %v4548, %v4808
      %v4922 = vsel %vm1540, %v4549, %v4810
      %v4924 = vsel %vm1540, %v4550, %v4812
      %v4926 = vsel %vm1540, %v4551, %v4814
      %v4928 = vsel %vm1540, %v4552, %v4816
      %v4930 = vsel %vm1540, %v4553, %v4818
      %v4932 = vsel %vm1540, %v4554, %v4820
      %v4934 = vsel %vm1540, %v4555, %v4822
      %v4936 = vsel %vm1540, %v4556, %v4824
      %v4938 = vsel %vm1540, %v4557, %v4826
      %v4940 = vsel %vm1540, %v4558, %v4828
      %v4942 = vsel %vm1540, %v4559, %v4830
      %v4944 = vsel %vm1540, %v4560, %v4832
      %v4946 = vsel %vm1573, %v4914, %v4882
      %v4948 = vsel %vm1573, %v4916, %v4884
      %v4950 = vsel %vm1573, %v4918, %v4886
      %v4952 = vsel %vm1573, %v4920, %v4888
      %v4954 = vsel %vm1573, %v4922, %v4890
      %v4956 = vsel %vm1573, %v4924, %v4892
      %v4958 = vsel %vm1573, %v4926, %v4894
      %v4960 = vsel %vm1573, %v4928, %v4896
      %v4962 = vsel %vm1573, %v4930, %v4898
      %v4964 = vsel %vm1573, %v4932, %v4900
      %v4966 = vsel %vm1573, %v4934, %v4902
      %v4968 = vsel %vm1573, %v4936, %v4904
      %v4970 = vsel %vm1573, %v4938, %v4906
      %v4972 = vsel %vm1573, %v4940, %v4908
      %v4974 = vsel %vm1573, %v4942, %v4910
      %v4976 = vsel %vm1573, %v4944, %v4912
      %v4977 = vld [vmem:[%s635] sm:$0xf]
      %v4978 = vld [vmem:[%s635 + $0x4] sm:$0xf]
      %v4979 = vld [vmem:[%s635 + $0x8] sm:$0x1]
      %v4980 = vld [vmem:[%s635 + $0xc] sm:$0xf]
      %v4981 = vld [vmem:[%s635 + $0x10] sm:$0xf]
      %v4982 = vld [vmem:[%s635 + $0x14] sm:$0x1]
      %v4983 = vld [vmem:[%s635 + $0x18] sm:$0xf]
      %v4984 = vld [vmem:[%s635 + $0x1c] sm:$0xf]
      %v4985 = vld [vmem:[%s635 + $0x20] sm:$0x1]
      %v4986 = vld [vmem:[%s635 + $0x24] sm:$0xf]
      %v4987 = vld [vmem:[%s635 + $0x28] sm:$0xf]
      %v4988 = vld [vmem:[%s635 + $0x2c] sm:$0x1]
      %v4989 = vld [vmem:[%s635 + $0x30] sm:$0xf]
      %v4990 = vld [vmem:[%s635 + $0x34] sm:$0xf]
      %v4991 = vld [vmem:[%s635 + $0x38] sm:$0x1]
      %v4992 = vld [vmem:[%s635 + $0x3c] sm:$0xf]
      %v4993 = vld [vmem:[%s635 + $0x40] sm:$0xf]
      %v4994 = vld [vmem:[%s635 + $0x44] sm:$0x1]
      %v4995 = vld [vmem:[%s635 + $0x48] sm:$0xf]
      %v4996 = vld [vmem:[%s635 + $0x4c] sm:$0xf]
      %v4997 = vld [vmem:[%s635 + $0x50] sm:$0x1]
      %v4998 = vld [vmem:[%s635 + $0x54] sm:$0xf]
      %v4999 = vld [vmem:[%s635 + $0x58] sm:$0xf]
      %v5000 = vld [vmem:[%s635 + $0x5c] sm:$0x1]
      %v5001 = vld [vmem:[%s635 + $0x60] sm:$0xf]
      %v5002 = vld [vmem:[%s635 + $0x64] sm:$0xf]
      %v5003 = vld [vmem:[%s635 + $0x68] sm:$0x1]
      %v5004 = vld [vmem:[%s635 + $0x6c] sm:$0xf]
      %v5005 = vld [vmem:[%s635 + $0x70] sm:$0xf]
      %v5006 = vld [vmem:[%s635 + $0x74] sm:$0x1]
      %v5007 = vld [vmem:[%s635 + $0x78] sm:$0xf]
      %v5008 = vld [vmem:[%s635 + $0x7c] sm:$0xf]
      %v5009 = vld [vmem:[%s635 + $0x80] sm:$0x1]
      %v5010 = vld [vmem:[%s635 + $0x84] sm:$0xf]
      %v5011 = vld [vmem:[%s635 + $0x88] sm:$0xf]
      %v5012 = vld [vmem:[%s635 + $0x8c] sm:$0x1]
      %v5013 = vld [vmem:[%s635 + $0x90] sm:$0xf]
      %v5014 = vld [vmem:[%s635 + $0x94] sm:$0xf]
      %v5015 = vld [vmem:[%s635 + $0x98] sm:$0x1]
      %v5016 = vld [vmem:[%s635 + $0x9c] sm:$0xf]
      %v5017 = vld [vmem:[%s635 + $0xa0] sm:$0xf]
      %v5018 = vld [vmem:[%s635 + $0xa4] sm:$0x1]
      %v5019 = vld [vmem:[%s635 + $0xa8] sm:$0xf]
      %v5020 = vld [vmem:[%s635 + $0xac] sm:$0xf]
      %v5021 = vld [vmem:[%s635 + $0xb0] sm:$0x1]
      %v5022 = vld [vmem:[%s635 + $0xb4] sm:$0xf]
      %v5023 = vld [vmem:[%s635 + $0xb8] sm:$0xf]
      %v5024 = vld [vmem:[%s635 + $0xbc] sm:$0x1]
      %v5057 = vunpack.c.l.b16 %v4977
      %v5058 = vunpack.c.l.b16 %v4978
      %v5059 = vunpack.c.l.b16 %v4980
      %v5060 = vunpack.c.l.b16 %v4981
      %v5061 = vunpack.c.l.b16 %v4983
      %v5062 = vunpack.c.l.b16 %v4984
      %v5063 = vunpack.c.l.b16 %v4986
      %v5064 = vunpack.c.l.b16 %v4987
      %v5065 = vunpack.c.l.b16 %v4989
      %v5066 = vunpack.c.l.b16 %v4990
      %v5067 = vunpack.c.l.b16 %v4992
      %v5068 = vunpack.c.l.b16 %v4993
      %v5069 = vunpack.c.l.b16 %v4995
      %v5070 = vunpack.c.l.b16 %v4996
      %v5071 = vunpack.c.l.b16 %v4998
      %v5072 = vunpack.c.l.b16 %v4999
      %v5073 = vunpack.c.l.b16 %v5001
      %v5074 = vunpack.c.l.b16 %v5002
      %v5075 = vunpack.c.l.b16 %v5004
      %v5076 = vunpack.c.l.b16 %v5005
      %v5077 = vunpack.c.l.b16 %v5007
      %v5078 = vunpack.c.l.b16 %v5008
      %v5079 = vunpack.c.l.b16 %v5010
      %v5080 = vunpack.c.l.b16 %v5011
      %v5081 = vunpack.c.l.b16 %v5013
      %v5082 = vunpack.c.l.b16 %v5014
      %v5083 = vunpack.c.l.b16 %v5016
      %v5084 = vunpack.c.l.b16 %v5017
      %v5085 = vunpack.c.l.b16 %v5019
      %v5086 = vunpack.c.l.b16 %v5020
      %v5087 = vunpack.c.l.b16 %v5022
      %v5088 = vunpack.c.l.b16 %v5023
      %v5089 = vpack.c.b16 %v5058, %v5057
      %v5090 = vpack.c.b16 %v5060, %v5059
      %v5091 = vpack.c.b16 %v5062, %v5061
      %v5092 = vpack.c.b16 %v5064, %v5063
      %v5093 = vpack.c.b16 %v5066, %v5065
      %v5094 = vpack.c.b16 %v5068, %v5067
      %v5095 = vpack.c.b16 %v5070, %v5069
      %v5096 = vpack.c.b16 %v5072, %v5071
      %v5097 = vpack.c.b16 %v5074, %v5073
      %v5098 = vpack.c.b16 %v5076, %v5075
      %v5099 = vpack.c.b16 %v5078, %v5077
      %v5100 = vpack.c.b16 %v5080, %v5079
      %v5101 = vpack.c.b16 %v5082, %v5081
      %v5102 = vpack.c.b16 %v5084, %v5083
      %v5103 = vpack.c.b16 %v5086, %v5085
      %v5104 = vpack.c.b16 %v5088, %v5087
      %v5121 = vunpack.c.l.b16 %v4979
      %v5122 = vunpack.c.l.b16 %v4982
      %v5123 = vunpack.c.l.b16 %v4985
      %v5124 = vunpack.c.l.b16 %v4988
      %v5125 = vunpack.c.l.b16 %v4991
      %v5126 = vunpack.c.l.b16 %v4994
      %v5127 = vunpack.c.l.b16 %v4997
      %v5128 = vunpack.c.l.b16 %v5000
      %v5129 = vunpack.c.l.b16 %v5003
      %v5130 = vunpack.c.l.b16 %v5006
      %v5131 = vunpack.c.l.b16 %v5009
      %v5132 = vunpack.c.l.b16 %v5012
      %v5133 = vunpack.c.l.b16 %v5015
      %v5134 = vunpack.c.l.b16 %v5018
      %v5135 = vunpack.c.l.b16 %v5021
      %v5136 = vunpack.c.l.b16 %v5024
      %v5137 = vpack.c.b16 %v5121, %v5121
      %v5138 = vpack.c.b16 %v5122, %v5122
      %v5139 = vpack.c.b16 %v5123, %v5123
      %v5140 = vpack.c.b16 %v5124, %v5124
      %v5141 = vpack.c.b16 %v5125, %v5125
      %v5142 = vpack.c.b16 %v5126, %v5126
      %v5143 = vpack.c.b16 %v5127, %v5127
      %v5144 = vpack.c.b16 %v5128, %v5128
      %v5145 = vpack.c.b16 %v5129, %v5129
      %v5146 = vpack.c.b16 %v5130, %v5130
      %v5147 = vpack.c.b16 %v5131, %v5131
      %v5148 = vpack.c.b16 %v5132, %v5132
      %v5149 = vpack.c.b16 %v5133, %v5133
      %v5150 = vpack.c.b16 %v5134, %v5134
      %v5151 = vpack.c.b16 %v5135, %v5135
      %v5152 = vpack.c.b16 %v5136, %v5136
      %v5154 = vshrl.u32 %v5089, 16
      %v5156 = vshll.u32 %v5089, 16
      %v5158 = vrot.slane %v5156, 1
      %v5159 = vor.u32 %v5154, %v5158
      %v5161 = vshll.u32 %v5137, 16
      %v5163 = vrot.slane %v5161, 1
      %v5164 = vsel %vm1234, %v5159, %v5163
      %v5166 = vshrl.u32 %v5090, 16
      %v5168 = vshll.u32 %v5090, 16
      %v5170 = vrot.slane %v5168, 1
      %v5171 = vor.u32 %v5166, %v5170
      %v5173 = vshll.u32 %v5138, 16
      %v5175 = vrot.slane %v5173, 1
      %v5176 = vsel %vm1234, %v5171, %v5175
      %v5178 = vshrl.u32 %v5091, 16
      %v5180 = vshll.u32 %v5091, 16
      %v5182 = vrot.slane %v5180, 1
      %v5183 = vor.u32 %v5178, %v5182
      %v5185 = vshll.u32 %v5139, 16
      %v5187 = vrot.slane %v5185, 1
      %v5188 = vsel %vm1234, %v5183, %v5187
      %v5190 = vshrl.u32 %v5092, 16
      %v5192 = vshll.u32 %v5092, 16
      %v5194 = vrot.slane %v5192, 1
      %v5195 = vor.u32 %v5190, %v5194
      %v5197 = vshll.u32 %v5140, 16
      %v5199 = vrot.slane %v5197, 1
      %v5200 = vsel %vm1234, %v5195, %v5199
      %v5202 = vshrl.u32 %v5093, 16
      %v5204 = vshll.u32 %v5093, 16
      %v5206 = vrot.slane %v5204, 1
      %v5207 = vor.u32 %v5202, %v5206
      %v5209 = vshll.u32 %v5141, 16
      %v5211 = vrot.slane %v5209, 1
      %v5212 = vsel %vm1234, %v5207, %v5211
      %v5214 = vshrl.u32 %v5094, 16
      %v5216 = vshll.u32 %v5094, 16
      %v5218 = vrot.slane %v5216, 1
      %v5219 = vor.u32 %v5214, %v5218
      %v5221 = vshll.u32 %v5142, 16
      %v5223 = vrot.slane %v5221, 1
      %v5224 = vsel %vm1234, %v5219, %v5223
      %v5226 = vshrl.u32 %v5095, 16
      %v5228 = vshll.u32 %v5095, 16
      %v5230 = vrot.slane %v5228, 1
      %v5231 = vor.u32 %v5226, %v5230
      %v5233 = vshll.u32 %v5143, 16
      %v5235 = vrot.slane %v5233, 1
      %v5236 = vsel %vm1234, %v5231, %v5235
      %v5238 = vshrl.u32 %v5096, 16
      %v5240 = vshll.u32 %v5096, 16
      %v5242 = vrot.slane %v5240, 1
      %v5243 = vor.u32 %v5238, %v5242
      %v5245 = vshll.u32 %v5144, 16
      %v5247 = vrot.slane %v5245, 1
      %v5248 = vsel %vm1234, %v5243, %v5247
      %v5250 = vshrl.u32 %v5097, 16
      %v5252 = vshll.u32 %v5097, 16
      %v5254 = vrot.slane %v5252, 1
      %v5255 = vor.u32 %v5250, %v5254
      %v5257 = vshll.u32 %v5145, 16
      %v5259 = vrot.slane %v5257, 1
      %v5260 = vsel %vm1234, %v5255, %v5259
      %v5262 = vshrl.u32 %v5098, 16
      %v5264 = vshll.u32 %v5098, 16
      %v5266 = vrot.slane %v5264, 1
      %v5267 = vor.u32 %v5262, %v5266
      %v5269 = vshll.u32 %v5146, 16
      %v5271 = vrot.slane %v5269, 1
      %v5272 = vsel %vm1234, %v5267, %v5271
      %v5274 = vshrl.u32 %v5099, 16
      %v5276 = vshll.u32 %v5099, 16
      %v5278 = vrot.slane %v5276, 1
      %v5279 = vor.u32 %v5274, %v5278
      %v5281 = vshll.u32 %v5147, 16
      %v5283 = vrot.slane %v5281, 1
      %v5284 = vsel %vm1234, %v5279, %v5283
      %v5286 = vshrl.u32 %v5100, 16
      %v5288 = vshll.u32 %v5100, 16
      %v5290 = vrot.slane %v5288, 1
      %v5291 = vor.u32 %v5286, %v5290
      %v5293 = vshll.u32 %v5148, 16
      %v5295 = vrot.slane %v5293, 1
      %v5296 = vsel %vm1234, %v5291, %v5295
      %v5298 = vshrl.u32 %v5101, 16
      %v5300 = vshll.u32 %v5101, 16
      %v5302 = vrot.slane %v5300, 1
      %v5303 = vor.u32 %v5298, %v5302
      %v5305 = vshll.u32 %v5149, 16
      %v5307 = vrot.slane %v5305, 1
      %v5308 = vsel %vm1234, %v5303, %v5307
      %v5310 = vshrl.u32 %v5102, 16
      %v5312 = vshll.u32 %v5102, 16
      %v5314 = vrot.slane %v5312, 1
      %v5315 = vor.u32 %v5310, %v5314
      %v5317 = vshll.u32 %v5150, 16
      %v5319 = vrot.slane %v5317, 1
      %v5320 = vsel %vm1234, %v5315, %v5319
      %v5322 = vshrl.u32 %v5103, 16
      %v5324 = vshll.u32 %v5103, 16
      %v5326 = vrot.slane %v5324, 1
      %v5327 = vor.u32 %v5322, %v5326
      %v5329 = vshll.u32 %v5151, 16
      %v5331 = vrot.slane %v5329, 1
      %v5332 = vsel %vm1234, %v5327, %v5331
      %v5334 = vshrl.u32 %v5104, 16
      %v5336 = vshll.u32 %v5104, 16
      %v5338 = vrot.slane %v5336, 1
      %v5339 = vor.u32 %v5334, %v5338
      %v5341 = vshll.u32 %v5152, 16
      %v5343 = vrot.slane %v5341, 1
      %v5344 = vsel %vm1234, %v5339, %v5343
      %5345 = vrot.lane.b32.xlu0 %v5164, 4
      %v5346 = vpop.permute.xlu0 %5345
      %5347 = vrot.lane.b32.xlu0 %v5176, 4
      %v5348 = vpop.permute.xlu0 %5347
      %5349 = vrot.lane.b32.xlu0 %v5188, 4
      %v5350 = vpop.permute.xlu0 %5349
      %5351 = vrot.lane.b32.xlu0 %v5200, 4
      %v5352 = vpop.permute.xlu0 %5351
      %5353 = vrot.lane.b32.xlu0 %v5212, 4
      %v5354 = vpop.permute.xlu0 %5353
      %5355 = vrot.lane.b32.xlu0 %v5224, 4
      %v5356 = vpop.permute.xlu0 %5355
      %5357 = vrot.lane.b32.xlu0 %v5236, 4
      %v5358 = vpop.permute.xlu0 %5357
      %5359 = vrot.lane.b32.xlu0 %v5248, 4
      %v5360 = vpop.permute.xlu0 %5359
      %5361 = vrot.lane.b32.xlu0 %v5260, 4
      %v5362 = vpop.permute.xlu0 %5361
      %5363 = vrot.lane.b32.xlu0 %v5272, 4
      %v5364 = vpop.permute.xlu0 %5363
      %5365 = vrot.lane.b32.xlu0 %v5284, 4
      %v5366 = vpop.permute.xlu0 %5365
      %5367 = vrot.lane.b32.xlu0 %v5296, 4
      %v5368 = vpop.permute.xlu0 %5367
      %5369 = vrot.lane.b32.xlu0 %v5308, 4
      %v5370 = vpop.permute.xlu0 %5369
      %5371 = vrot.lane.b32.xlu0 %v5320, 4
      %v5372 = vpop.permute.xlu0 %5371
      %5373 = vrot.lane.b32.xlu0 %v5332, 4
      %v5374 = vpop.permute.xlu0 %5373
      %5375 = vrot.lane.b32.xlu0 %v5344, 4
      %v5376 = vpop.permute.xlu0 %5375
      %v5377 = vrot.slane %v5089, 1
      %v5378 = vrot.slane %v5137, 1
      %v5379 = vsel %vm1459, %v5377, %v5378
      %v5380 = vrot.slane %v5090, 1
      %v5381 = vrot.slane %v5138, 1
      %v5382 = vsel %vm1459, %v5380, %v5381
      %v5383 = vrot.slane %v5091, 1
      %v5384 = vrot.slane %v5139, 1
      %v5385 = vsel %vm1459, %v5383, %v5384
      %v5386 = vrot.slane %v5092, 1
      %v5387 = vrot.slane %v5140, 1
      %v5388 = vsel %vm1459, %v5386, %v5387
      %v5389 = vrot.slane %v5093, 1
      %v5390 = vrot.slane %v5141, 1
      %v5391 = vsel %vm1459, %v5389, %v5390
      %v5392 = vrot.slane %v5094, 1
      %v5393 = vrot.slane %v5142, 1
      %v5394 = vsel %vm1459, %v5392, %v5393
      %v5395 = vrot.slane %v5095, 1
      %v5396 = vrot.slane %v5143, 1
      %v5397 = vsel %vm1459, %v5395, %v5396
      %v5398 = vrot.slane %v5096, 1
      %v5399 = vrot.slane %v5144, 1
      %v5400 = vsel %vm1459, %v5398, %v5399
      %v5401 = vrot.slane %v5097, 1
      %v5402 = vrot.slane %v5145, 1
      %v5403 = vsel %vm1459, %v5401, %v5402
      %v5404 = vrot.slane %v5098, 1
      %v5405 = vrot.slane %v5146, 1
      %v5406 = vsel %vm1459, %v5404, %v5405
      %v5407 = vrot.slane %v5099, 1
      %v5408 = vrot.slane %v5147, 1
      %v5409 = vsel %vm1459, %v5407, %v5408
      %v5410 = vrot.slane %v5100, 1
      %v5411 = vrot.slane %v5148, 1
      %v5412 = vsel %vm1459, %v5410, %v5411
      %v5413 = vrot.slane %v5101, 1
      %v5414 = vrot.slane %v5149, 1
      %v5415 = vsel %vm1459, %v5413, %v5414
      %v5416 = vrot.slane %v5102, 1
      %v5417 = vrot.slane %v5150, 1
      %v5418 = vsel %vm1459, %v5416, %v5417
      %v5419 = vrot.slane %v5103, 1
      %v5420 = vrot.slane %v5151, 1
      %v5421 = vsel %vm1459, %v5419, %v5420
      %v5422 = vrot.slane %v5104, 1
      %v5423 = vrot.slane %v5152, 1
      %v5424 = vsel %vm1459, %v5422, %v5423
      %5425 = vrot.lane.b32.xlu0 %v5379, 8
      %v5426 = vpop.permute.xlu0 %5425
      %5427 = vrot.lane.b32.xlu0 %v5382, 8
      %v5428 = vpop.permute.xlu0 %5427
      %5429 = vrot.lane.b32.xlu0 %v5385, 8
      %v5430 = vpop.permute.xlu0 %5429
      %5431 = vrot.lane.b32.xlu0 %v5388, 8
      %v5432 = vpop.permute.xlu0 %5431
      %5433 = vrot.lane.b32.xlu0 %v5391, 8
      %v5434 = vpop.permute.xlu0 %5433
      %5435 = vrot.lane.b32.xlu0 %v5394, 8
      %v5436 = vpop.permute.xlu0 %5435
      %5437 = vrot.lane.b32.xlu0 %v5397, 8
      %v5438 = vpop.permute.xlu0 %5437
      %5439 = vrot.lane.b32.xlu0 %v5400, 8
      %v5440 = vpop.permute.xlu0 %5439
      %5441 = vrot.lane.b32.xlu0 %v5403, 8
      %v5442 = vpop.permute.xlu0 %5441
      %5443 = vrot.lane.b32.xlu0 %v5406, 8
      %v5444 = vpop.permute.xlu0 %5443
      %5445 = vrot.lane.b32.xlu0 %v5409, 8
      %v5446 = vpop.permute.xlu0 %5445
      %5447 = vrot.lane.b32.xlu0 %v5412, 8
      %v5448 = vpop.permute.xlu0 %5447
      %5449 = vrot.lane.b32.xlu0 %v5415, 8
      %v5450 = vpop.permute.xlu0 %5449
      %5451 = vrot.lane.b32.xlu0 %v5418, 8
      %v5452 = vpop.permute.xlu0 %5451
      %5453 = vrot.lane.b32.xlu0 %v5421, 8
      %v5454 = vpop.permute.xlu0 %5453
      %5455 = vrot.lane.b32.xlu0 %v5424, 8
      %v5456 = vpop.permute.xlu0 %5455
      %v5458 = vsel %vm1540, %v5089, %v5346
      %v5460 = vsel %vm1540, %v5090, %v5348
      %v5462 = vsel %vm1540, %v5091, %v5350
      %v5464 = vsel %vm1540, %v5092, %v5352
      %v5466 = vsel %vm1540, %v5093, %v5354
      %v5468 = vsel %vm1540, %v5094, %v5356
      %v5470 = vsel %vm1540, %v5095, %v5358
      %v5472 = vsel %vm1540, %v5096, %v5360
      %v5474 = vsel %vm1540, %v5097, %v5362
      %v5476 = vsel %vm1540, %v5098, %v5364
      %v5478 = vsel %vm1540, %v5099, %v5366
      %v5480 = vsel %vm1540, %v5100, %v5368
      %v5482 = vsel %vm1540, %v5101, %v5370
      %v5484 = vsel %vm1540, %v5102, %v5372
      %v5486 = vsel %vm1540, %v5103, %v5374
      %v5488 = vsel %vm1540, %v5104, %v5376
      %v5490 = vsel %vm1573, %v5458, %v5426
      %v5492 = vsel %vm1573, %v5460, %v5428
      %v5494 = vsel %vm1573, %v5462, %v5430
      %v5496 = vsel %vm1573, %v5464, %v5432
      %v5498 = vsel %vm1573, %v5466, %v5434
      %v5500 = vsel %vm1573, %v5468, %v5436
      %v5502 = vsel %vm1573, %v5470, %v5438
      %v5504 = vsel %vm1573, %v5472, %v5440
      %v5506 = vsel %vm1573, %v5474, %v5442
      %v5508 = vsel %vm1573, %v5476, %v5444
      %v5510 = vsel %vm1573, %v5478, %v5446
      %v5512 = vsel %vm1573, %v5480, %v5448
      %v5514 = vsel %vm1573, %v5482, %v5450
      %v5516 = vsel %vm1573, %v5484, %v5452
      %v5518 = vsel %vm1573, %v5486, %v5454
      %v5520 = vsel %vm1573, %v5488, %v5456
      %v5523 = vunpack.c.l.b16 %v180
      %v5524 = vunpack.c.l.b16 %v181
      %v5525 = vpack.c.b16 %v5524, %v5523
      %v5526 = vsel %vm2155, %v5490, 0
      %v5528 = vsel %vm2155, %v5492, 0
      %v5530 = vsel %vm2155, %v5494, 0
      %v5532 = vsel %vm2155, %v5496, 0
      %v5534 = vsel %vm2155, %v5498, 0
      %v5536 = vsel %vm2155, %v5500, 0
      %v5538 = vsel %vm2155, %v5502, 0
      %v5540 = vsel %vm2155, %v5504, 0
      %v5542 = vsel %vm2155, %v5506, 0
      %v5544 = vsel %vm2155, %v5508, 0
      %v5546 = vsel %vm2155, %v5510, 0
      %v5548 = vsel %vm2155, %v5512, 0
      %v5550 = vsel %vm2155, %v5514, 0
      %v5552 = vsel %vm2155, %v5516, 0
      %v5554 = vsel %vm2155, %v5518, 0
      %v5556 = vsel %vm2155, %v5520, 0
      %v5559 = vsel %vm2188, %v5525, 0
      %5561 = vmatprep.subr.bf16.mxu0 0
      %5562 = vmatpush1.bf16.msra.mxu0 0
      %5563 = vmatprep.subr.bf16.mxu0 0
      %5564 = vmatpush1.bf16.msra.mxu0 0
      %5565 = vmatprep.subr.bf16.mxu0 0
      %5566 = vmatpush1.bf16.msra.mxu0 0
      %5567 = vmatprep.subr.bf16.mxu0 0
      %5568 = vmatpush1.bf16.msra.mxu0 0
      %5569 = vmatprep.subr.bf16.mxu0 0
      %5570 = vmatpush1.bf16.msra.mxu0 0
      %5571 = vmatprep.subr.bf16.mxu0 0
      %5572 = vmatpush1.bf16.msra.mxu0 0
      %5573 = vmatprep.subr.bf16.mxu0 0
      %5574 = vmatpush1.bf16.msra.mxu0 0
      %5575 = vmatprep.subr.bf16.mxu0 0
      %5576 = vmatpush1.bf16.msra.mxu0 %v5559
      %5577 = vmatprep.subr.bf16.mxu0 0
      %5578 = vmatpush2.bf16.msra.mxu0 0
      %5579 = vmatprep.subr.bf16.mxu0 0
      %5580 = vmatpush2.bf16.msra.mxu0 0
      %5581 = vmatprep.subr.bf16.mxu0 0
      %5582 = vmatpush2.bf16.msra.mxu0 0
      %5583 = vmatprep.subr.bf16.mxu0 0
      %5584 = vmatpush2.bf16.msra.mxu0 0
      %5585 = vmatprep.subr.bf16.mxu0 0
      %5586 = vmatpush2.bf16.msra.mxu0 0
      %5587 = vmatprep.subr.bf16.mxu0 0
      %5588 = vmatpush2.bf16.msra.mxu0 0
      %5589 = vmatprep.subr.bf16.mxu0 0
      %5590 = vmatpush2.bf16.msra.mxu0 0
      %5591 = vmatprep.subr.bf16.mxu0 0
      %5592 = vmatpush2.bf16.msra.mxu0 0
      %5593 = vmatprep.mubr.bf16.mxu0 0
      %5594 = vmatmul.mubr.bf16.gmra.mxu0 %v5526
      %v5595 = vpop.f32.mrf.mxu0
      %v5596 = vadd.f32 0.0, %v5595
      %v5597 = vpop.f32.mrf.mxu0
      %v5598 = vpop.f32.mrf.mxu0
      %v5599 = vadd.f32 0.0, %v5598
      %v5600 = vpop.f32.mrf.mxu0
      %5601 = vmatprep.mubr.bf16.mxu0 0
      %5602 = vmatmul.mubr.bf16.gmra.mxu0 %v5528
      %v5603 = vpop.f32.mrf.mxu0
      %v5604 = vadd.f32 0.0, %v5603
      %v5605 = vpop.f32.mrf.mxu0
      %v5606 = vpop.f32.mrf.mxu0
      %v5607 = vadd.f32 0.0, %v5606
      %v5608 = vpop.f32.mrf.mxu0
      %5609 = vmatprep.mubr.bf16.mxu0 0
      %5610 = vmatmul.mubr.bf16.gmra.mxu0 %v5530
      %v5611 = vpop.f32.mrf.mxu0
      %v5612 = vadd.f32 0.0, %v5611
      %v5613 = vpop.f32.mrf.mxu0
      %v5614 = vpop.f32.mrf.mxu0
      %v5615 = vadd.f32 0.0, %v5614
      %v5616 = vpop.f32.mrf.mxu0
      %5617 = vmatprep.mubr.bf16.mxu0 0
      %5618 = vmatmul.mubr.bf16.gmra.mxu0 %v5532
      %v5619 = vpop.f32.mrf.mxu0
      %v5620 = vadd.f32 0.0, %v5619
      %v5621 = vpop.f32.mrf.mxu0
      %v5622 = vpop.f32.mrf.mxu0
      %v5623 = vadd.f32 0.0, %v5622
      %v5624 = vpop.f32.mrf.mxu0
      %5625 = vmatprep.mubr.bf16.mxu0 0
      %5626 = vmatmul.mubr.bf16.gmra.mxu0 %v5534
      %v5627 = vpop.f32.mrf.mxu0
      %v5628 = vadd.f32 0.0, %v5627
      %v5629 = vpop.f32.mrf.mxu0
      %v5630 = vpop.f32.mrf.mxu0
      %v5631 = vadd.f32 0.0, %v5630
      %v5632 = vpop.f32.mrf.mxu0
      %5633 = vmatprep.mubr.bf16.mxu0 0
      %5634 = vmatmul.mubr.bf16.gmra.mxu0 %v5536
      %v5635 = vpop.f32.mrf.mxu0
      %v5636 = vadd.f32 0.0, %v5635
      %v5637 = vpop.f32.mrf.mxu0
      %v5638 = vpop.f32.mrf.mxu0
      %v5639 = vadd.f32 0.0, %v5638
      %v5640 = vpop.f32.mrf.mxu0
      %5641 = vmatprep.mubr.bf16.mxu0 0
      %5642 = vmatmul.mubr.bf16.gmra.mxu0 %v5538
      %v5643 = vpop.f32.mrf.mxu0
      %v5644 = vadd.f32 0.0, %v5643
      %v5645 = vpop.f32.mrf.mxu0
      %v5646 = vpop.f32.mrf.mxu0
      %v5647 = vadd.f32 0.0, %v5646
      %v5648 = vpop.f32.mrf.mxu0
      %5649 = vmatprep.mubr.bf16.mxu0 0
      %5650 = vmatmul.mubr.bf16.gmra.mxu0 %v5540
      %v5651 = vpop.f32.mrf.mxu0
      %v5652 = vadd.f32 0.0, %v5651
      %v5653 = vpop.f32.mrf.mxu0
      %v5654 = vpop.f32.mrf.mxu0
      %v5655 = vadd.f32 0.0, %v5654
      %v5656 = vpop.f32.mrf.mxu0
      %5657 = vmatprep.mubr.bf16.mxu0 0
      %5658 = vmatmul.mubr.bf16.gmra.mxu0 %v5542
      %v5659 = vpop.f32.mrf.mxu0
      %v5660 = vadd.f32 0.0, %v5659
      %v5661 = vpop.f32.mrf.mxu0
      %v5662 = vpop.f32.mrf.mxu0
      %v5663 = vadd.f32 0.0, %v5662
      %v5664 = vpop.f32.mrf.mxu0
      %5665 = vmatprep.mubr.bf16.mxu0 0
      %5666 = vmatmul.mubr.bf16.gmra.mxu0 %v5544
      %v5667 = vpop.f32.mrf.mxu0
      %v5668 = vadd.f32 0.0, %v5667
      %v5669 = vpop.f32.mrf.mxu0
      %v5670 = vpop.f32.mrf.mxu0
      %v5671 = vadd.f32 0.0, %v5670
      %v5672 = vpop.f32.mrf.mxu0
      %5673 = vmatprep.mubr.bf16.mxu0 0
      %5674 = vmatmul.mubr.bf16.gmra.mxu0 %v5546
      %v5675 = vpop.f32.mrf.mxu0
      %v5676 = vadd.f32 0.0, %v5675
      %v5677 = vpop.f32.mrf.mxu0
      %v5678 = vpop.f32.mrf.mxu0
      %v5679 = vadd.f32 0.0, %v5678
      %v5680 = vpop.f32.mrf.mxu0
      %5681 = vmatprep.mubr.bf16.mxu0 0
      %5682 = vmatmul.mubr.bf16.gmra.mxu0 %v5548
      %v5683 = vpop.f32.mrf.mxu0
      %v5684 = vadd.f32 0.0, %v5683
      %v5685 = vpop.f32.mrf.mxu0
      %v5686 = vpop.f32.mrf.mxu0
      %v5687 = vadd.f32 0.0, %v5686
      %v5688 = vpop.f32.mrf.mxu0
      %5689 = vmatprep.mubr.bf16.mxu0 0
      %5690 = vmatmul.mubr.bf16.gmra.mxu0 %v5550
      %v5691 = vpop.f32.mrf.mxu0
      %v5692 = vadd.f32 0.0, %v5691
      %v5693 = vpop.f32.mrf.mxu0
      %v5694 = vpop.f32.mrf.mxu0
      %v5695 = vadd.f32 0.0, %v5694
      %v5696 = vpop.f32.mrf.mxu0
      %5697 = vmatprep.mubr.bf16.mxu0 0
      %5698 = vmatmul.mubr.bf16.gmra.mxu0 %v5552
      %v5699 = vpop.f32.mrf.mxu0
      %v5700 = vadd.f32 0.0, %v5699
      %v5701 = vpop.f32.mrf.mxu0
      %v5702 = vpop.f32.mrf.mxu0
      %v5703 = vadd.f32 0.0, %v5702
      %v5704 = vpop.f32.mrf.mxu0
      %5705 = vmatprep.mubr.bf16.mxu0 0
      %5706 = vmatmul.mubr.bf16.gmra.mxu0 %v5554
      %v5707 = vpop.f32.mrf.mxu0
      %v5708 = vadd.f32 0.0, %v5707
      %v5709 = vpop.f32.mrf.mxu0
      %v5710 = vpop.f32.mrf.mxu0
      %v5711 = vadd.f32 0.0, %v5710
      %v5712 = vpop.f32.mrf.mxu0
      %5713 = vmatprep.mubr.bf16.mxu0 0
      %5714 = vmatmul.mubr.bf16.gmra.mxu0 %v5556
      %v5715 = vpop.f32.mrf.mxu0
      %v5716 = vadd.f32 0.0, %v5715
      %v5717 = vpop.f32.mrf.mxu0
      %v5718 = vpop.f32.mrf.mxu0
      %v5719 = vadd.f32 0.0, %v5718
      %v5720 = vpop.f32.mrf.mxu0
      %5721 = vdwg.mxu0
      %v5724 = vunpack.c.l.b16 %v178
      %v5725 = vunpack.c.l.b16 %v179
      %v5726 = vpack.c.b16 %v5725, %v5724
      %v5727 = vsel %vm2155, %v4946, 0
      %v5729 = vsel %vm2155, %v4948, 0
      %v5731 = vsel %vm2155, %v4950, 0
      %v5733 = vsel %vm2155, %v4952, 0
      %v5735 = vsel %vm2155, %v4954, 0
      %v5737 = vsel %vm2155, %v4956, 0
      %v5739 = vsel %vm2155, %v4958, 0
      %v5741 = vsel %vm2155, %v4960, 0
      %v5743 = vsel %vm2155, %v4962, 0
      %v5745 = vsel %vm2155, %v4964, 0
      %v5747 = vsel %vm2155, %v4966, 0
      %v5749 = vsel %vm2155, %v4968, 0
      %v5751 = vsel %vm2155, %v4970, 0
      %v5753 = vsel %vm2155, %v4972, 0
      %v5755 = vsel %vm2155, %v4974, 0
      %v5757 = vsel %vm2155, %v4976, 0
      %v5760 = vsel %vm2188, %v5726, 0
      %5762 = vmatprep.subr.bf16.mxu0 0
      %5763 = vmatpush1.bf16.msra.mxu0 0
      %5764 = vmatprep.subr.bf16.mxu0 0
      %5765 = vmatpush1.bf16.msra.mxu0 0
      %5766 = vmatprep.subr.bf16.mxu0 0
      %5767 = vmatpush1.bf16.msra.mxu0 0
      %5768 = vmatprep.subr.bf16.mxu0 0
      %5769 = vmatpush1.bf16.msra.mxu0 0
      %5770 = vmatprep.subr.bf16.mxu0 0
      %5771 = vmatpush1.bf16.msra.mxu0 0
      %5772 = vmatprep.subr.bf16.mxu0 0
      %5773 = vmatpush1.bf16.msra.mxu0 0
      %5774 = vmatprep.subr.bf16.mxu0 0
      %5775 = vmatpush1.bf16.msra.mxu0 0
      %5776 = vmatprep.subr.bf16.mxu0 0
      %5777 = vmatpush1.bf16.msra.mxu0 %v5760
      %5778 = vmatprep.subr.bf16.mxu0 0
      %5779 = vmatpush2.bf16.msra.mxu0 0
      %5780 = vmatprep.subr.bf16.mxu0 0
      %5781 = vmatpush2.bf16.msra.mxu0 0
      %5782 = vmatprep.subr.bf16.mxu0 0
      %5783 = vmatpush2.bf16.msra.mxu0 0
      %5784 = vmatprep.subr.bf16.mxu0 0
      %5785 = vmatpush2.bf16.msra.mxu0 0
      %5786 = vmatprep.subr.bf16.mxu0 0
      %5787 = vmatpush2.bf16.msra.mxu0 0
      %5788 = vmatprep.subr.bf16.mxu0 0
      %5789 = vmatpush2.bf16.msra.mxu0 0
      %5790 = vmatprep.subr.bf16.mxu0 0
      %5791 = vmatpush2.bf16.msra.mxu0 0
      %5792 = vmatprep.subr.bf16.mxu0 0
      %5793 = vmatpush2.bf16.msra.mxu0 0
      %5794 = vmatprep.mubr.bf16.mxu0 0
      %5795 = vmatmul.mubr.bf16.gmra.mxu0 %v5727
      %v5796 = vpop.f32.mrf.mxu0
      %v5797 = vadd.f32 %v5596, %v5796
      %v5798 = vpop.f32.mrf.mxu0
      %v5799 = vpop.f32.mrf.mxu0
      %v5800 = vadd.f32 %v5599, %v5799
      %v5801 = vpop.f32.mrf.mxu0
      %5802 = vmatprep.mubr.bf16.mxu0 0
      %5803 = vmatmul.mubr.bf16.gmra.mxu0 %v5729
      %v5804 = vpop.f32.mrf.mxu0
      %v5805 = vadd.f32 %v5604, %v5804
      %v5806 = vpop.f32.mrf.mxu0
      %v5807 = vpop.f32.mrf.mxu0
      %v5808 = vadd.f32 %v5607, %v5807
      %v5809 = vpop.f32.mrf.mxu0
      %5810 = vmatprep.mubr.bf16.mxu0 0
      %5811 = vmatmul.mubr.bf16.gmra.mxu0 %v5731
      %v5812 = vpop.f32.mrf.mxu0
      %v5813 = vadd.f32 %v5612, %v5812
      %v5814 = vpop.f32.mrf.mxu0
      %v5815 = vpop.f32.mrf.mxu0
      %v5816 = vadd.f32 %v5615, %v5815
      %v5817 = vpop.f32.mrf.mxu0
      %5818 = vmatprep.mubr.bf16.mxu0 0
      %5819 = vmatmul.mubr.bf16.gmra.mxu0 %v5733
      %v5820 = vpop.f32.mrf.mxu0
      %v5821 = vadd.f32 %v5620, %v5820
      %v5822 = vpop.f32.mrf.mxu0
      %v5823 = vpop.f32.mrf.mxu0
      %v5824 = vadd.f32 %v5623, %v5823
      %v5825 = vpop.f32.mrf.mxu0
      %5826 = vmatprep.mubr.bf16.mxu0 0
      %5827 = vmatmul.mubr.bf16.gmra.mxu0 %v5735
      %v5828 = vpop.f32.mrf.mxu0
      %v5829 = vadd.f32 %v5628, %v5828
      %v5830 = vpop.f32.mrf.mxu0
      %v5831 = vpop.f32.mrf.mxu0
      %v5832 = vadd.f32 %v5631, %v5831
      %v5833 = vpop.f32.mrf.mxu0
      %5834 = vmatprep.mubr.bf16.mxu0 0
      %5835 = vmatmul.mubr.bf16.gmra.mxu0 %v5737
      %v5836 = vpop.f32.mrf.mxu0
      %v5837 = vadd.f32 %v5636, %v5836
      %v5838 = vpop.f32.mrf.mxu0
      %v5839 = vpop.f32.mrf.mxu0
      %v5840 = vadd.f32 %v5639, %v5839
      %v5841 = vpop.f32.mrf.mxu0
      %5842 = vmatprep.mubr.bf16.mxu0 0
      %5843 = vmatmul.mubr.bf16.gmra.mxu0 %v5739
      %v5844 = vpop.f32.mrf.mxu0
      %v5845 = vadd.f32 %v5644, %v5844
      %v5846 = vpop.f32.mrf.mxu0
      %v5847 = vpop.f32.mrf.mxu0
      %v5848 = vadd.f32 %v5647, %v5847
      %v5849 = vpop.f32.mrf.mxu0
      %5850 = vmatprep.mubr.bf16.mxu0 0
      %5851 = vmatmul.mubr.bf16.gmra.mxu0 %v5741
      %v5852 = vpop.f32.mrf.mxu0
      %v5853 = vadd.f32 %v5652, %v5852
      %v5854 = vpop.f32.mrf.mxu0
      %v5855 = vpop.f32.mrf.mxu0
      %v5856 = vadd.f32 %v5655, %v5855
      %v5857 = vpop.f32.mrf.mxu0
      %5858 = vmatprep.mubr.bf16.mxu0 0
      %5859 = vmatmul.mubr.bf16.gmra.mxu0 %v5743
      %v5860 = vpop.f32.mrf.mxu0
      %v5861 = vadd.f32 %v5660, %v5860
      %v5862 = vpop.f32.mrf.mxu0
      %v5863 = vpop.f32.mrf.mxu0
      %v5864 = vadd.f32 %v5663, %v5863
      %v5865 = vpop.f32.mrf.mxu0
      %5866 = vmatprep.mubr.bf16.mxu0 0
      %5867 = vmatmul.mubr.bf16.gmra.mxu0 %v5745
      %v5868 = vpop.f32.mrf.mxu0
      %v5869 = vadd.f32 %v5668, %v5868
      %v5870 = vpop.f32.mrf.mxu0
      %v5871 = vpop.f32.mrf.mxu0
      %v5872 = vadd.f32 %v5671, %v5871
      %v5873 = vpop.f32.mrf.mxu0
      %5874 = vmatprep.mubr.bf16.mxu0 0
      %5875 = vmatmul.mubr.bf16.gmra.mxu0 %v5747
      %v5876 = vpop.f32.mrf.mxu0
      %v5877 = vadd.f32 %v5676, %v5876
      %v5878 = vpop.f32.mrf.mxu0
      %v5879 = vpop.f32.mrf.mxu0
      %v5880 = vadd.f32 %v5679, %v5879
      %v5881 = vpop.f32.mrf.mxu0
      %5882 = vmatprep.mubr.bf16.mxu0 0
      %5883 = vmatmul.mubr.bf16.gmra.mxu0 %v5749
      %v5884 = vpop.f32.mrf.mxu0
      %v5885 = vadd.f32 %v5684, %v5884
      %v5886 = vpop.f32.mrf.mxu0
      %v5887 = vpop.f32.mrf.mxu0
      %v5888 = vadd.f32 %v5687, %v5887
      %v5889 = vpop.f32.mrf.mxu0
      %5890 = vmatprep.mubr.bf16.mxu0 0
      %5891 = vmatmul.mubr.bf16.gmra.mxu0 %v5751
      %v5892 = vpop.f32.mrf.mxu0
      %v5893 = vadd.f32 %v5692, %v5892
      %v5894 = vpop.f32.mrf.mxu0
      %v5895 = vpop.f32.mrf.mxu0
      %v5896 = vadd.f32 %v5695, %v5895
      %v5897 = vpop.f32.mrf.mxu0
      %5898 = vmatprep.mubr.bf16.mxu0 0
      %5899 = vmatmul.mubr.bf16.gmra.mxu0 %v5753
      %v5900 = vpop.f32.mrf.mxu0
      %v5901 = vadd.f32 %v5700, %v5900
      %v5902 = vpop.f32.mrf.mxu0
      %v5903 = vpop.f32.mrf.mxu0
      %v5904 = vadd.f32 %v5703, %v5903
      %v5905 = vpop.f32.mrf.mxu0
      %5906 = vmatprep.mubr.bf16.mxu0 0
      %5907 = vmatmul.mubr.bf16.gmra.mxu0 %v5755
      %v5908 = vpop.f32.mrf.mxu0
      %v5909 = vadd.f32 %v5708, %v5908
      %v5910 = vpop.f32.mrf.mxu0
      %v5911 = vpop.f32.mrf.mxu0
      %v5912 = vadd.f32 %v5711, %v5911
      %v5913 = vpop.f32.mrf.mxu0
      %5914 = vmatprep.mubr.bf16.mxu0 0
      %5915 = vmatmul.mubr.bf16.gmra.mxu0 %v5757
      %v5916 = vpop.f32.mrf.mxu0
      %v5917 = vadd.f32 %v5716, %v5916
      %v5918 = vpop.f32.mrf.mxu0
      %v5919 = vpop.f32.mrf.mxu0
      %v5920 = vadd.f32 %v5719, %v5919
      %v5921 = vpop.f32.mrf.mxu0
      %5922 = vdwg.mxu0
      %v5923 = vld [vmem:[%s2554] sm:$0xf]
      %v5924 = vld [vmem:[%s2554 + $0x4] sm:$0xf]
      %v5925 = vld [vmem:[%s2554 + $0x8] sm:$0x1]
      %v5926 = vld [vmem:[%s2554 + $0xc] sm:$0xf]
      %v5927 = vld [vmem:[%s2554 + $0x10] sm:$0xf]
      %v5928 = vld [vmem:[%s2554 + $0x14] sm:$0x1]
      %v5929 = vld [vmem:[%s2554 + $0x18] sm:$0xf]
      %v5930 = vld [vmem:[%s2554 + $0x1c] sm:$0xf]
      %v5931 = vld [vmem:[%s2554 + $0x20] sm:$0x1]
      %v5932 = vld [vmem:[%s2554 + $0x24] sm:$0xf]
      %v5933 = vld [vmem:[%s2554 + $0x28] sm:$0xf]
      %v5934 = vld [vmem:[%s2554 + $0x2c] sm:$0x1]
      %v5935 = vld [vmem:[%s2554 + $0x30] sm:$0xf]
      %v5936 = vld [vmem:[%s2554 + $0x34] sm:$0xf]
      %v5937 = vld [vmem:[%s2554 + $0x38] sm:$0x1]
      %v5938 = vld [vmem:[%s2554 + $0x3c] sm:$0xf]
      %v5939 = vld [vmem:[%s2554 + $0x40] sm:$0xf]
      %v5940 = vld [vmem:[%s2554 + $0x44] sm:$0x1]
      %v5941 = vld [vmem:[%s2554 + $0x48] sm:$0xf]
      %v5942 = vld [vmem:[%s2554 + $0x4c] sm:$0xf]
      %v5943 = vld [vmem:[%s2554 + $0x50] sm:$0x1]
      %v5944 = vld [vmem:[%s2554 + $0x54] sm:$0xf]
      %v5945 = vld [vmem:[%s2554 + $0x58] sm:$0xf]
      %v5946 = vld [vmem:[%s2554 + $0x5c] sm:$0x1]
      %v5947 = vld [vmem:[%s2554 + $0x60] sm:$0xf]
      %v5948 = vld [vmem:[%s2554 + $0x64] sm:$0xf]
      %v5949 = vld [vmem:[%s2554 + $0x68] sm:$0x1]
      %v5950 = vld [vmem:[%s2554 + $0x6c] sm:$0xf]
      %v5951 = vld [vmem:[%s2554 + $0x70] sm:$0xf]
      %v5952 = vld [vmem:[%s2554 + $0x74] sm:$0x1]
      %v5953 = vld [vmem:[%s2554 + $0x78] sm:$0xf]
      %v5954 = vld [vmem:[%s2554 + $0x7c] sm:$0xf]
      %v5955 = vld [vmem:[%s2554 + $0x80] sm:$0x1]
      %v5956 = vld [vmem:[%s2554 + $0x84] sm:$0xf]
      %v5957 = vld [vmem:[%s2554 + $0x88] sm:$0xf]
      %v5958 = vld [vmem:[%s2554 + $0x8c] sm:$0x1]
      %v5959 = vld [vmem:[%s2554 + $0x90] sm:$0xf]
      %v5960 = vld [vmem:[%s2554 + $0x94] sm:$0xf]
      %v5961 = vld [vmem:[%s2554 + $0x98] sm:$0x1]
      %v5962 = vld [vmem:[%s2554 + $0x9c] sm:$0xf]
      %v5963 = vld [vmem:[%s2554 + $0xa0] sm:$0xf]
      %v5964 = vld [vmem:[%s2554 + $0xa4] sm:$0x1]
      %v5965 = vld [vmem:[%s2554 + $0xa8] sm:$0xf]
      %v5966 = vld [vmem:[%s2554 + $0xac] sm:$0xf]
      %v5967 = vld [vmem:[%s2554 + $0xb0] sm:$0x1]
      %v5968 = vld [vmem:[%s2554 + $0xb4] sm:$0xf]
      %v5969 = vld [vmem:[%s2554 + $0xb8] sm:$0xf]
      %v5970 = vld [vmem:[%s2554 + $0xbc] sm:$0x1]
      %v6003 = vunpack.c.l.b16 %v5923
      %v6004 = vunpack.c.l.b16 %v5924
      %v6005 = vunpack.c.l.b16 %v5926
      %v6006 = vunpack.c.l.b16 %v5927
      %v6007 = vunpack.c.l.b16 %v5929
      %v6008 = vunpack.c.l.b16 %v5930
      %v6009 = vunpack.c.l.b16 %v5932
      %v6010 = vunpack.c.l.b16 %v5933
      %v6011 = vunpack.c.l.b16 %v5935
      %v6012 = vunpack.c.l.b16 %v5936
      %v6013 = vunpack.c.l.b16 %v5938
      %v6014 = vunpack.c.l.b16 %v5939
      %v6015 = vunpack.c.l.b16 %v5941
      %v6016 = vunpack.c.l.b16 %v5942
      %v6017 = vunpack.c.l.b16 %v5944
      %v6018 = vunpack.c.l.b16 %v5945
      %v6019 = vunpack.c.l.b16 %v5947
      %v6020 = vunpack.c.l.b16 %v5948
      %v6021 = vunpack.c.l.b16 %v5950
      %v6022 = vunpack.c.l.b16 %v5951
      %v6023 = vunpack.c.l.b16 %v5953
      %v6024 = vunpack.c.l.b16 %v5954
      %v6025 = vunpack.c.l.b16 %v5956
      %v6026 = vunpack.c.l.b16 %v5957
      %v6027 = vunpack.c.l.b16 %v5959
      %v6028 = vunpack.c.l.b16 %v5960
      %v6029 = vunpack.c.l.b16 %v5962
      %v6030 = vunpack.c.l.b16 %v5963
      %v6031 = vunpack.c.l.b16 %v5965
      %v6032 = vunpack.c.l.b16 %v5966
      %v6033 = vunpack.c.l.b16 %v5968
      %v6034 = vunpack.c.l.b16 %v5969
      %v6035 = vpack.c.b16 %v6004, %v6003
      %v6036 = vpack.c.b16 %v6006, %v6005
      %v6037 = vpack.c.b16 %v6008, %v6007
      %v6038 = vpack.c.b16 %v6010, %v6009
      %v6039 = vpack.c.b16 %v6012, %v6011
      %v6040 = vpack.c.b16 %v6014, %v6013
      %v6041 = vpack.c.b16 %v6016, %v6015
      %v6042 = vpack.c.b16 %v6018, %v6017
      %v6043 = vpack.c.b16 %v6020, %v6019
      %v6044 = vpack.c.b16 %v6022, %v6021
      %v6045 = vpack.c.b16 %v6024, %v6023
      %v6046 = vpack.c.b16 %v6026, %v6025
      %v6047 = vpack.c.b16 %v6028, %v6027
      %v6048 = vpack.c.b16 %v6030, %v6029
      %v6049 = vpack.c.b16 %v6032, %v6031
      %v6050 = vpack.c.b16 %v6034, %v6033
      %v6067 = vunpack.c.l.b16 %v5925
      %v6068 = vunpack.c.l.b16 %v5928
      %v6069 = vunpack.c.l.b16 %v5931
      %v6070 = vunpack.c.l.b16 %v5934
      %v6071 = vunpack.c.l.b16 %v5937
      %v6072 = vunpack.c.l.b16 %v5940
      %v6073 = vunpack.c.l.b16 %v5943
      %v6074 = vunpack.c.l.b16 %v5946
      %v6075 = vunpack.c.l.b16 %v5949
      %v6076 = vunpack.c.l.b16 %v5952
      %v6077 = vunpack.c.l.b16 %v5955
      %v6078 = vunpack.c.l.b16 %v5958
      %v6079 = vunpack.c.l.b16 %v5961
      %v6080 = vunpack.c.l.b16 %v5964
      %v6081 = vunpack.c.l.b16 %v5967
      %v6082 = vunpack.c.l.b16 %v5970
      %v6083 = vpack.c.b16 %v6067, %v6067
      %v6084 = vpack.c.b16 %v6068, %v6068
      %v6085 = vpack.c.b16 %v6069, %v6069
      %v6086 = vpack.c.b16 %v6070, %v6070
      %v6087 = vpack.c.b16 %v6071, %v6071
      %v6088 = vpack.c.b16 %v6072, %v6072
      %v6089 = vpack.c.b16 %v6073, %v6073
      %v6090 = vpack.c.b16 %v6074, %v6074
      %v6091 = vpack.c.b16 %v6075, %v6075
      %v6092 = vpack.c.b16 %v6076, %v6076
      %v6093 = vpack.c.b16 %v6077, %v6077
      %v6094 = vpack.c.b16 %v6078, %v6078
      %v6095 = vpack.c.b16 %v6079, %v6079
      %v6096 = vpack.c.b16 %v6080, %v6080
      %v6097 = vpack.c.b16 %v6081, %v6081
      %v6098 = vpack.c.b16 %v6082, %v6082
      %v6100 = vshrl.u32 %v6035, 16
      %v6102 = vshll.u32 %v6035, 16
      %v6104 = vrot.slane %v6102, 1
      %v6105 = vor.u32 %v6100, %v6104
      %v6107 = vshll.u32 %v6083, 16
      %v6109 = vrot.slane %v6107, 1
      %v6110 = vsel %vm1234, %v6105, %v6109
      %v6112 = vshrl.u32 %v6036, 16
      %v6114 = vshll.u32 %v6036, 16
      %v6116 = vrot.slane %v6114, 1
      %v6117 = vor.u32 %v6112, %v6116
      %v6119 = vshll.u32 %v6084, 16
      %v6121 = vrot.slane %v6119, 1
      %v6122 = vsel %vm1234, %v6117, %v6121
      %v6124 = vshrl.u32 %v6037, 16
      %v6126 = vshll.u32 %v6037, 16
      %v6128 = vrot.slane %v6126, 1
      %v6129 = vor.u32 %v6124, %v6128
      %v6131 = vshll.u32 %v6085, 16
      %v6133 = vrot.slane %v6131, 1
      %v6134 = vsel %vm1234, %v6129, %v6133
      %v6136 = vshrl.u32 %v6038, 16
      %v6138 = vshll.u32 %v6038, 16
      %v6140 = vrot.slane %v6138, 1
      %v6141 = vor.u32 %v6136, %v6140
      %v6143 = vshll.u32 %v6086, 16
      %v6145 = vrot.slane %v6143, 1
      %v6146 = vsel %vm1234, %v6141, %v6145
      %v6148 = vshrl.u32 %v6039, 16
      %v6150 = vshll.u32 %v6039, 16
      %v6152 = vrot.slane %v6150, 1
      %v6153 = vor.u32 %v6148, %v6152
      %v6155 = vshll.u32 %v6087, 16
      %v6157 = vrot.slane %v6155, 1
      %v6158 = vsel %vm1234, %v6153, %v6157
      %v6160 = vshrl.u32 %v6040, 16
      %v6162 = vshll.u32 %v6040, 16
      %v6164 = vrot.slane %v6162, 1
      %v6165 = vor.u32 %v6160, %v6164
      %v6167 = vshll.u32 %v6088, 16
      %v6169 = vrot.slane %v6167, 1
      %v6170 = vsel %vm1234, %v6165, %v6169
      %v6172 = vshrl.u32 %v6041, 16
      %v6174 = vshll.u32 %v6041, 16
      %v6176 = vrot.slane %v6174, 1
      %v6177 = vor.u32 %v6172, %v6176
      %v6179 = vshll.u32 %v6089, 16
      %v6181 = vrot.slane %v6179, 1
      %v6182 = vsel %vm1234, %v6177, %v6181
      %v6184 = vshrl.u32 %v6042, 16
      %v6186 = vshll.u32 %v6042, 16
      %v6188 = vrot.slane %v6186, 1
      %v6189 = vor.u32 %v6184, %v6188
      %v6191 = vshll.u32 %v6090, 16
      %v6193 = vrot.slane %v6191, 1
      %v6194 = vsel %vm1234, %v6189, %v6193
      %v6196 = vshrl.u32 %v6043, 16
      %v6198 = vshll.u32 %v6043, 16
      %v6200 = vrot.slane %v6198, 1
      %v6201 = vor.u32 %v6196, %v6200
      %v6203 = vshll.u32 %v6091, 16
      %v6205 = vrot.slane %v6203, 1
      %v6206 = vsel %vm1234, %v6201, %v6205
      %v6208 = vshrl.u32 %v6044, 16
      %v6210 = vshll.u32 %v6044, 16
      %v6212 = vrot.slane %v6210, 1
      %v6213 = vor.u32 %v6208, %v6212
      %v6215 = vshll.u32 %v6092, 16
      %v6217 = vrot.slane %v6215, 1
      %v6218 = vsel %vm1234, %v6213, %v6217
      %v6220 = vshrl.u32 %v6045, 16
      %v6222 = vshll.u32 %v6045, 16
      %v6224 = vrot.slane %v6222, 1
      %v6225 = vor.u32 %v6220, %v6224
      %v6227 = vshll.u32 %v6093, 16
      %v6229 = vrot.slane %v6227, 1
      %v6230 = vsel %vm1234, %v6225, %v6229
      %v6232 = vshrl.u32 %v6046, 16
      %v6234 = vshll.u32 %v6046, 16
      %v6236 = vrot.slane %v6234, 1
      %v6237 = vor.u32 %v6232, %v6236
      %v6239 = vshll.u32 %v6094, 16
      %v6241 = vrot.slane %v6239, 1
      %v6242 = vsel %vm1234, %v6237, %v6241
      %v6244 = vshrl.u32 %v6047, 16
      %v6246 = vshll.u32 %v6047, 16
      %v6248 = vrot.slane %v6246, 1
      %v6249 = vor.u32 %v6244, %v6248
      %v6251 = vshll.u32 %v6095, 16
      %v6253 = vrot.slane %v6251, 1
      %v6254 = vsel %vm1234, %v6249, %v6253
      %v6256 = vshrl.u32 %v6048, 16
      %v6258 = vshll.u32 %v6048, 16
      %v6260 = vrot.slane %v6258, 1
      %v6261 = vor.u32 %v6256, %v6260
      %v6263 = vshll.u32 %v6096, 16
      %v6265 = vrot.slane %v6263, 1
      %v6266 = vsel %vm1234, %v6261, %v6265
      %v6268 = vshrl.u32 %v6049, 16
      %v6270 = vshll.u32 %v6049, 16
      %v6272 = vrot.slane %v6270, 1
      %v6273 = vor.u32 %v6268, %v6272
      %v6275 = vshll.u32 %v6097, 16
      %v6277 = vrot.slane %v6275, 1
      %v6278 = vsel %vm1234, %v6273, %v6277
      %v6280 = vshrl.u32 %v6050, 16
      %v6282 = vshll.u32 %v6050, 16
      %v6284 = vrot.slane %v6282, 1
      %v6285 = vor.u32 %v6280, %v6284
      %v6287 = vshll.u32 %v6098, 16
      %v6289 = vrot.slane %v6287, 1
      %v6290 = vsel %vm1234, %v6285, %v6289
      %6291 = vrot.lane.b32.xlu0 %v6110, 4
      %v6292 = vpop.permute.xlu0 %6291
      %6293 = vrot.lane.b32.xlu0 %v6122, 4
      %v6294 = vpop.permute.xlu0 %6293
      %6295 = vrot.lane.b32.xlu0 %v6134, 4
      %v6296 = vpop.permute.xlu0 %6295
      %6297 = vrot.lane.b32.xlu0 %v6146, 4
      %v6298 = vpop.permute.xlu0 %6297
      %6299 = vrot.lane.b32.xlu0 %v6158, 4
      %v6300 = vpop.permute.xlu0 %6299
      %6301 = vrot.lane.b32.xlu0 %v6170, 4
      %v6302 = vpop.permute.xlu0 %6301
      %6303 = vrot.lane.b32.xlu0 %v6182, 4
      %v6304 = vpop.permute.xlu0 %6303
      %6305 = vrot.lane.b32.xlu0 %v6194, 4
      %v6306 = vpop.permute.xlu0 %6305
      %6307 = vrot.lane.b32.xlu0 %v6206, 4
      %v6308 = vpop.permute.xlu0 %6307
      %6309 = vrot.lane.b32.xlu0 %v6218, 4
      %v6310 = vpop.permute.xlu0 %6309
      %6311 = vrot.lane.b32.xlu0 %v6230, 4
      %v6312 = vpop.permute.xlu0 %6311
      %6313 = vrot.lane.b32.xlu0 %v6242, 4
      %v6314 = vpop.permute.xlu0 %6313
      %6315 = vrot.lane.b32.xlu0 %v6254, 4
      %v6316 = vpop.permute.xlu0 %6315
      %6317 = vrot.lane.b32.xlu0 %v6266, 4
      %v6318 = vpop.permute.xlu0 %6317
      %6319 = vrot.lane.b32.xlu0 %v6278, 4
      %v6320 = vpop.permute.xlu0 %6319
      %6321 = vrot.lane.b32.xlu0 %v6290, 4
      %v6322 = vpop.permute.xlu0 %6321
      %v6323 = vrot.slane %v6035, 1
      %v6324 = vrot.slane %v6083, 1
      %v6325 = vsel %vm1459, %v6323, %v6324
      %v6326 = vrot.slane %v6036, 1
      %v6327 = vrot.slane %v6084, 1
      %v6328 = vsel %vm1459, %v6326, %v6327
      %v6329 = vrot.slane %v6037, 1
      %v6330 = vrot.slane %v6085, 1
      %v6331 = vsel %vm1459, %v6329, %v6330
      %v6332 = vrot.slane %v6038, 1
      %v6333 = vrot.slane %v6086, 1
      %v6334 = vsel %vm1459, %v6332, %v6333
      %v6335 = vrot.slane %v6039, 1
      %v6336 = vrot.slane %v6087, 1
      %v6337 = vsel %vm1459, %v6335, %v6336
      %v6338 = vrot.slane %v6040, 1
      %v6339 = vrot.slane %v6088, 1
      %v6340 = vsel %vm1459, %v6338, %v6339
      %v6341 = vrot.slane %v6041, 1
      %v6342 = vrot.slane %v6089, 1
      %v6343 = vsel %vm1459, %v6341, %v6342
      %v6344 = vrot.slane %v6042, 1
      %v6345 = vrot.slane %v6090, 1
      %v6346 = vsel %vm1459, %v6344, %v6345
      %v6347 = vrot.slane %v6043, 1
      %v6348 = vrot.slane %v6091, 1
      %v6349 = vsel %vm1459, %v6347, %v6348
      %v6350 = vrot.slane %v6044, 1
      %v6351 = vrot.slane %v6092, 1
      %v6352 = vsel %vm1459, %v6350, %v6351
      %v6353 = vrot.slane %v6045, 1
      %v6354 = vrot.slane %v6093, 1
      %v6355 = vsel %vm1459, %v6353, %v6354
      %v6356 = vrot.slane %v6046, 1
      %v6357 = vrot.slane %v6094, 1
      %v6358 = vsel %vm1459, %v6356, %v6357
      %v6359 = vrot.slane %v6047, 1
      %v6360 = vrot.slane %v6095, 1
      %v6361 = vsel %vm1459, %v6359, %v6360
      %v6362 = vrot.slane %v6048, 1
      %v6363 = vrot.slane %v6096, 1
      %v6364 = vsel %vm1459, %v6362, %v6363
      %v6365 = vrot.slane %v6049, 1
      %v6366 = vrot.slane %v6097, 1
      %v6367 = vsel %vm1459, %v6365, %v6366
      %v6368 = vrot.slane %v6050, 1
      %v6369 = vrot.slane %v6098, 1
      %v6370 = vsel %vm1459, %v6368, %v6369
      %6371 = vrot.lane.b32.xlu0 %v6325, 8
      %v6372 = vpop.permute.xlu0 %6371
      %6373 = vrot.lane.b32.xlu0 %v6328, 8
      %v6374 = vpop.permute.xlu0 %6373
      %6375 = vrot.lane.b32.xlu0 %v6331, 8
      %v6376 = vpop.permute.xlu0 %6375
      %6377 = vrot.lane.b32.xlu0 %v6334, 8
      %v6378 = vpop.permute.xlu0 %6377
      %6379 = vrot.lane.b32.xlu0 %v6337, 8
      %v6380 = vpop.permute.xlu0 %6379
      %6381 = vrot.lane.b32.xlu0 %v6340, 8
      %v6382 = vpop.permute.xlu0 %6381
      %6383 = vrot.lane.b32.xlu0 %v6343, 8
      %v6384 = vpop.permute.xlu0 %6383
      %6385 = vrot.lane.b32.xlu0 %v6346, 8
      %v6386 = vpop.permute.xlu0 %6385
      %6387 = vrot.lane.b32.xlu0 %v6349, 8
      %v6388 = vpop.permute.xlu0 %6387
      %6389 = vrot.lane.b32.xlu0 %v6352, 8
      %v6390 = vpop.permute.xlu0 %6389
      %6391 = vrot.lane.b32.xlu0 %v6355, 8
      %v6392 = vpop.permute.xlu0 %6391
      %6393 = vrot.lane.b32.xlu0 %v6358, 8
      %v6394 = vpop.permute.xlu0 %6393
      %6395 = vrot.lane.b32.xlu0 %v6361, 8
      %v6396 = vpop.permute.xlu0 %6395
      %6397 = vrot.lane.b32.xlu0 %v6364, 8
      %v6398 = vpop.permute.xlu0 %6397
      %6399 = vrot.lane.b32.xlu0 %v6367, 8
      %v6400 = vpop.permute.xlu0 %6399
      %6401 = vrot.lane.b32.xlu0 %v6370, 8
      %v6402 = vpop.permute.xlu0 %6401
      %v6404 = vsel %vm1540, %v6035, %v6292
      %v6406 = vsel %vm1540, %v6036, %v6294
      %v6408 = vsel %vm1540, %v6037, %v6296
      %v6410 = vsel %vm1540, %v6038, %v6298
      %v6412 = vsel %vm1540, %v6039, %v6300
      %v6414 = vsel %vm1540, %v6040, %v6302
      %v6416 = vsel %vm1540, %v6041, %v6304
      %v6418 = vsel %vm1540, %v6042, %v6306
      %v6420 = vsel %vm1540, %v6043, %v6308
      %v6422 = vsel %vm1540, %v6044, %v6310
      %v6424 = vsel %vm1540, %v6045, %v6312
      %v6426 = vsel %vm1540, %v6046, %v6314
      %v6428 = vsel %vm1540, %v6047, %v6316
      %v6430 = vsel %vm1540, %v6048, %v6318
      %v6432 = vsel %vm1540, %v6049, %v6320
      %v6434 = vsel %vm1540, %v6050, %v6322
      %v6436 = vsel %vm1573, %v6404, %v6372
      %v6438 = vsel %vm1573, %v6406, %v6374
      %v6440 = vsel %vm1573, %v6408, %v6376
      %v6442 = vsel %vm1573, %v6410, %v6378
      %v6444 = vsel %vm1573, %v6412, %v6380
      %v6446 = vsel %vm1573, %v6414, %v6382
      %v6448 = vsel %vm1573, %v6416, %v6384
      %v6450 = vsel %vm1573, %v6418, %v6386
      %v6452 = vsel %vm1573, %v6420, %v6388
      %v6454 = vsel %vm1573, %v6422, %v6390
      %v6456 = vsel %vm1573, %v6424, %v6392
      %v6458 = vsel %vm1573, %v6426, %v6394
      %v6460 = vsel %vm1573, %v6428, %v6396
      %v6462 = vsel %vm1573, %v6430, %v6398
      %v6464 = vsel %vm1573, %v6432, %v6400
      %v6466 = vsel %vm1573, %v6434, %v6402
      %v6469 = vunpack.c.l.b16 %v182
      %v6470 = vunpack.c.l.b16 %v183
      %v6471 = vpack.c.b16 %v6470, %v6469
      %v6472 = vsel %vm2155, %v6436, 0
      %v6474 = vsel %vm2155, %v6438, 0
      %v6476 = vsel %vm2155, %v6440, 0
      %v6478 = vsel %vm2155, %v6442, 0
      %v6480 = vsel %vm2155, %v6444, 0
      %v6482 = vsel %vm2155, %v6446, 0
      %v6484 = vsel %vm2155, %v6448, 0
      %v6486 = vsel %vm2155, %v6450, 0
      %v6488 = vsel %vm2155, %v6452, 0
      %v6490 = vsel %vm2155, %v6454, 0
      %v6492 = vsel %vm2155, %v6456, 0
      %v6494 = vsel %vm2155, %v6458, 0
      %v6496 = vsel %vm2155, %v6460, 0
      %v6498 = vsel %vm2155, %v6462, 0
      %v6500 = vsel %vm2155, %v6464, 0
      %v6502 = vsel %vm2155, %v6466, 0
      %v6505 = vsel %vm2188, %v6471, 0
      %6507 = vmatprep.subr.bf16.mxu0 0
      %6508 = vmatpush1.bf16.msra.mxu0 0
      %6509 = vmatprep.subr.bf16.mxu0 0
      %6510 = vmatpush1.bf16.msra.mxu0 0
      %6511 = vmatprep.subr.bf16.mxu0 0
      %6512 = vmatpush1.bf16.msra.mxu0 0
      %6513 = vmatprep.subr.bf16.mxu0 0
      %6514 = vmatpush1.bf16.msra.mxu0 0
      %6515 = vmatprep.subr.bf16.mxu0 0
      %6516 = vmatpush1.bf16.msra.mxu0 0
      %6517 = vmatprep.subr.bf16.mxu0 0
      %6518 = vmatpush1.bf16.msra.mxu0 0
      %6519 = vmatprep.subr.bf16.mxu0 0
      %6520 = vmatpush1.bf16.msra.mxu0 0
      %6521 = vmatprep.subr.bf16.mxu0 0
      %6522 = vmatpush1.bf16.msra.mxu0 %v6505
      %6523 = vmatprep.subr.bf16.mxu0 0
      %6524 = vmatpush2.bf16.msra.mxu0 0
      %6525 = vmatprep.subr.bf16.mxu0 0
      %6526 = vmatpush2.bf16.msra.mxu0 0
      %6527 = vmatprep.subr.bf16.mxu0 0
      %6528 = vmatpush2.bf16.msra.mxu0 0
      %6529 = vmatprep.subr.bf16.mxu0 0
      %6530 = vmatpush2.bf16.msra.mxu0 0
      %6531 = vmatprep.subr.bf16.mxu0 0
      %6532 = vmatpush2.bf16.msra.mxu0 0
      %6533 = vmatprep.subr.bf16.mxu0 0
      %6534 = vmatpush2.bf16.msra.mxu0 0
      %6535 = vmatprep.subr.bf16.mxu0 0
      %6536 = vmatpush2.bf16.msra.mxu0 0
      %6537 = vmatprep.subr.bf16.mxu0 0
      %6538 = vmatpush2.bf16.msra.mxu0 0
      %6539 = vmatprep.mubr.bf16.mxu0 0
      %6540 = vmatmul.mubr.bf16.gmra.mxu0 %v6472
      %v6541 = vpop.f32.mrf.mxu0
      %v6542 = vadd.f32 0.0, %v6541
      %v6543 = vpop.f32.mrf.mxu0
      %v6544 = vpop.f32.mrf.mxu0
      %v6545 = vadd.f32 0.0, %v6544
      %v6546 = vpop.f32.mrf.mxu0
      %6547 = vmatprep.mubr.bf16.mxu0 0
      %6548 = vmatmul.mubr.bf16.gmra.mxu0 %v6474
      %v6549 = vpop.f32.mrf.mxu0
      %v6550 = vadd.f32 0.0, %v6549
      %v6551 = vpop.f32.mrf.mxu0
      %v6552 = vpop.f32.mrf.mxu0
      %v6553 = vadd.f32 0.0, %v6552
      %v6554 = vpop.f32.mrf.mxu0
      %6555 = vmatprep.mubr.bf16.mxu0 0
      %6556 = vmatmul.mubr.bf16.gmra.mxu0 %v6476
      %v6557 = vpop.f32.mrf.mxu0
      %v6558 = vadd.f32 0.0, %v6557
      %v6559 = vpop.f32.mrf.mxu0
      %v6560 = vpop.f32.mrf.mxu0
      %v6561 = vadd.f32 0.0, %v6560
      %v6562 = vpop.f32.mrf.mxu0
      %6563 = vmatprep.mubr.bf16.mxu0 0
      %6564 = vmatmul.mubr.bf16.gmra.mxu0 %v6478
      %v6565 = vpop.f32.mrf.mxu0
      %v6566 = vadd.f32 0.0, %v6565
      %v6567 = vpop.f32.mrf.mxu0
      %v6568 = vpop.f32.mrf.mxu0
      %v6569 = vadd.f32 0.0, %v6568
      %v6570 = vpop.f32.mrf.mxu0
      %6571 = vmatprep.mubr.bf16.mxu0 0
      %6572 = vmatmul.mubr.bf16.gmra.mxu0 %v6480
      %v6573 = vpop.f32.mrf.mxu0
      %v6574 = vadd.f32 0.0, %v6573
      %v6575 = vpop.f32.mrf.mxu0
      %v6576 = vpop.f32.mrf.mxu0
      %v6577 = vadd.f32 0.0, %v6576
      %v6578 = vpop.f32.mrf.mxu0
      %6579 = vmatprep.mubr.bf16.mxu0 0
      %6580 = vmatmul.mubr.bf16.gmra.mxu0 %v6482
      %v6581 = vpop.f32.mrf.mxu0
      %v6582 = vadd.f32 0.0, %v6581
      %v6583 = vpop.f32.mrf.mxu0
      %v6584 = vpop.f32.mrf.mxu0
      %v6585 = vadd.f32 0.0, %v6584
      %v6586 = vpop.f32.mrf.mxu0
      %6587 = vmatprep.mubr.bf16.mxu0 0
      %6588 = vmatmul.mubr.bf16.gmra.mxu0 %v6484
      %v6589 = vpop.f32.mrf.mxu0
      %v6590 = vadd.f32 0.0, %v6589
      %v6591 = vpop.f32.mrf.mxu0
      %v6592 = vpop.f32.mrf.mxu0
      %v6593 = vadd.f32 0.0, %v6592
      %v6594 = vpop.f32.mrf.mxu0
      %6595 = vmatprep.mubr.bf16.mxu0 0
      %6596 = vmatmul.mubr.bf16.gmra.mxu0 %v6486
      %v6597 = vpop.f32.mrf.mxu0
      %v6598 = vadd.f32 0.0, %v6597
      %v6599 = vpop.f32.mrf.mxu0
      %v6600 = vpop.f32.mrf.mxu0
      %v6601 = vadd.f32 0.0, %v6600
      %v6602 = vpop.f32.mrf.mxu0
      %6603 = vmatprep.mubr.bf16.mxu0 0
      %6604 = vmatmul.mubr.bf16.gmra.mxu0 %v6488
      %v6605 = vpop.f32.mrf.mxu0
      %v6606 = vadd.f32 0.0, %v6605
      %v6607 = vpop.f32.mrf.mxu0
      %v6608 = vpop.f32.mrf.mxu0
      %v6609 = vadd.f32 0.0, %v6608
      %v6610 = vpop.f32.mrf.mxu0
      %6611 = vmatprep.mubr.bf16.mxu0 0
      %6612 = vmatmul.mubr.bf16.gmra.mxu0 %v6490
      %v6613 = vpop.f32.mrf.mxu0
      %v6614 = vadd.f32 0.0, %v6613
      %v6615 = vpop.f32.mrf.mxu0
      %v6616 = vpop.f32.mrf.mxu0
      %v6617 = vadd.f32 0.0, %v6616
      %v6618 = vpop.f32.mrf.mxu0
      %6619 = vmatprep.mubr.bf16.mxu0 0
      %6620 = vmatmul.mubr.bf16.gmra.mxu0 %v6492
      %v6621 = vpop.f32.mrf.mxu0
      %v6622 = vadd.f32 0.0, %v6621
      %v6623 = vpop.f32.mrf.mxu0
      %v6624 = vpop.f32.mrf.mxu0
      %v6625 = vadd.f32 0.0, %v6624
      %v6626 = vpop.f32.mrf.mxu0
      %6627 = vmatprep.mubr.bf16.mxu0 0
      %6628 = vmatmul.mubr.bf16.gmra.mxu0 %v6494
      %v6629 = vpop.f32.mrf.mxu0
      %v6630 = vadd.f32 0.0, %v6629
      %v6631 = vpop.f32.mrf.mxu0
      %v6632 = vpop.f32.mrf.mxu0
      %v6633 = vadd.f32 0.0, %v6632
      %v6634 = vpop.f32.mrf.mxu0
      %6635 = vmatprep.mubr.bf16.mxu0 0
      %6636 = vmatmul.mubr.bf16.gmra.mxu0 %v6496
      %v6637 = vpop.f32.mrf.mxu0
      %v6638 = vadd.f32 0.0, %v6637
      %v6639 = vpop.f32.mrf.mxu0
      %v6640 = vpop.f32.mrf.mxu0
      %v6641 = vadd.f32 0.0, %v6640
      %v6642 = vpop.f32.mrf.mxu0
      %6643 = vmatprep.mubr.bf16.mxu0 0
      %6644 = vmatmul.mubr.bf16.gmra.mxu0 %v6498
      %v6645 = vpop.f32.mrf.mxu0
      %v6646 = vadd.f32 0.0, %v6645
      %v6647 = vpop.f32.mrf.mxu0
      %v6648 = vpop.f32.mrf.mxu0
      %v6649 = vadd.f32 0.0, %v6648
      %v6650 = vpop.f32.mrf.mxu0
      %6651 = vmatprep.mubr.bf16.mxu0 0
      %6652 = vmatmul.mubr.bf16.gmra.mxu0 %v6500
      %v6653 = vpop.f32.mrf.mxu0
      %v6654 = vadd.f32 0.0, %v6653
      %v6655 = vpop.f32.mrf.mxu0
      %v6656 = vpop.f32.mrf.mxu0
      %v6657 = vadd.f32 0.0, %v6656
      %v6658 = vpop.f32.mrf.mxu0
      %6659 = vmatprep.mubr.bf16.mxu0 0
      %6660 = vmatmul.mubr.bf16.gmra.mxu0 %v6502
      %v6661 = vpop.f32.mrf.mxu0
      %v6662 = vadd.f32 0.0, %v6661
      %v6663 = vpop.f32.mrf.mxu0
      %v6664 = vpop.f32.mrf.mxu0
      %v6665 = vadd.f32 0.0, %v6664
      %v6666 = vpop.f32.mrf.mxu0
      %6667 = vdwg.mxu0
      %v6668 = vadd.f32 %v5797, %v6542
      %v6669 = vadd.f32 %v5800, %v6545
      %v6670 = vadd.f32 %v5805, %v6550
      %v6671 = vadd.f32 %v5808, %v6553
      %v6672 = vadd.f32 %v5813, %v6558
      %v6673 = vadd.f32 %v5816, %v6561
      %v6674 = vadd.f32 %v5821, %v6566
      %v6675 = vadd.f32 %v5824, %v6569
      %v6676 = vadd.f32 %v5829, %v6574
      %v6677 = vadd.f32 %v5832, %v6577
      %v6678 = vadd.f32 %v5837, %v6582
      %v6679 = vadd.f32 %v5840, %v6585
      %v6680 = vadd.f32 %v5845, %v6590
      %v6681 = vadd.f32 %v5848, %v6593
      %v6682 = vadd.f32 %v5853, %v6598
      %v6683 = vadd.f32 %v5856, %v6601
      %v6684 = vadd.f32 %v5861, %v6606
      %v6685 = vadd.f32 %v5864, %v6609
      %v6686 = vadd.f32 %v5869, %v6614
      %v6687 = vadd.f32 %v5872, %v6617
      %v6688 = vadd.f32 %v5877, %v6622
      %v6689 = vadd.f32 %v5880, %v6625
      %v6690 = vadd.f32 %v5885, %v6630
      %v6691 = vadd.f32 %v5888, %v6633
      %v6692 = vadd.f32 %v5893, %v6638
      %v6693 = vadd.f32 %v5896, %v6641
      %v6694 = vadd.f32 %v5901, %v6646
      %v6695 = vadd.f32 %v5904, %v6649
      %v6696 = vadd.f32 %v5909, %v6654
      %v6697 = vadd.f32 %v5912, %v6657
      %v6698 = vadd.f32 %v5917, %v6662
      %v6699 = vadd.f32 %v5920, %v6665
      %v6700 = vsel %vm1540, %v6668, 0.0
      %v6701 = vsel %vm1540, %v6669, 0.0
      %v6702 = vadd.f32 %v6700, %v6701
      %v6703 = vsel %vm1540, %v6670, 0.0
      %v6704 = vadd.f32 %v6702, %v6703
      %v6705 = vsel %vm1540, %v6671, 0.0
      %v6706 = vadd.f32 %v6704, %v6705
      %v6707 = vsel %vm1540, %v6672, 0.0
      %v6708 = vadd.f32 %v6706, %v6707
      %v6709 = vsel %vm1540, %v6673, 0.0
      %v6710 = vadd.f32 %v6708, %v6709
      %v6711 = vsel %vm1540, %v6674, 0.0
      %v6712 = vadd.f32 %v6710, %v6711
      %v6713 = vsel %vm1540, %v6675, 0.0
      %v6714 = vadd.f32 %v6712, %v6713
      %v6715 = vsel %vm1540, %v6676, 0.0
      %v6716 = vadd.f32 %v6714, %v6715
      %v6717 = vsel %vm1540, %v6677, 0.0
      %v6718 = vadd.f32 %v6716, %v6717
      %v6719 = vsel %vm1540, %v6678, 0.0
      %v6720 = vadd.f32 %v6718, %v6719
      %v6721 = vsel %vm1540, %v6679, 0.0
      %v6722 = vadd.f32 %v6720, %v6721
      %v6723 = vsel %vm1540, %v6680, 0.0
      %v6724 = vadd.f32 %v6722, %v6723
      %v6725 = vsel %vm1540, %v6681, 0.0
      %v6726 = vadd.f32 %v6724, %v6725
      %v6727 = vsel %vm1540, %v6682, 0.0
      %v6728 = vadd.f32 %v6726, %v6727
      %v6729 = vsel %vm1540, %v6683, 0.0
      %v6730 = vadd.f32 %v6728, %v6729
      %v6731 = vsel %vm1540, %v6684, 0.0
      %v6732 = vadd.f32 %v6730, %v6731
      %v6733 = vsel %vm1540, %v6685, 0.0
      %v6734 = vadd.f32 %v6732, %v6733
      %v6735 = vsel %vm1540, %v6686, 0.0
      %v6736 = vadd.f32 %v6734, %v6735
      %v6737 = vsel %vm1540, %v6687, 0.0
      %v6738 = vadd.f32 %v6736, %v6737
      %v6739 = vsel %vm1540, %v6688, 0.0
      %v6740 = vadd.f32 %v6738, %v6739
      %v6741 = vsel %vm1540, %v6689, 0.0
      %v6742 = vadd.f32 %v6740, %v6741
      %v6743 = vsel %vm1540, %v6690, 0.0
      %v6744 = vadd.f32 %v6742, %v6743
      %v6745 = vsel %vm1540, %v6691, 0.0
      %v6746 = vadd.f32 %v6744, %v6745
      %v6747 = vsel %vm1540, %v6692, 0.0
      %v6748 = vadd.f32 %v6746, %v6747
      %v6749 = vsel %vm1540, %v6693, 0.0
      %v6750 = vadd.f32 %v6748, %v6749
      %v6751 = vsel %vm1540, %v6694, 0.0
      %v6752 = vadd.f32 %v6750, %v6751
      %v6753 = vsel %vm1540, %v6695, 0.0
      %v6754 = vadd.f32 %v6752, %v6753
      %v6755 = vsel %vm1540, %v6696, 0.0
      %v6756 = vadd.f32 %v6754, %v6755
      %v6757 = vsel %vm1540, %v6697, 0.0
      %v6758 = vadd.f32 %v6756, %v6757
      %v6759 = vsel %vm1540, %v6698, 0.0
      %v6760 = vadd.f32 %v6758, %v6759
      %v6761 = vsel %vm1540, %v6699, 0.0
      %v6762 = vadd.f32 %v6760, %v6761
      %v6763 = vrot.slane %v6762, 4
      %v6764 = vadd.f32 %v6762, %v6763
      %v6765 = vrot.slane %v6764, 2
      %v6766 = vadd.f32 %v6764, %v6765
      %v6767 = vrot.slane %v6766, 1
      %v6768 = vadd.f32 %v6766, %v6767
      %v6769 = vmul.f32 %v6768, 0.00390625
      %v6770 = vmul.f32 %v6668, %v6668
      %v6771 = vmul.f32 %v6669, %v6669
      %v6772 = vmul.f32 %v6670, %v6670
      %v6773 = vmul.f32 %v6671, %v6671
      %v6774 = vmul.f32 %v6672, %v6672
      %v6775 = vmul.f32 %v6673, %v6673
      %v6776 = vmul.f32 %v6674, %v6674
      %v6777 = vmul.f32 %v6675, %v6675
      %v6778 = vmul.f32 %v6676, %v6676
      %v6779 = vmul.f32 %v6677, %v6677
      %v6780 = vmul.f32 %v6678, %v6678
      %v6781 = vmul.f32 %v6679, %v6679
      %v6782 = vmul.f32 %v6680, %v6680
      %v6783 = vmul.f32 %v6681, %v6681
      %v6784 = vmul.f32 %v6682, %v6682
      %v6785 = vmul.f32 %v6683, %v6683
      %v6786 = vmul.f32 %v6684, %v6684
      %v6787 = vmul.f32 %v6685, %v6685
      %v6788 = vmul.f32 %v6686, %v6686
      %v6789 = vmul.f32 %v6687, %v6687
      %v6790 = vmul.f32 %v6688, %v6688
      %v6791 = vmul.f32 %v6689, %v6689
      %v6792 = vmul.f32 %v6690, %v6690
      %v6793 = vmul.f32 %v6691, %v6691
      %v6794 = vmul.f32 %v6692, %v6692
      %v6795 = vmul.f32 %v6693, %v6693
      %v6796 = vmul.f32 %v6694, %v6694
      %v6797 = vmul.f32 %v6695, %v6695
      %v6798 = vmul.f32 %v6696, %v6696
      %v6799 = vmul.f32 %v6697, %v6697
      %v6800 = vmul.f32 %v6698, %v6698
      %v6801 = vmul.f32 %v6699, %v6699
      %v6802 = vsel %vm1540, %v6770, 0.0
      %v6803 = vsel %vm1540, %v6771, 0.0
      %v6804 = vadd.f32 %v6802, %v6803
      %v6805 = vsel %vm1540, %v6772, 0.0
      %v6806 = vadd.f32 %v6804, %v6805
      %v6807 = vsel %vm1540, %v6773, 0.0
      %v6808 = vadd.f32 %v6806, %v6807
      %v6809 = vsel %vm1540, %v6774, 0.0
      %v6810 = vadd.f32 %v6808, %v6809
      %v6811 = vsel %vm1540, %v6775, 0.0
      %v6812 = vadd.f32 %v6810, %v6811
      %v6813 = vsel %vm1540, %v6776, 0.0
      %v6814 = vadd.f32 %v6812, %v6813
      %v6815 = vsel %vm1540, %v6777, 0.0
      %v6816 = vadd.f32 %v6814, %v6815
      %v6817 = vsel %vm1540, %v6778, 0.0
      %v6818 = vadd.f32 %v6816, %v6817
      %v6819 = vsel %vm1540, %v6779, 0.0
      %v6820 = vadd.f32 %v6818, %v6819
      %v6821 = vsel %vm1540, %v6780, 0.0
      %v6822 = vadd.f32 %v6820, %v6821
      %v6823 = vsel %vm1540, %v6781, 0.0
      %v6824 = vadd.f32 %v6822, %v6823
      %v6825 = vsel %vm1540, %v6782, 0.0
      %v6826 = vadd.f32 %v6824, %v6825
      %v6827 = vsel %vm1540, %v6783, 0.0
      %v6828 = vadd.f32 %v6826, %v6827
      %v6829 = vsel %vm1540, %v6784, 0.0
      %v6830 = vadd.f32 %v6828, %v6829
      %v6831 = vsel %vm1540, %v6785, 0.0
      %v6832 = vadd.f32 %v6830, %v6831
      %v6833 = vsel %vm1540, %v6786, 0.0
      %v6834 = vadd.f32 %v6832, %v6833
      %v6835 = vsel %vm1540, %v6787, 0.0
      %v6836 = vadd.f32 %v6834, %v6835
      %v6837 = vsel %vm1540, %v6788, 0.0
      %v6838 = vadd.f32 %v6836, %v6837
      %v6839 = vsel %vm1540, %v6789, 0.0
      %v6840 = vadd.f32 %v6838, %v6839
      %v6841 = vsel %vm1540, %v6790, 0.0
      %v6842 = vadd.f32 %v6840, %v6841
      %v6843 = vsel %vm1540, %v6791, 0.0
      %v6844 = vadd.f32 %v6842, %v6843
      %v6845 = vsel %vm1540, %v6792, 0.0
      %v6846 = vadd.f32 %v6844, %v6845
      %v6847 = vsel %vm1540, %v6793, 0.0
      %v6848 = vadd.f32 %v6846, %v6847
      %v6849 = vsel %vm1540, %v6794, 0.0
      %v6850 = vadd.f32 %v6848, %v6849
      %v6851 = vsel %vm1540, %v6795, 0.0
      %v6852 = vadd.f32 %v6850, %v6851
      %v6853 = vsel %vm1540, %v6796, 0.0
      %v6854 = vadd.f32 %v6852, %v6853
      %v6855 = vsel %vm1540, %v6797, 0.0
      %v6856 = vadd.f32 %v6854, %v6855
      %v6857 = vsel %vm1540, %v6798, 0.0
      %v6858 = vadd.f32 %v6856, %v6857
      %v6859 = vsel %vm1540, %v6799, 0.0
      %v6860 = vadd.f32 %v6858, %v6859
      %v6861 = vsel %vm1540, %v6800, 0.0
      %v6862 = vadd.f32 %v6860, %v6861
      %v6863 = vsel %vm1540, %v6801, 0.0
      %v6864 = vadd.f32 %v6862, %v6863
      %v6865 = vrot.slane %v6864, 4
      %v6866 = vadd.f32 %v6864, %v6865
      %v6867 = vrot.slane %v6866, 2
      %v6868 = vadd.f32 %v6866, %v6867
      %v6869 = vrot.slane %v6868, 1
      %v6870 = vadd.f32 %v6868, %v6869
      %v6871 = vmul.f32 %v6870, 0.00390625
      %v6872 = vmul.f32 %v6769, %v6769
      %v6873 = vsub.f32 %v6871, %v6872
      %v6874 = vsub.f32 %v6668, %v6769
      %v6875 = vsub.f32 %v6669, %v6769
      %v6876 = vsub.f32 %v6670, %v6769
      %v6877 = vsub.f32 %v6671, %v6769
      %v6878 = vsub.f32 %v6672, %v6769
      %v6879 = vsub.f32 %v6673, %v6769
      %v6880 = vsub.f32 %v6674, %v6769
      %v6881 = vsub.f32 %v6675, %v6769
      %v6882 = vsub.f32 %v6676, %v6769
      %v6883 = vsub.f32 %v6677, %v6769
      %v6884 = vsub.f32 %v6678, %v6769
      %v6885 = vsub.f32 %v6679, %v6769
      %v6886 = vsub.f32 %v6680, %v6769
      %v6887 = vsub.f32 %v6681, %v6769
      %v6888 = vsub.f32 %v6682, %v6769
      %v6889 = vsub.f32 %v6683, %v6769
      %v6890 = vsub.f32 %v6684, %v6769
      %v6891 = vsub.f32 %v6685, %v6769
      %v6892 = vsub.f32 %v6686, %v6769
      %v6893 = vsub.f32 %v6687, %v6769
      %v6894 = vsub.f32 %v6688, %v6769
      %v6895 = vsub.f32 %v6689, %v6769
      %v6896 = vsub.f32 %v6690, %v6769
      %v6897 = vsub.f32 %v6691, %v6769
      %v6898 = vsub.f32 %v6692, %v6769
      %v6899 = vsub.f32 %v6693, %v6769
      %v6900 = vsub.f32 %v6694, %v6769
      %v6901 = vsub.f32 %v6695, %v6769
      %v6902 = vsub.f32 %v6696, %v6769
      %v6903 = vsub.f32 %v6697, %v6769
      %v6904 = vsub.f32 %v6698, %v6769
      %v6905 = vsub.f32 %v6699, %v6769
      %v6906 = vadd.f32 %v6873, 1e-05
      %v6907 = vrsqrt.pop %v6906
      %v6908 = vmul.f32 %v6874, %v6907
      %v6909 = vmul.f32 %v6875, %v6907
      %v6910 = vmul.f32 %v6876, %v6907
      %v6911 = vmul.f32 %v6877, %v6907
      %v6912 = vmul.f32 %v6878, %v6907
      %v6913 = vmul.f32 %v6879, %v6907
      %v6914 = vmul.f32 %v6880, %v6907
      %v6915 = vmul.f32 %v6881, %v6907
      %v6916 = vmul.f32 %v6882, %v6907
      %v6917 = vmul.f32 %v6883, %v6907
      %v6918 = vmul.f32 %v6884, %v6907
      %v6919 = vmul.f32 %v6885, %v6907
      %v6920 = vmul.f32 %v6886, %v6907
      %v6921 = vmul.f32 %v6887, %v6907
      %v6922 = vmul.f32 %v6888, %v6907
      %v6923 = vmul.f32 %v6889, %v6907
      %v6924 = vmul.f32 %v6890, %v6907
      %v6925 = vmul.f32 %v6891, %v6907
      %v6926 = vmul.f32 %v6892, %v6907
      %v6927 = vmul.f32 %v6893, %v6907
      %v6928 = vmul.f32 %v6894, %v6907
      %v6929 = vmul.f32 %v6895, %v6907
      %v6930 = vmul.f32 %v6896, %v6907
      %v6931 = vmul.f32 %v6897, %v6907
      %v6932 = vmul.f32 %v6898, %v6907
      %v6933 = vmul.f32 %v6899, %v6907
      %v6934 = vmul.f32 %v6900, %v6907
      %v6935 = vmul.f32 %v6901, %v6907
      %v6936 = vmul.f32 %v6902, %v6907
      %v6937 = vmul.f32 %v6903, %v6907
      %v6938 = vmul.f32 %v6904, %v6907
      %v6939 = vmul.f32 %v6905, %v6907
      %v6940 = vld [vmem:[%s165] sm:$0xff]
      %v6941 = vld [vmem:[%s165 + $0x8] sm:$0xff]
      %v6942 = vld [vmem:[%s165 + $0x10] sm:$0xff]
      %v6943 = vld [vmem:[%s165 + $0x18] sm:$0xff]
      %v6944 = vld [vmem:[%s165 + $0x20] sm:$0xff]
      %v6945 = vld [vmem:[%s165 + $0x28] sm:$0xff]
      %v6946 = vld [vmem:[%s165 + $0x30] sm:$0xff]
      %v6947 = vld [vmem:[%s165 + $0x38] sm:$0xff]
      %v6948 = vld [vmem:[%s165 + $0x40] sm:$0xff]
      %v6949 = vld [vmem:[%s165 + $0x48] sm:$0xff]
      %v6950 = vld [vmem:[%s165 + $0x50] sm:$0xff]
      %v6951 = vld [vmem:[%s165 + $0x58] sm:$0xff]
      %v6952 = vld [vmem:[%s165 + $0x60] sm:$0xff]
      %v6953 = vld [vmem:[%s165 + $0x68] sm:$0xff]
      %v6954 = vld [vmem:[%s165 + $0x70] sm:$0xff]
      %v6955 = vld [vmem:[%s165 + $0x78] sm:$0xff]
      %v6956 = vld [vmem:[%s165 + $0x80] sm:$0xff]
      %v6957 = vld [vmem:[%s165 + $0x88] sm:$0xff]
      %v6958 = vld [vmem:[%s165 + $0x90] sm:$0xff]
      %v6959 = vld [vmem:[%s165 + $0x98] sm:$0xff]
      %v6960 = vld [vmem:[%s165 + $0xa0] sm:$0xff]
      %v6961 = vld [vmem:[%s165 + $0xa8] sm:$0xff]
      %v6962 = vld [vmem:[%s165 + $0xb0] sm:$0xff]
      %v6963 = vld [vmem:[%s165 + $0xb8] sm:$0xff]
      %v6964 = vld [vmem:[%s165 + $0xc0] sm:$0xff]
      %v6965 = vld [vmem:[%s165 + $0xc8] sm:$0xff]
      %v6966 = vld [vmem:[%s165 + $0xd0] sm:$0xff]
      %v6967 = vld [vmem:[%s165 + $0xd8] sm:$0xff]
      %v6968 = vld [vmem:[%s165 + $0xe0] sm:$0xff]
      %v6969 = vld [vmem:[%s165 + $0xe8] sm:$0xff]
      %v6970 = vld [vmem:[%s165 + $0xf0] sm:$0xff]
      %v6971 = vld [vmem:[%s165 + $0xf8] sm:$0xff]
      %v6972 = vadd.f32 %v6940, %v6908
      %v6973 = vadd.f32 %v6941, %v6909
      %v6974 = vadd.f32 %v6942, %v6910
      %v6975 = vadd.f32 %v6943, %v6911
      %v6976 = vadd.f32 %v6944, %v6912
      %v6977 = vadd.f32 %v6945, %v6913
      %v6978 = vadd.f32 %v6946, %v6914
      %v6979 = vadd.f32 %v6947, %v6915
      %v6980 = vadd.f32 %v6948, %v6916
      %v6981 = vadd.f32 %v6949, %v6917
      %v6982 = vadd.f32 %v6950, %v6918
      %v6983 = vadd.f32 %v6951, %v6919
      %v6984 = vadd.f32 %v6952, %v6920
      %v6985 = vadd.f32 %v6953, %v6921
      %v6986 = vadd.f32 %v6954, %v6922
      %v6987 = vadd.f32 %v6955, %v6923
      %v6988 = vadd.f32 %v6956, %v6924
      %v6989 = vadd.f32 %v6957, %v6925
      %v6990 = vadd.f32 %v6958, %v6926
      %v6991 = vadd.f32 %v6959, %v6927
      %v6992 = vadd.f32 %v6960, %v6928
      %v6993 = vadd.f32 %v6961, %v6929
      %v6994 = vadd.f32 %v6962, %v6930
      %v6995 = vadd.f32 %v6963, %v6931
      %v6996 = vadd.f32 %v6964, %v6932
      %v6997 = vadd.f32 %v6965, %v6933
      %v6998 = vadd.f32 %v6966, %v6934
      %v6999 = vadd.f32 %v6967, %v6935
      %v7000 = vadd.f32 %v6968, %v6936
      %v7001 = vadd.f32 %v6969, %v6937
      %v7002 = vadd.f32 %v6970, %v6938
      %v7003 = vadd.f32 %v6971, %v6939
      %7004 = vst.msk [vmem:[%s170] sm:$0xff] %vm1540, %v6972
      %7005 = vst.msk [vmem:[%s170 + $0x8] sm:$0xff] %vm1540, %v6973
      %7006 = vst.msk [vmem:[%s170 + $0x10] sm:$0xff] %vm1540, %v6974
      %7007 = vst.msk [vmem:[%s170 + $0x18] sm:$0xff] %vm1540, %v6975
      %7008 = vst.msk [vmem:[%s170 + $0x20] sm:$0xff] %vm1540, %v6976
      %7009 = vst.msk [vmem:[%s170 + $0x28] sm:$0xff] %vm1540, %v6977
      %7010 = vst.msk [vmem:[%s170 + $0x30] sm:$0xff] %vm1540, %v6978
      %7011 = vst.msk [vmem:[%s170 + $0x38] sm:$0xff] %vm1540, %v6979
      %7012 = vst.msk [vmem:[%s170 + $0x40] sm:$0xff] %vm1540, %v6980
      %7013 = vst.msk [vmem:[%s170 + $0x48] sm:$0xff] %vm1540, %v6981
      %7014 = vst.msk [vmem:[%s170 + $0x50] sm:$0xff] %vm1540, %v6982
      %7015 = vst.msk [vmem:[%s170 + $0x58] sm:$0xff] %vm1540, %v6983
      %7016 = vst.msk [vmem:[%s170 + $0x60] sm:$0xff] %vm1540, %v6984
      %7017 = vst.msk [vmem:[%s170 + $0x68] sm:$0xff] %vm1540, %v6985
      %7018 = vst.msk [vmem:[%s170 + $0x70] sm:$0xff] %vm1540, %v6986
      %7019 = vst.msk [vmem:[%s170 + $0x78] sm:$0xff] %vm1540, %v6987
      %7020 = vst.msk [vmem:[%s170 + $0x80] sm:$0xff] %vm1540, %v6988
      %7021 = vst.msk [vmem:[%s170 + $0x88] sm:$0xff] %vm1540, %v6989
      %7022 = vst.msk [vmem:[%s170 + $0x90] sm:$0xff] %vm1540, %v6990
      %7023 = vst.msk [vmem:[%s170 + $0x98] sm:$0xff] %vm1540, %v6991
      %7024 = vst.msk [vmem:[%s170 + $0xa0] sm:$0xff] %vm1540, %v6992
      %7025 = vst.msk [vmem:[%s170 + $0xa8] sm:$0xff] %vm1540, %v6993
      %7026 = vst.msk [vmem:[%s170 + $0xb0] sm:$0xff] %vm1540, %v6994
      %7027 = vst.msk [vmem:[%s170 + $0xb8] sm:$0xff] %vm1540, %v6995
      %7028 = vst.msk [vmem:[%s170 + $0xc0] sm:$0xff] %vm1540, %v6996
      %7029 = vst.msk [vmem:[%s170 + $0xc8] sm:$0xff] %vm1540, %v6997
      %7030 = vst.msk [vmem:[%s170 + $0xd0] sm:$0xff] %vm1540, %v6998
      %7031 = vst.msk [vmem:[%s170 + $0xd8] sm:$0xff] %vm1540, %v6999
      %7032 = vst.msk [vmem:[%s170 + $0xe0] sm:$0xff] %vm1540, %v7000
      %7033 = vst.msk [vmem:[%s170 + $0xe8] sm:$0xff] %vm1540, %v7001
      %7034 = vst.msk [vmem:[%s170 + $0xf0] sm:$0xff] %vm1540, %v7002
      %7035 = vst.msk [vmem:[%s170 + $0xf8] sm:$0xff] %vm1540, %v7003
      %p7036 = scmp.lt.s32.totalorder %s14, 1
      %s7037 = scalar_select %p7036, %s14, 1
      %s7038 = smul.addr %s7037, 32
      %s7039 = smul.addr %s7038, 8
      %s7040 = scalar_lea.vmem %s3, %s7039
      // Predicated region
      $region33: #{resnet_block_pallas.1} parent=31 // pred_check
        %p7041 = pneg %p100
      $region34: #{resnet_block_pallas.1} parent=31 // pred_check_branch
        %7043 = sbr.rel (%p7041) target = $region36
      $region35: #{resnet_block_pallas.1} parent=31 // pred_region
        _
      $region36: #{resnet_block_pallas.1} parent=31 // pred_fallthru
        _
    $region32: #{resnet_block_pallas.1} parent=5 // pred_fallthru
      _
    %p7044 = scmp.le.s32.totalorder 2, %s9
    // Predicated region
    $region37: #{resnet_block_pallas.1} parent=5 // pred_check
      %p7045 = pneg %p7044
    $region38: #{resnet_block_pallas.1} parent=5 // pred_check_branch
      %7047 = sbr.rel (%p7045) target = $region40
    $region39: #{resnet_block_pallas.1} parent=5 // pred_region
      %s7048 = ssub.s32 %s9, 2
      // Predicated region
      $region41: #{resnet_block_pallas.1} parent=39 // pred_check
        %p7049 = pneg %p106
      $region42: #{resnet_block_pallas.1} parent=39 // pred_check_branch
        %7051 = sbr.rel (%p7049) target = $region44
      $region43: #{resnet_block_pallas.1} parent=39 // pred_region
        %p7052 = scmp.lt.s32.totalorder %s15, 1
        %s7053 = scalar_select %p7052, %s15, 1
        %s7054 = smul.addr %s7053, 32
        %s7055 = smul.addr %s7054, 8
        %s7056 = scalar_lea.vmem %s3, %s7055
      $region44: #{resnet_block_pallas.1} parent=39 // pred_fallthru
        _
    $region40: #{resnet_block_pallas.1} parent=5 // pred_fallthru
      _
  $region6: #{resnet_block_pallas.1} parent=0 // loop_footer
    %s13 = sadd.s32 1, %s9
  $region7: #{resnet_block_pallas.1} parent=0 // loop_footer_branch
    %8 = sbr.rel target = $region3
  $region8: #{resnet_block_pallas.1} parent=0 // loop_exit
    _

</llo_original>
